<compile_context>
chip_gen: v6e
topology: v6e:2x2x1
jax: 0.10.0
libtpu: 0.0.40
codegen_flags: <defaults>
</compile_context>

<pallas_src>
import functools

import jax
import jax.numpy as jnp
from jax.experimental import pallas as pl
from jax.experimental.pallas import tpu as pltpu

EPS = 1e-5          # PyTorch BatchNorm2d default eps
CPAD = 8            # per-tap row stride in the rhs scratch (sublane alignment)
# 3x3 taps, kh-major (matches PyTorch weight[..., kh, kw] ordering)
TAPS = tuple((kh - 1, kw - 1) for kh in range(3) for kw in range(3))


# ------------------------------ kernel helpers ------------------------------ #
def _mm(a, b):
    # (C_out, K) @ (K, M) -> (C_out, M), exact f32 accumulation on the MXU.
    return jax.lax.dot_general(
        a, b, (((1,), (0,)), ((), ())),
        precision=jax.lax.Precision.HIGHEST,
        preferred_element_type=jnp.float32)


def _bn_fold(y, gamma, beta, inv_m):
    # y: (C, M) with M = N*H*W positions on lanes.  Training-mode BatchNorm
    # folded to a single scale/shift: one pass for sum and sum-of-squares,
    # biased variance (matches PyTorch forward normalization).
    s1 = jnp.sum(y, axis=1, keepdims=True)
    s2 = jnp.sum(y * y, axis=1, keepdims=True)
    mean = s1 * inv_m
    var = s2 * inv_m - mean * mean
    scale = gamma * jax.lax.rsqrt(var + EPS)
    shift = beta - mean * scale
    return y * scale + shift


# ------------------------------- Pallas kernel ------------------------------ #
def residual_block_kernel(x_ref, masks_ref, w1_ref, wt_ref,
                          g1_ref, b1_ref, gt_ref, bt_ref,
                          o_ref, rhs_ref, *, width, cout):
    cpad, m = x_ref.shape                     # (8, N*H*W)
    x = x_ref[...]                            # channels on sublanes, pixels on lanes
    masks = masks_ref[...]                    # (9, M) 0/1 validity of each tap
    inv_m = 1.0 / m

    def fill_taps(src):
        # Write the 9 shifted-and-masked copies of `src` into rows [0, 9*CPAD)
        # of the rhs scratch (in-VMEM im2col; all stores are 8-row aligned).
        for t, (dh, dw) in enumerate(TAPS):
            s = dh * width + dw               # pixel shift of this tap
            rolled = pltpu.roll(src, shift=(-s) % m, axis=1) if s else src
            rhs_ref[pl.ds(t * cpad, cpad), :] = rolled * masks[t:t + 1, :]

    # Skip-branch rows (un-shifted input read by the 1x1 downsample conv).
    rhs_ref[pl.ds(9 * cpad, cpad), :] = x

    # ---- conv1 -> bn1 (folded batch stats) -> relu, all in VMEM ------------- #
    fill_taps(x)
    y1 = _mm(w1_ref[...], rhs_ref[...])                       # (Cout, M)
    h = jnp.maximum(_bn_fold(y1, g1_ref[...], b1_ref[...], inv_m), 0.0)

    # ---- conv2 + downsample as ONE block-diagonal matmul -------------------- #
    fill_taps(h)                                              # reuse the scratch
    z = _mm(wt_ref[...], rhs_ref[...])                        # (2*Cout, M)
    zb = _bn_fold(z, gt_ref[...], bt_ref[...], inv_m)         # bn2 rows | bn_d rows
    o_ref[...] = jnp.maximum(zb[:cout, :] + zb[cout:, :], 0.0)


# ------------------------------- call wrapper ------------------------------- #
def _vmem():
    return pl.BlockSpec(memory_space=pltpu.MemorySpace.VMEM)


def residual_block_forward(x_nchw, params):
    x = x_nchw.astype(jnp.float32)
    n, cin, hh, ww = x.shape
    cout = params["w1"].shape[0]
    m = n * hh * ww
    # This toy instantiation keeps one tap-row stride for both convs.
    assert cout == CPAD and cin <= CPAD

    # NCHW -> (C, N*H*W): channels on sublanes, pixels on lanes (lane-dense).
    x2 = jnp.transpose(x, (1, 0, 2, 3)).reshape(cin, m)
    xpad = jnp.zeros((CPAD, m), jnp.float32).at[:cin].set(x2)

    # 3x3 tap validity masks (pure index metadata, shared by both convs).
    r = jnp.arange(m, dtype=jnp.int32)
    hr = (r // ww) % hh
    wr = r % ww
    masks = jnp.stack([((hr + dh >= 0) & (hr + dh < hh) &
                        (wr + dw >= 0) & (wr + dw < ww)).astype(jnp.float32)
                       for dh, dw in TAPS])                      # (9, M)

    # conv1 weight -> (Cout, 10*CPAD) tap-major matrix; padded channels and the
    # skip rows (which conv1 must ignore) get zero columns.
    w1c = jnp.zeros((cout, 10 * CPAD), jnp.float32)
    for t in range(9):
        kh, kw = t // 3, t % 3
        w1c = w1c.at[:, t * CPAD:t * CPAD + cin].set(params["w1"][:, :, kh, kw])

    # conv2 + downsample fused into one block-diagonal weight:
    # rows [0, Cout) -> conv2 over the h taps, rows [Cout, 2*Cout) -> 1x1
    # downsample conv over the un-shifted input rows.
    wt = jnp.zeros((2 * cout, 10 * CPAD), jnp.float32)
    for t in range(9):
        kh, kw = t // 3, t % 3
        wt = wt.at[:cout, t * CPAD:t * CPAD + cout].set(params["w2"][:, :, kh, kw])
    wt = wt.at[cout:, 9 * CPAD:9 * CPAD + cin].set(params["wd"][:, :, 0, 0])

    g1 = params["g1"].reshape(cout, 1)
    b1 = params["b1"].reshape(cout, 1)
    gt = jnp.concatenate([params["g2"], params["gd"]]).reshape(2 * cout, 1)
    bt = jnp.concatenate([params["b2"], params["bd"]]).reshape(2 * cout, 1)

    kernel = functools.partial(residual_block_kernel, width=ww, cout=cout)
    out2 = pl.pallas_call(
        kernel,
        out_shape=jax.ShapeDtypeStruct((cout, m), jnp.float32),
        in_specs=[_vmem()] * 8,
        out_specs=_vmem(),
        scratch_shapes=[pltpu.VMEM((10 * CPAD, m), jnp.float32)],
    )(xpad, masks, w1c, wt, g1, b1, gt, bt)

    # (Cout, N*H*W) -> NCHW (module I/O contract is NCHW).
    return jnp.transpose(out2.reshape(cout, n, hh, ww), (1, 0, 2, 3))


# ------------------------- pure-JAX reference check ------------------------- #
def _reference_forward(x, params):
    def conv(inp, w, pad):
        return jax.lax.conv_general_dilated(
            inp, w, (1, 1), [(pad, pad), (pad, pad)],
            dimension_numbers=("NCHW", "OIHW", "NCHW"),
            precision=jax.lax.Precision.HIGHEST)

    def bn(inp, g, b):
        mean = jnp.mean(inp, axis=(0, 2, 3), keepdims=True)
        var = jnp.mean((inp - mean) ** 2, axis=(0, 2, 3), keepdims=True)
        gg = g.reshape(1, -1, 1, 1)
        bb = b.reshape(1, -1, 1, 1)
        return (inp - mean) * jax.lax.rsqrt(var + EPS) * gg + bb

    h = jax.nn.relu(bn(conv(x, params["w1"], 1), params["g1"], params["b1"]))
    main = bn(conv(h, params["w2"], 1), params["g2"], params["b2"])
    skip = bn(conv(x, params["wd"], 0), params["gd"], params["bd"])
    return jax.nn.relu(main + skip)


# ----------------------------------- main ----------------------------------- #
if __name__ == "__main__":
    N, Cin, H, W = 2, 4, 16, 16
    Cout = 8  # Cin != Cout -> downsample = conv1x1 + BN (as in the module)

    key = jax.random.PRNGKey(0)
    ks = jax.random.split(key, 10)
    params = {
        "w1": 0.2 * jax.random.normal(ks[0], (Cout, Cin, 3, 3), jnp.float32),
        "g1": 1.0 + 0.1 * jax.random.normal(ks[1], (Cout,), jnp.float32),
        "b1": 0.1 * jax.random.normal(ks[2], (Cout,), jnp.float32),
        "w2": 0.2 * jax.random.normal(ks[3], (Cout, Cout, 3, 3), jnp.float32),
        "g2": 1.0 + 0.1 * jax.random.normal(ks[4], (Cout,), jnp.float32),
        "b2": 0.1 * jax.random.normal(ks[5], (Cout,), jnp.float32),
        "wd": 0.2 * jax.random.normal(ks[6], (Cout, Cin, 1, 1), jnp.float32),
        "gd": 1.0 + 0.1 * jax.random.normal(ks[7], (Cout,), jnp.float32),
        "bd": 0.1 * jax.random.normal(ks[8], (Cout,), jnp.float32),
    }
    x = jax.random.normal(ks[9], (N, Cin, H, W), jnp.float32)

    fwd = jax.jit(lambda inp: residual_block_forward(inp, params))
    out = jax.block_until_ready(fwd(x))

    ref = _reference_forward(x, params)
    assert out.shape == (N, Cout, H, W), out.shape
    max_err = float(jnp.max(jnp.abs(out - ref)))
    assert jnp.allclose(out, ref, atol=1e-3, rtol=1e-3), f"max abs err {max_err}"

    print("KERNEL_OK")
</pallas_src>

<mosaic_0001>
module attributes {stable_mosaic.version = 11 : i64} {
  func.func @residual_block_kernel(%arg0: memref<8x512xf32, #tpu.memory_space<vmem>>, %arg1: memref<9x512xf32, #tpu.memory_space<vmem>>, %arg2: memref<8x80xf32, #tpu.memory_space<vmem>>, %arg3: memref<16x80xf32, #tpu.memory_space<vmem>>, %arg4: memref<8x1xf32, #tpu.memory_space<vmem>>, %arg5: memref<8x1xf32, #tpu.memory_space<vmem>>, %arg6: memref<16x1xf32, #tpu.memory_space<vmem>>, %arg7: memref<16x1xf32, #tpu.memory_space<vmem>>, %arg8: memref<8x512xf32, #tpu.memory_space<vmem>>, %arg9: memref<80x512xf32, #tpu.memory_space<vmem>>) attributes {dimension_semantics = [], scalar_prefetch = 0 : i64, scratch_operands = 1 : i64, tpu.core_type = #tpu.core_type<tc>} {
    %c0 = arith.constant 0 : index
    %c0_0 = arith.constant 0 : index
    %0 = vector.load %arg0[%c0, %c0_0] : memref<8x512xf32, #tpu.memory_space<vmem>>, vector<8x512xf32>
    %c0_1 = arith.constant 0 : index
    %c0_2 = arith.constant 0 : index
    %1 = vector.load %arg1[%c0_1, %c0_2] : memref<9x512xf32, #tpu.memory_space<vmem>>, vector<9x512xf32>
    %c72 = arith.constant 72 : index
    %c0_3 = arith.constant 0 : index
    %2 = vector.load %arg9[%c72, %c0_3] : memref<80x512xf32, #tpu.memory_space<vmem>>, vector<8x512xf32>
    tpu.vector_store %arg9[%c72, %c0_3], %0 {strides = array<i32>} : memref<80x512xf32, #tpu.memory_space<vmem>>, vector<8x512xf32>,
    %c17_i32 = arith.constant 17 : i32
    %3 = tpu.dynamic_rotate %0 by %c17_i32 dim 1 : vector<8x512xf32>, i32 -> vector<8x512xf32>
    %4 = vector.extract_strided_slice %1 {offsets = [0, 0], sizes = [1, 512], strides = [1, 1]} : vector<9x512xf32> to vector<1x512xf32>
    %5 = vector.broadcast %4 : vector<1x512xf32> to vector<8x512xf32>
    %6 = arith.mulf %3, %5 : vector<8x512xf32>
    %c0_4 = arith.constant 0 : index
    %c0_5 = arith.constant 0 : index
    %7 = vector.load %arg9[%c0_4, %c0_5] : memref<80x512xf32, #tpu.memory_space<vmem>>, vector<8x512xf32>
    tpu.vector_store %arg9[%c0_4, %c0_5], %6 {strides = array<i32>} : memref<80x512xf32, #tpu.memory_space<vmem>>, vector<8x512xf32>,
    %c16_i32 = arith.constant 16 : i32
    %8 = tpu.dynamic_rotate %0 by %c16_i32 dim 1 : vector<8x512xf32>, i32 -> vector<8x512xf32>
    %9 = vector.extract_strided_slice %1 {offsets = [1, 0], sizes = [1, 512], strides = [1, 1]} : vector<9x512xf32> to vector<1x512xf32>
    %10 = vector.broadcast %9 : vector<1x512xf32> to vector<8x512xf32>
    %11 = arith.mulf %8, %10 : vector<8x512xf32>
    %c8 = arith.constant 8 : index
    %c0_6 = arith.constant 0 : index
    %12 = vector.load %arg9[%c8, %c0_6] : memref<80x512xf32, #tpu.memory_space<vmem>>, vector<8x512xf32>
    tpu.vector_store %arg9[%c8, %c0_6], %11 {strides = array<i32>} : memref<80x512xf32, #tpu.memory_space<vmem>>, vector<8x512xf32>,
    %c15_i32 = arith.constant 15 : i32
    %13 = tpu.dynamic_rotate %0 by %c15_i32 dim 1 : vector<8x512xf32>, i32 -> vector<8x512xf32>
    %14 = vector.extract_strided_slice %1 {offsets = [2, 0], sizes = [1, 512], strides = [1, 1]} : vector<9x512xf32> to vector<1x512xf32>
    %15 = vector.broadcast %14 : vector<1x512xf32> to vector<8x512xf32>
    %16 = arith.mulf %13, %15 : vector<8x512xf32>
    %c16 = arith.constant 16 : index
    %c0_7 = arith.constant 0 : index
    %17 = vector.load %arg9[%c16, %c0_7] : memref<80x512xf32, #tpu.memory_space<vmem>>, vector<8x512xf32>
    tpu.vector_store %arg9[%c16, %c0_7], %16 {strides = array<i32>} : memref<80x512xf32, #tpu.memory_space<vmem>>, vector<8x512xf32>,
    %c1_i32 = arith.constant 1 : i32
    %18 = tpu.dynamic_rotate %0 by %c1_i32 dim 1 : vector<8x512xf32>, i32 -> vector<8x512xf32>
    %19 = vector.extract_strided_slice %1 {offsets = [3, 0], sizes = [1, 512], strides = [1, 1]} : vector<9x512xf32> to vector<1x512xf32>
    %20 = vector.broadcast %19 : vector<1x512xf32> to vector<8x512xf32>
    %21 = arith.mulf %18, %20 : vector<8x512xf32>
    %c24 = arith.constant 24 : index
    %c0_8 = arith.constant 0 : index
    %22 = vector.load %arg9[%c24, %c0_8] : memref<80x512xf32, #tpu.memory_space<vmem>>, vector<8x512xf32>
    tpu.vector_store %arg9[%c24, %c0_8], %21 {strides = array<i32>} : memref<80x512xf32, #tpu.memory_space<vmem>>, vector<8x512xf32>,
    %23 = vector.extract_strided_slice %1 {offsets = [4, 0], sizes = [1, 512], strides = [1, 1]} : vector<9x512xf32> to vector<1x512xf32>
    %24 = vector.broadcast %23 : vector<1x512xf32> to vector<8x512xf32>
    %25 = arith.mulf %0, %24 : vector<8x512xf32>
    %c32 = arith.constant 32 : index
    %c0_9 = arith.constant 0 : index
    %26 = vector.load %arg9[%c32, %c0_9] : memref<80x512xf32, #tpu.memory_space<vmem>>, vector<8x512xf32>
    tpu.vector_store %arg9[%c32, %c0_9], %25 {strides = array<i32>} : memref<80x512xf32, #tpu.memory_space<vmem>>, vector<8x512xf32>,
    %c511_i32 = arith.constant 511 : i32
    %27 = tpu.dynamic_rotate %0 by %c511_i32 dim 1 : vector<8x512xf32>, i32 -> vector<8x512xf32>
    %28 = vector.extract_strided_slice %1 {offsets = [5, 0], sizes = [1, 512], strides = [1, 1]} : vector<9x512xf32> to vector<1x512xf32>
    %29 = vector.broadcast %28 : vector<1x512xf32> to vector<8x512xf32>
    %30 = arith.mulf %27, %29 : vector<8x512xf32>
    %c40 = arith.constant 40 : index
    %c0_10 = arith.constant 0 : index
    %31 = vector.load %arg9[%c40, %c0_10] : memref<80x512xf32, #tpu.memory_space<vmem>>, vector<8x512xf32>
    tpu.vector_store %arg9[%c40, %c0_10], %30 {strides = array<i32>} : memref<80x512xf32, #tpu.memory_space<vmem>>, vector<8x512xf32>,
    %c497_i32 = arith.constant 497 : i32
    %32 = tpu.dynamic_rotate %0 by %c497_i32 dim 1 : vector<8x512xf32>, i32 -> vector<8x512xf32>
    %33 = vector.extract_strided_slice %1 {offsets = [6, 0], sizes = [1, 512], strides = [1, 1]} : vector<9x512xf32> to vector<1x512xf32>
    %34 = vector.broadcast %33 : vector<1x512xf32> to vector<8x512xf32>
    %35 = arith.mulf %32, %34 : vector<8x512xf32>
    %c48 = arith.constant 48 : index
    %c0_11 = arith.constant 0 : index
    %36 = vector.load %arg9[%c48, %c0_11] : memref<80x512xf32, #tpu.memory_space<vmem>>, vector<8x512xf32>
    tpu.vector_store %arg9[%c48, %c0_11], %35 {strides = array<i32>} : memref<80x512xf32, #tpu.memory_space<vmem>>, vector<8x512xf32>,
    %c496_i32 = arith.constant 496 : i32
    %37 = tpu.dynamic_rotate %0 by %c496_i32 dim 1 : vector<8x512xf32>, i32 -> vector<8x512xf32>
    %38 = vector.extract_strided_slice %1 {offsets = [7, 0], sizes = [1, 512], strides = [1, 1]} : vector<9x512xf32> to vector<1x512xf32>
    %39 = vector.broadcast %38 : vector<1x512xf32> to vector<8x512xf32>
    %40 = arith.mulf %37, %39 : vector<8x512xf32>
    %c56 = arith.constant 56 : index
    %c0_12 = arith.constant 0 : index
    %41 = vector.load %arg9[%c56, %c0_12] : memref<80x512xf32, #tpu.memory_space<vmem>>, vector<8x512xf32>
    tpu.vector_store %arg9[%c56, %c0_12], %40 {strides = array<i32>} : memref<80x512xf32, #tpu.memory_space<vmem>>, vector<8x512xf32>,
    %c495_i32 = arith.constant 495 : i32
    %42 = tpu.dynamic_rotate %0 by %c495_i32 dim 1 : vector<8x512xf32>, i32 -> vector<8x512xf32>
    %43 = vector.extract_strided_slice %1 {offsets = [8, 0], sizes = [1, 512], strides = [1, 1]} : vector<9x512xf32> to vector<1x512xf32>
    %44 = vector.broadcast %43 : vector<1x512xf32> to vector<8x512xf32>
    %45 = arith.mulf %42, %44 : vector<8x512xf32>
    %c64 = arith.constant 64 : index
    %c0_13 = arith.constant 0 : index
    %46 = vector.load %arg9[%c64, %c0_13] : memref<80x512xf32, #tpu.memory_space<vmem>>, vector<8x512xf32>
    tpu.vector_store %arg9[%c64, %c0_13], %45 {strides = array<i32>} : memref<80x512xf32, #tpu.memory_space<vmem>>, vector<8x512xf32>,
    %c0_14 = arith.constant 0 : index
    %c0_15 = arith.constant 0 : index
    %47 = vector.load %arg2[%c0_14, %c0_15] : memref<8x80xf32, #tpu.memory_space<vmem>>, vector<8x80xf32>
    %c0_16 = arith.constant 0 : index
    %c0_17 = arith.constant 0 : index
    %48 = vector.load %arg9[%c0_16, %c0_17] : memref<80x512xf32, #tpu.memory_space<vmem>>, vector<80x512xf32>
    %cst = arith.constant dense<0.000000e+00> : vector<8x512xf32>
    %49 = tpu.matmul %47, %48, %cst {dimension_numbers = #tpu.dot_dimension_numbers<[1], [0], [0], [1], [0, 0, 1, 1], [], []>, precision = #tpu.contract_precision<fp32>} : vector<8x80xf32>, vector<80x512xf32>, vector<8x512xf32> -> vector<8x512xf32>
    %c0_18 = arith.constant 0 : index
    %c0_19 = arith.constant 0 : index
    %50 = vector.load %arg4[%c0_18, %c0_19] : memref<8x1xf32, #tpu.memory_space<vmem>>, vector<8x1xf32>
    %c0_20 = arith.constant 0 : index
    %c0_21 = arith.constant 0 : index
    %51 = vector.load %arg5[%c0_20, %c0_21] : memref<8x1xf32, #tpu.memory_space<vmem>>, vector<8x1xf32>
    %cst_22 = arith.constant dense<0.000000e+00> : vector<8xf32>
    %52 = vector.multi_reduction <add>, %49, %cst_22 [1] : vector<8x512xf32> to vector<8xf32>
    %53 = vector.shape_cast %52 : vector<8xf32> to vector<8x1xf32>
    %54 = arith.mulf %49, %49 : vector<8x512xf32>
    %cst_23 = arith.constant dense<0.000000e+00> : vector<8xf32>
    %55 = vector.multi_reduction <add>, %54, %cst_23 [1] : vector<8x512xf32> to vector<8xf32>
    %56 = vector.shape_cast %55 : vector<8xf32> to vector<8x1xf32>
    %cst_24 = arith.constant 0.001953125 : f32
    %57 = vector.broadcast %cst_24 : f32 to vector<8x1xf32>
    %58 = arith.mulf %53, %57 : vector<8x1xf32>
    %cst_25 = arith.constant 0.001953125 : f32
    %59 = vector.broadcast %cst_25 : f32 to vector<8x1xf32>
    %60 = arith.mulf %56, %59 : vector<8x1xf32>
    %61 = arith.mulf %58, %58 : vector<8x1xf32>
    %62 = arith.subf %60, %61 : vector<8x1xf32>
    %cst_26 = arith.constant 9.99999974E-6 : f32
    %63 = vector.broadcast %cst_26 : f32 to vector<8x1xf32>
    %64 = arith.addf %62, %63 : vector<8x1xf32>
    %65 = math.rsqrt %64 : vector<8x1xf32>
    %66 = arith.mulf %50, %65 : vector<8x1xf32>
    %67 = arith.mulf %58, %66 : vector<8x1xf32>
    %68 = arith.subf %51, %67 : vector<8x1xf32>
    %69 = vector.broadcast %66 : vector<8x1xf32> to vector<8x512xf32>
    %70 = arith.mulf %49, %69 : vector<8x512xf32>
    %71 = vector.broadcast %68 : vector<8x1xf32> to vector<8x512xf32>
    %72 = arith.addf %70, %71 : vector<8x512xf32>
    %cst_27 = arith.constant 0.000000e+00 : f32
    %73 = vector.broadcast %cst_27 : f32 to vector<8x512xf32>
    %74 = arith.maximumf %72, %73 : vector<8x512xf32>
    %c17_i32_28 = arith.constant 17 : i32
    %75 = tpu.dynamic_rotate %74 by %c17_i32_28 dim 1 : vector<8x512xf32>, i32 -> vector<8x512xf32>
    %76 = vector.extract_strided_slice %1 {offsets = [0, 0], sizes = [1, 512], strides = [1, 1]} : vector<9x512xf32> to vector<1x512xf32>
    %77 = vector.broadcast %76 : vector<1x512xf32> to vector<8x512xf32>
    %78 = arith.mulf %75, %77 : vector<8x512xf32>
    %c0_29 = arith.constant 0 : index
    %c0_30 = arith.constant 0 : index
    %79 = vector.load %arg9[%c0_29, %c0_30] : memref<80x512xf32, #tpu.memory_space<vmem>>, vector<8x512xf32>
    tpu.vector_store %arg9[%c0_29, %c0_30], %78 {strides = array<i32>} : memref<80x512xf32, #tpu.memory_space<vmem>>, vector<8x512xf32>,
    %c16_i32_31 = arith.constant 16 : i32
    %80 = tpu.dynamic_rotate %74 by %c16_i32_31 dim 1 : vector<8x512xf32>, i32 -> vector<8x512xf32>
    %81 = vector.extract_strided_slice %1 {offsets = [1, 0], sizes = [1, 512], strides = [1, 1]} : vector<9x512xf32> to vector<1x512xf32>
    %82 = vector.broadcast %81 : vector<1x512xf32> to vector<8x512xf32>
    %83 = arith.mulf %80, %82 : vector<8x512xf32>
    %c8_32 = arith.constant 8 : index
    %c0_33 = arith.constant 0 : index
    %84 = vector.load %arg9[%c8_32, %c0_33] : memref<80x512xf32, #tpu.memory_space<vmem>>, vector<8x512xf32>
    tpu.vector_store %arg9[%c8_32, %c0_33], %83 {strides = array<i32>} : memref<80x512xf32, #tpu.memory_space<vmem>>, vector<8x512xf32>,
    %c15_i32_34 = arith.constant 15 : i32
    %85 = tpu.dynamic_rotate %74 by %c15_i32_34 dim 1 : vector<8x512xf32>, i32 -> vector<8x512xf32>
    %86 = vector.extract_strided_slice %1 {offsets = [2, 0], sizes = [1, 512], strides = [1, 1]} : vector<9x512xf32> to vector<1x512xf32>
    %87 = vector.broadcast %86 : vector<1x512xf32> to vector<8x512xf32>
    %88 = arith.mulf %85, %87 : vector<8x512xf32>
    %c16_35 = arith.constant 16 : index
    %c0_36 = arith.constant 0 : index
    %89 = vector.load %arg9[%c16_35, %c0_36] : memref<80x512xf32, #tpu.memory_space<vmem>>, vector<8x512xf32>
    tpu.vector_store %arg9[%c16_35, %c0_36], %88 {strides = array<i32>} : memref<80x512xf32, #tpu.memory_space<vmem>>, vector<8x512xf32>,
    %c1_i32_37 = arith.constant 1 : i32
    %90 = tpu.dynamic_rotate %74 by %c1_i32_37 dim 1 : vector<8x512xf32>, i32 -> vector<8x512xf32>
    %91 = vector.extract_strided_slice %1 {offsets = [3, 0], sizes = [1, 512], strides = [1, 1]} : vector<9x512xf32> to vector<1x512xf32>
    %92 = vector.broadcast %91 : vector<1x512xf32> to vector<8x512xf32>
    %93 = arith.mulf %90, %92 : vector<8x512xf32>
    %c24_38 = arith.constant 24 : index
    %c0_39 = arith.constant 0 : index
    %94 = vector.load %arg9[%c24_38, %c0_39] : memref<80x512xf32, #tpu.memory_space<vmem>>, vector<8x512xf32>
    tpu.vector_store %arg9[%c24_38, %c0_39], %93 {strides = array<i32>} : memref<80x512xf32, #tpu.memory_space<vmem>>, vector<8x512xf32>,
    %95 = vector.extract_strided_slice %1 {offsets = [4, 0], sizes = [1, 512], strides = [1, 1]} : vector<9x512xf32> to vector<1x512xf32>
    %96 = vector.broadcast %95 : vector<1x512xf32> to vector<8x512xf32>
    %97 = arith.mulf %74, %96 : vector<8x512xf32>
    %c32_40 = arith.constant 32 : index
    %c0_41 = arith.constant 0 : index
    %98 = vector.load %arg9[%c32_40, %c0_41] : memref<80x512xf32, #tpu.memory_space<vmem>>, vector<8x512xf32>
    tpu.vector_store %arg9[%c32_40, %c0_41], %97 {strides = array<i32>} : memref<80x512xf32, #tpu.memory_space<vmem>>, vector<8x512xf32>,
    %c511_i32_42 = arith.constant 511 : i32
    %99 = tpu.dynamic_rotate %74 by %c511_i32_42 dim 1 : vector<8x512xf32>, i32 -> vector<8x512xf32>
    %100 = vector.extract_strided_slice %1 {offsets = [5, 0], sizes = [1, 512], strides = [1, 1]} : vector<9x512xf32> to vector<1x512xf32>
    %101 = vector.broadcast %100 : vector<1x512xf32> to vector<8x512xf32>
    %102 = arith.mulf %99, %101 : vector<8x512xf32>
    %c40_43 = arith.constant 40 : index
    %c0_44 = arith.constant 0 : index
    %103 = vector.load %arg9[%c40_43, %c0_44] : memref<80x512xf32, #tpu.memory_space<vmem>>, vector<8x512xf32>
    tpu.vector_store %arg9[%c40_43, %c0_44], %102 {strides = array<i32>} : memref<80x512xf32, #tpu.memory_space<vmem>>, vector<8x512xf32>,
    %c497_i32_45 = arith.constant 497 : i32
    %104 = tpu.dynamic_rotate %74 by %c497_i32_45 dim 1 : vector<8x512xf32>, i32 -> vector<8x512xf32>
    %105 = vector.extract_strided_slice %1 {offsets = [6, 0], sizes = [1, 512], strides = [1, 1]} : vector<9x512xf32> to vector<1x512xf32>
    %106 = vector.broadcast %105 : vector<1x512xf32> to vector<8x512xf32>
    %107 = arith.mulf %104, %106 : vector<8x512xf32>
    %c48_46 = arith.constant 48 : index
    %c0_47 = arith.constant 0 : index
    %108 = vector.load %arg9[%c48_46, %c0_47] : memref<80x512xf32, #tpu.memory_space<vmem>>, vector<8x512xf32>
    tpu.vector_store %arg9[%c48_46, %c0_47], %107 {strides = array<i32>} : memref<80x512xf32, #tpu.memory_space<vmem>>, vector<8x512xf32>,
    %c496_i32_48 = arith.constant 496 : i32
    %109 = tpu.dynamic_rotate %74 by %c496_i32_48 dim 1 : vector<8x512xf32>, i32 -> vector<8x512xf32>
    %110 = vector.extract_strided_slice %1 {offsets = [7, 0], sizes = [1, 512], strides = [1, 1]} : vector<9x512xf32> to vector<1x512xf32>
    %111 = vector.broadcast %110 : vector<1x512xf32> to vector<8x512xf32>
    %112 = arith.mulf %109, %111 : vector<8x512xf32>
    %c56_49 = arith.constant 56 : index
    %c0_50 = arith.constant 0 : index
    %113 = vector.load %arg9[%c56_49, %c0_50] : memref<80x512xf32, #tpu.memory_space<vmem>>, vector<8x512xf32>
    tpu.vector_store %arg9[%c56_49, %c0_50], %112 {strides = array<i32>} : memref<80x512xf32, #tpu.memory_space<vmem>>, vector<8x512xf32>,
    %c495_i32_51 = arith.constant 495 : i32
    %114 = tpu.dynamic_rotate %74 by %c495_i32_51 dim 1 : vector<8x512xf32>, i32 -> vector<8x512xf32>
    %115 = vector.extract_strided_slice %1 {offsets = [8, 0], sizes = [1, 512], strides = [1, 1]} : vector<9x512xf32> to vector<1x512xf32>
    %116 = vector.broadcast %115 : vector<1x512xf32> to vector<8x512xf32>
    %117 = arith.mulf %114, %116 : vector<8x512xf32>
    %c64_52 = arith.constant 64 : index
    %c0_53 = arith.constant 0 : index
    %118 = vector.load %arg9[%c64_52, %c0_53] : memref<80x512xf32, #tpu.memory_space<vmem>>, vector<8x512xf32>
    tpu.vector_store %arg9[%c64_52, %c0_53], %117 {strides = array<i32>} : memref<80x512xf32, #tpu.memory_space<vmem>>, vector<8x512xf32>,
    %c0_54 = arith.constant 0 : index
    %c0_55 = arith.constant 0 : index
    %119 = vector.load %arg3[%c0_54, %c0_55] : memref<16x80xf32, #tpu.memory_space<vmem>>, vector<16x80xf32>
    %c0_56 = arith.constant 0 : index
    %c0_57 = arith.constant 0 : index
    %120 = vector.load %arg9[%c0_56, %c0_57] : memref<80x512xf32, #tpu.memory_space<vmem>>, vector<80x512xf32>
    %cst_58 = arith.constant dense<0.000000e+00> : vector<16x512xf32>
    %121 = tpu.matmul %119, %120, %cst_58 {dimension_numbers = #tpu.dot_dimension_numbers<[1], [0], [0], [1], [0, 0, 1, 1], [], []>, precision = #tpu.contract_precision<fp32>} : vector<16x80xf32>, vector<80x512xf32>, vector<16x512xf32> -> vector<16x512xf32>
    %c0_59 = arith.constant 0 : index
    %c0_60 = arith.constant 0 : index
    %122 = vector.load %arg6[%c0_59, %c0_60] : memref<16x1xf32, #tpu.memory_space<vmem>>, vector<16x1xf32>
    %c0_61 = arith.constant 0 : index
    %c0_62 = arith.constant 0 : index
    %123 = vector.load %arg7[%c0_61, %c0_62] : memref<16x1xf32, #tpu.memory_space<vmem>>, vector<16x1xf32>
    %cst_63 = arith.constant dense<0.000000e+00> : vector<16xf32>
    %124 = vector.multi_reduction <add>, %121, %cst_63 [1] : vector<16x512xf32> to vector<16xf32>
    %125 = vector.shape_cast %124 : vector<16xf32> to vector<16x1xf32>
    %126 = arith.mulf %121, %121 : vector<16x512xf32>
    %cst_64 = arith.constant dense<0.000000e+00> : vector<16xf32>
    %127 = vector.multi_reduction <add>, %126, %cst_64 [1] : vector<16x512xf32> to vector<16xf32>
    %128 = vector.shape_cast %127 : vector<16xf32> to vector<16x1xf32>
    %cst_65 = arith.constant 0.001953125 : f32
    %129 = vector.broadcast %cst_65 : f32 to vector<16x1xf32>
    %130 = arith.mulf %125, %129 : vector<16x1xf32>
    %cst_66 = arith.constant 0.001953125 : f32
    %131 = vector.broadcast %cst_66 : f32 to vector<16x1xf32>
    %132 = arith.mulf %128, %131 : vector<16x1xf32>
    %133 = arith.mulf %130, %130 : vector<16x1xf32>
    %134 = arith.subf %132, %133 : vector<16x1xf32>
    %cst_67 = arith.constant 9.99999974E-6 : f32
    %135 = vector.broadcast %cst_67 : f32 to vector<16x1xf32>
    %136 = arith.addf %134, %135 : vector<16x1xf32>
    %137 = math.rsqrt %136 : vector<16x1xf32>
    %138 = arith.mulf %122, %137 : vector<16x1xf32>
    %139 = arith.mulf %130, %138 : vector<16x1xf32>
    %140 = arith.subf %123, %139 : vector<16x1xf32>
    %141 = vector.broadcast %138 : vector<16x1xf32> to vector<16x512xf32>
    %142 = arith.mulf %121, %141 : vector<16x512xf32>
    %143 = vector.broadcast %140 : vector<16x1xf32> to vector<16x512xf32>
    %144 = arith.addf %142, %143 : vector<16x512xf32>
    %145 = vector.extract_strided_slice %144 {offsets = [0, 0], sizes = [8, 512], strides = [1, 1]} : vector<16x512xf32> to vector<8x512xf32>
    %146 = vector.extract_strided_slice %144 {offsets = [8, 0], sizes = [8, 512], strides = [1, 1]} : vector<16x512xf32> to vector<8x512xf32>
    %147 = arith.addf %145, %146 : vector<8x512xf32>
    %cst_68 = arith.constant 0.000000e+00 : f32
    %148 = vector.broadcast %cst_68 : f32 to vector<8x512xf32>
    %149 = arith.maximumf %147, %148 : vector<8x512xf32>
    %c0_69 = arith.constant 0 : index
    %c0_70 = arith.constant 0 : index
    %150 = vector.load %arg8[%c0_69, %c0_70] : memref<8x512xf32, #tpu.memory_space<vmem>>, vector<8x512xf32>
    tpu.vector_store %arg8[%c0_69, %c0_70], %149 {strides = array<i32>} : memref<8x512xf32, #tpu.memory_space<vmem>>, vector<8x512xf32>,
    return
  }
}

</mosaic_0001>

<llo_original>
// kernel: _lambda_.1
$region0: #{_lambda_.1}
  #allocation0 [shape = 'u32[]', space=smem, size = 0x4, offset = 0x4, fixed_abs, tag = 'smem constant byte address 0x4 - core index']
  #allocation1 [shape = 'u32[144,128]{1,0:T(1,128)}', space=vmem, size = 0x12000, scoped, tag = 'internal scratch']
  #allocation2 [shape = 'f32[80,512]{1,0:T(8,128)}', space=vmem, size = 0x28000, scoped, tag = 'scratch operand']
  %s0 = inlined_call_operand.vmem [shape: f32[8,512], index: 0, kind: input, shape index: {}]
  %s1 = inlined_call_operand.vmem [shape: f32[9,512], index: 1, kind: input, shape index: {}]
  %s2 = inlined_call_operand.vmem [shape: f32[8,80], index: 2, kind: input, shape index: {}]
  %s3 = inlined_call_operand.vmem [shape: f32[16,80], index: 3, kind: input, shape index: {}]
  %s4 = inlined_call_operand.vmem [shape: f32[8,1], index: 4, kind: input, shape index: {}]
  %s5 = inlined_call_operand.vmem [shape: f32[8,1], index: 5, kind: input, shape index: {}]
  %s6 = inlined_call_operand.vmem [shape: f32[16,1], index: 6, kind: input, shape index: {}]
  %s7 = inlined_call_operand.vmem [shape: f32[16,1], index: 7, kind: input, shape index: {}]
  %s8 = inlined_call_operand.vmem [shape: f32[8,512], index: 8, kind: output, shape index: {}]
  %s9 = sld [smem:[#allocation0]]
  $region42: #{_lambda_.1} parent=0
    _
  %s11 = ssub.s32 1, %s9
  %s12 = scalar_select 0, %s11, %s9
  // Predicated region
  $region2: #{_lambda_.1} parent=0 // pred_check
    _
  $region3: #{_lambda_.1} parent=0 // pred_check_branch
    %14 = sbr.rel (0) target = $region5
  $region4: #{_lambda_.1} parent=0 // pred_region
    _
  $region5: #{_lambda_.1} parent=0 // pred_fallthru
    _
  // Predicated region
  $region6: #{_lambda_.1} parent=0 // pred_check
    _
  $region7: #{_lambda_.1} parent=0 // pred_check_branch
    %16 = sbr.rel (0) target = $region9
  $region8: #{_lambda_.1} parent=0 // pred_region
    _
  $region9: #{_lambda_.1} parent=0 // pred_fallthru
    _
  // Predicated region
  $region10: #{_lambda_.1} parent=0 // pred_check
    _
  $region11: #{_lambda_.1} parent=0 // pred_check_branch
    %18 = sbr.rel (0) target = $region13
  $region12: #{_lambda_.1} parent=0 // pred_region
    _
  $region13: #{_lambda_.1} parent=0 // pred_fallthru
    _
  // Predicated region
  $region14: #{_lambda_.1} parent=0 // pred_check
    _
  $region15: #{_lambda_.1} parent=0 // pred_check_branch
    %20 = sbr.rel (0) target = $region17
  $region16: #{_lambda_.1} parent=0 // pred_region
    _
  $region17: #{_lambda_.1} parent=0 // pred_fallthru
    _
  // Predicated region
  $region18: #{_lambda_.1} parent=0 // pred_check
    _
  $region19: #{_lambda_.1} parent=0 // pred_check_branch
    %22 = sbr.rel (0) target = $region21
  $region20: #{_lambda_.1} parent=0 // pred_region
    _
  $region21: #{_lambda_.1} parent=0 // pred_fallthru
    _
  // Predicated region
  $region22: #{_lambda_.1} parent=0 // pred_check
    _
  $region23: #{_lambda_.1} parent=0 // pred_check_branch
    %24 = sbr.rel (0) target = $region25
  $region24: #{_lambda_.1} parent=0 // pred_region
    _
  $region25: #{_lambda_.1} parent=0 // pred_fallthru
    _
  // Predicated region
  $region26: #{_lambda_.1} parent=0 // pred_check
    _
  $region27: #{_lambda_.1} parent=0 // pred_check_branch
    %26 = sbr.rel (0) target = $region29
  $region28: #{_lambda_.1} parent=0 // pred_region
    _
  $region29: #{_lambda_.1} parent=0 // pred_fallthru
    _
  // Predicated region
  $region30: #{_lambda_.1} parent=0 // pred_check
    _
  $region31: #{_lambda_.1} parent=0 // pred_check_branch
    %28 = sbr.rel (0) target = $region33
  $region32: #{_lambda_.1} parent=0 // pred_region
    _
  $region33: #{_lambda_.1} parent=0 // pred_fallthru
    _
  %v29 = vld [vmem:[%s0] sm:$0xff]
  %v30 = vld [vmem:[%s0 + $0x8] sm:$0xff]
  %v31 = vld [vmem:[%s0 + $0x10] sm:$0xff]
  %v32 = vld [vmem:[%s0 + $0x18] sm:$0xff]
  %v33 = vld [vmem:[%s1] sm:$0xff]
  %v34 = vld [vmem:[%s1 + $0x8] sm:$0xff]
  %v35 = vld [vmem:[%s1 + $0x10] sm:$0xff]
  %v36 = vld [vmem:[%s1 + $0x18] sm:$0xff]
  %v37 = vld [vmem:[%s1 + $0x20] sm:$0x1]
  %v38 = vld [vmem:[%s1 + $0x28] sm:$0x1]
  %v39 = vld [vmem:[%s1 + $0x30] sm:$0x1]
  %v40 = vld [vmem:[%s1 + $0x38] sm:$0x1]
  %41 = vst [vmem:[#allocation2 + $0x120] sm:$0xff] %v29
  %42 = vst [vmem:[#allocation2 + $0x128] sm:$0xff] %v30
  %43 = vst [vmem:[#allocation2 + $0x130] sm:$0xff] %v31
  %44 = vst [vmem:[#allocation2 + $0x138] sm:$0xff] %v32
  %45 = vrot.lane.b32.xlu0 %v29, 17
  %v46 = vpop.permute.xlu0 %45
  %47 = vrot.lane.b32.xlu0 %v30, 17
  %v48 = vpop.permute.xlu0 %47
  %49 = vrot.lane.b32.xlu0 %v31, 17
  %v50 = vpop.permute.xlu0 %49
  %51 = vrot.lane.b32.xlu0 %v32, 17
  %v52 = vpop.permute.xlu0 %51
  %v53 = vlaneseq
  %v54 = vand.u32 %v53, 127
  %vm55 = vcmp.lt.s32.totalorder %v54, 17
  %v56 = vsel %vm55, %v50, %v52
  %v57 = vsel %vm55, %v48, %v50
  %v58 = vsel %vm55, %v46, %v48
  %v59 = vsel %vm55, %v52, %v46
  %v60 = vlaneseq
  %v61 = vshrl.u32 %v60, 7
  %v62 = vsub.s32 0, %v61
  %v63 = vrot.slane %v33, %v62
  %v64 = vlaneseq
  %v65 = vshrl.u32 %v64, 7
  %v66 = vsub.s32 0, %v65
  %v67 = vrot.slane %v34, %v66
  %v68 = vlaneseq
  %v69 = vshrl.u32 %v68, 7
  %v70 = vsub.s32 0, %v69
  %v71 = vrot.slane %v35, %v70
  %v72 = vlaneseq
  %v73 = vshrl.u32 %v72, 7
  %v74 = vsub.s32 0, %v73
  %v75 = vrot.slane %v36, %v74
  %v76 = vmul.f32 %v59, %v63
  %v77 = vmul.f32 %v58, %v67
  %v78 = vmul.f32 %v57, %v71
  %v79 = vmul.f32 %v56, %v75
  %80 = vst [vmem:[#allocation2] sm:$0xff] %v76
  %81 = vst [vmem:[#allocation2 + $0x8] sm:$0xff] %v77
  %82 = vst [vmem:[#allocation2 + $0x10] sm:$0xff] %v78
  %83 = vst [vmem:[#allocation2 + $0x18] sm:$0xff] %v79
  %84 = vrot.lane.b32.xlu0 %v29, 16
  %v85 = vpop.permute.xlu0 %84
  %86 = vrot.lane.b32.xlu0 %v30, 16
  %v87 = vpop.permute.xlu0 %86
  %88 = vrot.lane.b32.xlu0 %v31, 16
  %v89 = vpop.permute.xlu0 %88
  %90 = vrot.lane.b32.xlu0 %v32, 16
  %v91 = vpop.permute.xlu0 %90
  %vm92 = vcmp.lt.s32.totalorder %v54, 16
  %v93 = vsel %vm92, %v89, %v91
  %v94 = vsel %vm92, %v87, %v89
  %v95 = vsel %vm92, %v85, %v87
  %v96 = vsel %vm92, %v91, %v85
  %v97 = vlaneseq
  %v98 = vshrl.u32 %v97, 7
  %v99 = vsub.s32 1, %v98
  %v100 = vrot.slane %v33, %v99
  %v101 = vlaneseq
  %v102 = vshrl.u32 %v101, 7
  %v103 = vsub.s32 1, %v102
  %v104 = vrot.slane %v34, %v103
  %v105 = vlaneseq
  %v106 = vshrl.u32 %v105, 7
  %v107 = vsub.s32 1, %v106
  %v108 = vrot.slane %v35, %v107
  %v109 = vlaneseq
  %v110 = vshrl.u32 %v109, 7
  %v111 = vsub.s32 1, %v110
  %v112 = vrot.slane %v36, %v111
  %v113 = vmul.f32 %v96, %v100
  %v114 = vmul.f32 %v95, %v104
  %v115 = vmul.f32 %v94, %v108
  %v116 = vmul.f32 %v93, %v112
  %117 = vst [vmem:[#allocation2 + $0x20] sm:$0xff] %v113
  %118 = vst [vmem:[#allocation2 + $0x28] sm:$0xff] %v114
  %119 = vst [vmem:[#allocation2 + $0x30] sm:$0xff] %v115
  %120 = vst [vmem:[#allocation2 + $0x38] sm:$0xff] %v116
  %121 = vrot.lane.b32.xlu0 %v29, 15
  %v122 = vpop.permute.xlu0 %121
  %123 = vrot.lane.b32.xlu0 %v30, 15
  %v124 = vpop.permute.xlu0 %123
  %125 = vrot.lane.b32.xlu0 %v31, 15
  %v126 = vpop.permute.xlu0 %125
  %127 = vrot.lane.b32.xlu0 %v32, 15
  %v128 = vpop.permute.xlu0 %127
  %vm129 = vcmp.lt.s32.totalorder %v54, 15
  %v130 = vsel %vm129, %v126, %v128
  %v131 = vsel %vm129, %v124, %v126
  %v132 = vsel %vm129, %v122, %v124
  %v133 = vsel %vm129, %v128, %v122
  %v134 = vlaneseq
  %v135 = vshrl.u32 %v134, 7
  %v136 = vsub.s32 2, %v135
  %v137 = vrot.slane %v33, %v136
  %v138 = vlaneseq
  %v139 = vshrl.u32 %v138, 7
  %v140 = vsub.s32 2, %v139
  %v141 = vrot.slane %v34, %v140
  %v142 = vlaneseq
  %v143 = vshrl.u32 %v142, 7
  %v144 = vsub.s32 2, %v143
  %v145 = vrot.slane %v35, %v144
  %v146 = vlaneseq
  %v147 = vshrl.u32 %v146, 7
  %v148 = vsub.s32 2, %v147
  %v149 = vrot.slane %v36, %v148
  %v150 = vmul.f32 %v133, %v137
  %v151 = vmul.f32 %v132, %v141
  %v152 = vmul.f32 %v131, %v145
  %v153 = vmul.f32 %v130, %v149
  %154 = vst [vmem:[#allocation2 + $0x40] sm:$0xff] %v150
  %155 = vst [vmem:[#allocation2 + $0x48] sm:$0xff] %v151
  %156 = vst [vmem:[#allocation2 + $0x50] sm:$0xff] %v152
  %157 = vst [vmem:[#allocation2 + $0x58] sm:$0xff] %v153
  %158 = vrot.lane.b32.xlu0 %v29, 1
  %v159 = vpop.permute.xlu0 %158
  %160 = vrot.lane.b32.xlu0 %v30, 1
  %v161 = vpop.permute.xlu0 %160
  %162 = vrot.lane.b32.xlu0 %v31, 1
  %v163 = vpop.permute.xlu0 %162
  %164 = vrot.lane.b32.xlu0 %v32, 1
  %v165 = vpop.permute.xlu0 %164
  %vm166 = vcmp.lt.s32.totalorder %v54, 1
  %v167 = vsel %vm166, %v163, %v165
  %v168 = vsel %vm166, %v161, %v163
  %v169 = vsel %vm166, %v159, %v161
  %v170 = vsel %vm166, %v165, %v159
  %v171 = vlaneseq
  %v172 = vshrl.u32 %v171, 7
  %v173 = vsub.s32 3, %v172
  %v174 = vrot.slane %v33, %v173
  %v175 = vlaneseq
  %v176 = vshrl.u32 %v175, 7
  %v177 = vsub.s32 3, %v176
  %v178 = vrot.slane %v34, %v177
  %v179 = vlaneseq
  %v180 = vshrl.u32 %v179, 7
  %v181 = vsub.s32 3, %v180
  %v182 = vrot.slane %v35, %v181
  %v183 = vlaneseq
  %v184 = vshrl.u32 %v183, 7
  %v185 = vsub.s32 3, %v184
  %v186 = vrot.slane %v36, %v185
  %v187 = vmul.f32 %v170, %v174
  %v188 = vmul.f32 %v169, %v178
  %v189 = vmul.f32 %v168, %v182
  %v190 = vmul.f32 %v167, %v186
  %191 = vst [vmem:[#allocation2 + $0x60] sm:$0xff] %v187
  %192 = vst [vmem:[#allocation2 + $0x68] sm:$0xff] %v188
  %193 = vst [vmem:[#allocation2 + $0x70] sm:$0xff] %v189
  %194 = vst [vmem:[#allocation2 + $0x78] sm:$0xff] %v190
  %v195 = vlaneseq
  %v196 = vshrl.u32 %v195, 7
  %v197 = vsub.s32 4, %v196
  %v198 = vrot.slane %v33, %v197
  %v199 = vlaneseq
  %v200 = vshrl.u32 %v199, 7
  %v201 = vsub.s32 4, %v200
  %v202 = vrot.slane %v34, %v201
  %v203 = vlaneseq
  %v204 = vshrl.u32 %v203, 7
  %v205 = vsub.s32 4, %v204
  %v206 = vrot.slane %v35, %v205
  %v207 = vlaneseq
  %v208 = vshrl.u32 %v207, 7
  %v209 = vsub.s32 4, %v208
  %v210 = vrot.slane %v36, %v209
  %v211 = vmul.f32 %v29, %v198
  %v212 = vmul.f32 %v30, %v202
  %v213 = vmul.f32 %v31, %v206
  %v214 = vmul.f32 %v32, %v210
  %215 = vst [vmem:[#allocation2 + $0x80] sm:$0xff] %v211
  %216 = vst [vmem:[#allocation2 + $0x88] sm:$0xff] %v212
  %217 = vst [vmem:[#allocation2 + $0x90] sm:$0xff] %v213
  %218 = vst [vmem:[#allocation2 + $0x98] sm:$0xff] %v214
  %219 = vrot.lane.b32.xlu0 %v29, 127
  %v220 = vpop.permute.xlu0 %219
  %221 = vrot.lane.b32.xlu0 %v30, 127
  %v222 = vpop.permute.xlu0 %221
  %223 = vrot.lane.b32.xlu0 %v31, 127
  %v224 = vpop.permute.xlu0 %223
  %225 = vrot.lane.b32.xlu0 %v32, 127
  %v226 = vpop.permute.xlu0 %225
  %vm227 = vcmp.lt.s32.totalorder %v54, 127
  %v228 = vsel %vm227, %v224, %v226
  %v229 = vsel %vm227, %v222, %v224
  %v230 = vsel %vm227, %v220, %v222
  %v231 = vsel %vm227, %v226, %v220
  %v232 = vlaneseq
  %v233 = vshrl.u32 %v232, 7
  %v234 = vsub.s32 5, %v233
  %v235 = vrot.slane %v33, %v234
  %v236 = vlaneseq
  %v237 = vshrl.u32 %v236, 7
  %v238 = vsub.s32 5, %v237
  %v239 = vrot.slane %v34, %v238
  %v240 = vlaneseq
  %v241 = vshrl.u32 %v240, 7
  %v242 = vsub.s32 5, %v241
  %v243 = vrot.slane %v35, %v242
  %v244 = vlaneseq
  %v245 = vshrl.u32 %v244, 7
  %v246 = vsub.s32 5, %v245
  %v247 = vrot.slane %v36, %v246
  %v248 = vmul.f32 %v230, %v235
  %v249 = vmul.f32 %v229, %v239
  %v250 = vmul.f32 %v228, %v243
  %v251 = vmul.f32 %v231, %v247
  %252 = vst [vmem:[#allocation2 + $0xa0] sm:$0xff] %v248
  %253 = vst [vmem:[#allocation2 + $0xa8] sm:$0xff] %v249
  %254 = vst [vmem:[#allocation2 + $0xb0] sm:$0xff] %v250
  %255 = vst [vmem:[#allocation2 + $0xb8] sm:$0xff] %v251
  %256 = vrot.lane.b32.xlu0 %v29, 113
  %v257 = vpop.permute.xlu0 %256
  %258 = vrot.lane.b32.xlu0 %v30, 113
  %v259 = vpop.permute.xlu0 %258
  %260 = vrot.lane.b32.xlu0 %v31, 113
  %v261 = vpop.permute.xlu0 %260
  %262 = vrot.lane.b32.xlu0 %v32, 113
  %v263 = vpop.permute.xlu0 %262
  %vm264 = vcmp.lt.s32.totalorder %v54, 113
  %v265 = vsel %vm264, %v261, %v263
  %v266 = vsel %vm264, %v259, %v261
  %v267 = vsel %vm264, %v257, %v259
  %v268 = vsel %vm264, %v263, %v257
  %v269 = vlaneseq
  %v270 = vshrl.u32 %v269, 7
  %v271 = vsub.s32 6, %v270
  %v272 = vrot.slane %v33, %v271
  %v273 = vlaneseq
  %v274 = vshrl.u32 %v273, 7
  %v275 = vsub.s32 6, %v274
  %v276 = vrot.slane %v34, %v275
  %v277 = vlaneseq
  %v278 = vshrl.u32 %v277, 7
  %v279 = vsub.s32 6, %v278
  %v280 = vrot.slane %v35, %v279
  %v281 = vlaneseq
  %v282 = vshrl.u32 %v281, 7
  %v283 = vsub.s32 6, %v282
  %v284 = vrot.slane %v36, %v283
  %v285 = vmul.f32 %v267, %v272
  %v286 = vmul.f32 %v266, %v276
  %v287 = vmul.f32 %v265, %v280
  %v288 = vmul.f32 %v268, %v284
  %289 = vst [vmem:[#allocation2 + $0xc0] sm:$0xff] %v285
  %290 = vst [vmem:[#allocation2 + $0xc8] sm:$0xff] %v286
  %291 = vst [vmem:[#allocation2 + $0xd0] sm:$0xff] %v287
  %292 = vst [vmem:[#allocation2 + $0xd8] sm:$0xff] %v288
  %293 = vrot.lane.b32.xlu0 %v29, 112
  %v294 = vpop.permute.xlu0 %293
  %295 = vrot.lane.b32.xlu0 %v30, 112
  %v296 = vpop.permute.xlu0 %295
  %297 = vrot.lane.b32.xlu0 %v31, 112
  %v298 = vpop.permute.xlu0 %297
  %299 = vrot.lane.b32.xlu0 %v32, 112
  %v300 = vpop.permute.xlu0 %299
  %vm301 = vcmp.lt.s32.totalorder %v54, 112
  %v302 = vsel %vm301, %v298, %v300
  %v303 = vsel %vm301, %v296, %v298
  %v304 = vsel %vm301, %v294, %v296
  %v305 = vsel %vm301, %v300, %v294
  %v306 = vlaneseq
  %v307 = vshrl.u32 %v306, 7
  %v308 = vsub.s32 7, %v307
  %v309 = vrot.slane %v33, %v308
  %v310 = vlaneseq
  %v311 = vshrl.u32 %v310, 7
  %v312 = vsub.s32 7, %v311
  %v313 = vrot.slane %v34, %v312
  %v314 = vlaneseq
  %v315 = vshrl.u32 %v314, 7
  %v316 = vsub.s32 7, %v315
  %v317 = vrot.slane %v35, %v316
  %v318 = vlaneseq
  %v319 = vshrl.u32 %v318, 7
  %v320 = vsub.s32 7, %v319
  %v321 = vrot.slane %v36, %v320
  %v322 = vmul.f32 %v304, %v309
  %v323 = vmul.f32 %v303, %v313
  %v324 = vmul.f32 %v302, %v317
  %v325 = vmul.f32 %v305, %v321
  %326 = vst [vmem:[#allocation2 + $0xe0] sm:$0xff] %v322
  %327 = vst [vmem:[#allocation2 + $0xe8] sm:$0xff] %v323
  %328 = vst [vmem:[#allocation2 + $0xf0] sm:$0xff] %v324
  %329 = vst [vmem:[#allocation2 + $0xf8] sm:$0xff] %v325
  %330 = vrot.lane.b32.xlu0 %v29, 111
  %v331 = vpop.permute.xlu0 %330
  %332 = vrot.lane.b32.xlu0 %v30, 111
  %v333 = vpop.permute.xlu0 %332
  %334 = vrot.lane.b32.xlu0 %v31, 111
  %v335 = vpop.permute.xlu0 %334
  %336 = vrot.lane.b32.xlu0 %v32, 111
  %v337 = vpop.permute.xlu0 %336
  %vm338 = vcmp.lt.s32.totalorder %v54, 111
  %v339 = vsel %vm338, %v335, %v337
  %v340 = vsel %vm338, %v333, %v335
  %v341 = vsel %vm338, %v331, %v333
  %v342 = vsel %vm338, %v337, %v331
  %v343 = vlaneseq
  %v344 = vshrl.u32 %v343, 7
  %v345 = vsub.s32 0, %v344
  %v346 = vrot.slane %v37, %v345
  %v347 = vlaneseq
  %v348 = vshrl.u32 %v347, 7
  %v349 = vsub.s32 0, %v348
  %v350 = vrot.slane %v38, %v349
  %v351 = vlaneseq
  %v352 = vshrl.u32 %v351, 7
  %v353 = vsub.s32 0, %v352
  %v354 = vrot.slane %v39, %v353
  %v355 = vlaneseq
  %v356 = vshrl.u32 %v355, 7
  %v357 = vsub.s32 0, %v356
  %v358 = vrot.slane %v40, %v357
  %v359 = vmul.f32 %v341, %v346
  %v360 = vmul.f32 %v340, %v350
  %v361 = vmul.f32 %v339, %v354
  %v362 = vmul.f32 %v342, %v358
  %363 = vst [vmem:[#allocation2 + $0x100] sm:$0xff] %v359
  %364 = vst [vmem:[#allocation2 + $0x108] sm:$0xff] %v360
  %365 = vst [vmem:[#allocation2 + $0x110] sm:$0xff] %v361
  %366 = vst [vmem:[#allocation2 + $0x118] sm:$0xff] %v362
  %v367 = vld [vmem:[%s2] sm:$0xff]
  %v368 = vld [vmem:[#allocation2] sm:$0xff]
  %v369 = vld [vmem:[#allocation2 + $0x8] sm:$0xff]
  %v370 = vld [vmem:[#allocation2 + $0x10] sm:$0xff]
  %v371 = vld [vmem:[#allocation2 + $0x18] sm:$0xff]
  %v372 = vld [vmem:[#allocation2 + $0x20] sm:$0xff]
  %v373 = vld [vmem:[#allocation2 + $0x28] sm:$0xff]
  %v374 = vld [vmem:[#allocation2 + $0x30] sm:$0xff]
  %v375 = vld [vmem:[#allocation2 + $0x38] sm:$0xff]
  %v376 = vld [vmem:[#allocation2 + $0x40] sm:$0xff]
  %v377 = vld [vmem:[#allocation2 + $0x48] sm:$0xff]
  %v378 = vld [vmem:[#allocation2 + $0x50] sm:$0xff]
  %v379 = vld [vmem:[#allocation2 + $0x58] sm:$0xff]
  %v380 = vld [vmem:[#allocation2 + $0x60] sm:$0xff]
  %v381 = vld [vmem:[#allocation2 + $0x68] sm:$0xff]
  %v382 = vld [vmem:[#allocation2 + $0x70] sm:$0xff]
  %v383 = vld [vmem:[#allocation2 + $0x78] sm:$0xff]
  %v384 = vld [vmem:[#allocation2 + $0x80] sm:$0xff]
  %v385 = vld [vmem:[#allocation2 + $0x88] sm:$0xff]
  %v386 = vld [vmem:[#allocation2 + $0x90] sm:$0xff]
  %v387 = vld [vmem:[#allocation2 + $0x98] sm:$0xff]
  %v388 = vld [vmem:[#allocation2 + $0xa0] sm:$0xff]
  %v389 = vld [vmem:[#allocation2 + $0xa8] sm:$0xff]
  %v390 = vld [vmem:[#allocation2 + $0xb0] sm:$0xff]
  %v391 = vld [vmem:[#allocation2 + $0xb8] sm:$0xff]
  %v392 = vld [vmem:[#allocation2 + $0xc0] sm:$0xff]
  %v393 = vld [vmem:[#allocation2 + $0xc8] sm:$0xff]
  %v394 = vld [vmem:[#allocation2 + $0xd0] sm:$0xff]
  %v395 = vld [vmem:[#allocation2 + $0xd8] sm:$0xff]
  %v396 = vld [vmem:[#allocation2 + $0xe0] sm:$0xff]
  %v397 = vld [vmem:[#allocation2 + $0xe8] sm:$0xff]
  %v398 = vld [vmem:[#allocation2 + $0xf0] sm:$0xff]
  %v399 = vld [vmem:[#allocation2 + $0xf8] sm:$0xff]
  %v400 = vld [vmem:[#allocation2 + $0x100] sm:$0xff]
  %v401 = vld [vmem:[#allocation2 + $0x108] sm:$0xff]
  %v402 = vld [vmem:[#allocation2 + $0x110] sm:$0xff]
  %v403 = vld [vmem:[#allocation2 + $0x118] sm:$0xff]
  %v404 = vld [vmem:[#allocation2 + $0x120] sm:$0xff]
  %v405 = vld [vmem:[#allocation2 + $0x128] sm:$0xff]
  %v406 = vld [vmem:[#allocation2 + $0x130] sm:$0xff]
  %v407 = vld [vmem:[#allocation2 + $0x138] sm:$0xff]
  %vm408 = vcmask 654336
  %v410 = vsel %vm408, %v367, 0
  %412 = vmatprep.subr.mxu0 0.0
  %413 = vmatpush1.msra.mxu0 0.0
  %414 = vmatprep.subr.mxu0 0.0
  %415 = vmatpush1.msra.mxu0 0.0
  %416 = vmatprep.subr.mxu0 0.0
  %417 = vmatpush1.msra.mxu0 0.0
  %418 = vmatprep.subr.mxu0 0.0
  %419 = vmatpush1.msra.mxu0 0.0
  %420 = vmatprep.subr.mxu0 0.0
  %421 = vmatpush1.msra.mxu0 0.0
  %422 = vmatprep.subr.mxu0 0.0
  %423 = vmatpush1.msra.mxu0 0.0
  %v424 = vand.u32 %v405, 4294901760
  %425 = vmatprep.subr.mxu0 %v424
  %v426 = vand.u32 %v404, 4294901760
  %427 = vmatpush1.msra.mxu0 %v426
  %v428 = vand.u32 %v401, 4294901760
  %429 = vmatprep.subr.mxu0 %v428
  %v430 = vand.u32 %v400, 4294901760
  %431 = vmatpush1.msra.mxu0 %v430
  %v432 = vand.u32 %v397, 4294901760
  %433 = vmatprep.subr.mxu0 %v432
  %v434 = vand.u32 %v396, 4294901760
  %435 = vmatpush1.msra.mxu0 %v434
  %v436 = vand.u32 %v393, 4294901760
  %437 = vmatprep.subr.mxu0 %v436
  %v438 = vand.u32 %v392, 4294901760
  %439 = vmatpush1.msra.mxu0 %v438
  %v440 = vand.u32 %v389, 4294901760
  %441 = vmatprep.subr.mxu0 %v440
  %v442 = vand.u32 %v388, 4294901760
  %443 = vmatpush1.msra.mxu0 %v442
  %v444 = vand.u32 %v385, 4294901760
  %445 = vmatprep.subr.mxu0 %v444
  %v446 = vand.u32 %v384, 4294901760
  %447 = vmatpush1.msra.mxu0 %v446
  %v448 = vand.u32 %v381, 4294901760
  %449 = vmatprep.subr.mxu0 %v448
  %v450 = vand.u32 %v380, 4294901760
  %451 = vmatpush1.msra.mxu0 %v450
  %v452 = vand.u32 %v377, 4294901760
  %453 = vmatprep.subr.mxu0 %v452
  %v454 = vand.u32 %v376, 4294901760
  %455 = vmatpush1.msra.mxu0 %v454
  %v456 = vand.u32 %v373, 4294901760
  %457 = vmatprep.subr.mxu0 %v456
  %v458 = vand.u32 %v372, 4294901760
  %459 = vmatpush1.msra.mxu0 %v458
  %v460 = vand.u32 %v369, 4294901760
  %461 = vmatprep.subr.mxu0 %v460
  %v462 = vand.u32 %v368, 4294901760
  %463 = vmatpush1.msra.mxu0 %v462
  %464 = vmatprep.subr.mxu0 0.0
  %465 = vmatpush2.msra.mxu0 0.0
  %466 = vmatprep.subr.mxu0 0.0
  %467 = vmatpush2.msra.mxu0 0.0
  %468 = vmatprep.subr.mxu0 0.0
  %469 = vmatpush2.msra.mxu0 0.0
  %470 = vmatprep.subr.mxu0 0.0
  %471 = vmatpush2.msra.mxu0 0.0
  %472 = vmatprep.subr.mxu0 0.0
  %473 = vmatpush2.msra.mxu0 0.0
  %474 = vmatprep.subr.mxu0 0.0
  %475 = vmatpush2.msra.mxu0 0.0
  %476 = vmatprep.subr.mxu0 0.0
  %477 = vmatpush2.msra.mxu0 0.0
  %478 = vmatprep.subr.mxu0 0.0
  %479 = vmatpush2.msra.mxu0 0.0
  %480 = vmatprep.subr.mxu0 0.0
  %481 = vmatpush2.msra.mxu0 0.0
  %482 = vmatprep.subr.mxu0 0.0
  %483 = vmatpush2.msra.mxu0 0.0
  %484 = vmatprep.subr.mxu0 0.0
  %485 = vmatpush2.msra.mxu0 0.0
  %486 = vmatprep.subr.mxu0 0.0
  %487 = vmatpush2.msra.mxu0 0.0
  %488 = vmatprep.subr.mxu0 0.0
  %489 = vmatpush2.msra.mxu0 0.0
  %490 = vmatprep.subr.mxu0 0.0
  %491 = vmatpush2.msra.mxu0 0.0
  %492 = vmatprep.subr.mxu0 0.0
  %493 = vmatpush2.msra.mxu0 0.0
  %494 = vmatprep.subr.mxu0 0.0
  %495 = vmatpush2.msra.mxu0 0.0
  %496 = vmatprep.mubr.f32.mxu0 0.0
  %v497 = vand.u32 %v410, 4294901760
  %v498 = vsub.f32 %v410, %v497
  %v499 = vand.u32 %v498, 4294901760
  %v500 = vsub.f32 %v498, %v499
  %v501 = vand.u32 %v500, 4294901760
  %502 = vmatmul.mubr.f32.gmra.mxu0 %v501
  %v503 = vpop.f32.mrf.mxu0
  %v504 = vadd.f32 0.0, %v503
  %v505 = vpop.f32.mrf.mxu0
  %v506 = vadd.f32 0.0, %v505
  %507 = vdwg.mxu0
  %508 = vmatprep.subr.mxu0 0.0
  %509 = vmatpush1.msra.mxu0 0.0
  %510 = vmatprep.subr.mxu0 0.0
  %511 = vmatpush1.msra.mxu0 0.0
  %512 = vmatprep.subr.mxu0 0.0
  %513 = vmatpush1.msra.mxu0 0.0
  %514 = vmatprep.subr.mxu0 0.0
  %515 = vmatpush1.msra.mxu0 0.0
  %516 = vmatprep.subr.mxu0 0.0
  %517 = vmatpush1.msra.mxu0 0.0
  %518 = vmatprep.subr.mxu0 0.0
  %519 = vmatpush1.msra.mxu0 0.0
  %v520 = vand.u32 %v405, 4294901760
  %v521 = vsub.f32 %v405, %v520
  %v522 = vand.u32 %v521, 4294901760
  %v523 = vsub.f32 %v521, %v522
  %v524 = vand.u32 %v523, 4294901760
  %525 = vmatprep.subr.mxu0 %v524
  %v526 = vand.u32 %v404, 4294901760
  %v527 = vsub.f32 %v404, %v526
  %v528 = vand.u32 %v527, 4294901760
  %v529 = vsub.f32 %v527, %v528
  %v530 = vand.u32 %v529, 4294901760
  %531 = vmatpush1.msra.mxu0 %v530
  %v532 = vand.u32 %v401, 4294901760
  %v533 = vsub.f32 %v401, %v532
  %v534 = vand.u32 %v533, 4294901760
  %v535 = vsub.f32 %v533, %v534
  %v536 = vand.u32 %v535, 4294901760
  %537 = vmatprep.subr.mxu0 %v536
  %v538 = vand.u32 %v400, 4294901760
  %v539 = vsub.f32 %v400, %v538
  %v540 = vand.u32 %v539, 4294901760
  %v541 = vsub.f32 %v539, %v540
  %v542 = vand.u32 %v541, 4294901760
  %543 = vmatpush1.msra.mxu0 %v542
  %v544 = vand.u32 %v397, 4294901760
  %v545 = vsub.f32 %v397, %v544
  %v546 = vand.u32 %v545, 4294901760
  %v547 = vsub.f32 %v545, %v546
  %v548 = vand.u32 %v547, 4294901760
  %549 = vmatprep.subr.mxu0 %v548
  %v550 = vand.u32 %v396, 4294901760
  %v551 = vsub.f32 %v396, %v550
  %v552 = vand.u32 %v551, 4294901760
  %v553 = vsub.f32 %v551, %v552
  %v554 = vand.u32 %v553, 4294901760
  %555 = vmatpush1.msra.mxu0 %v554
  %v556 = vand.u32 %v393, 4294901760
  %v557 = vsub.f32 %v393, %v556
  %v558 = vand.u32 %v557, 4294901760
  %v559 = vsub.f32 %v557, %v558
  %v560 = vand.u32 %v559, 4294901760
  %561 = vmatprep.subr.mxu0 %v560
  %v562 = vand.u32 %v392, 4294901760
  %v563 = vsub.f32 %v392, %v562
  %v564 = vand.u32 %v563, 4294901760
  %v565 = vsub.f32 %v563, %v564
  %v566 = vand.u32 %v565, 4294901760
  %567 = vmatpush1.msra.mxu0 %v566
  %v568 = vand.u32 %v389, 4294901760
  %v569 = vsub.f32 %v389, %v568
  %v570 = vand.u32 %v569, 4294901760
  %v571 = vsub.f32 %v569, %v570
  %v572 = vand.u32 %v571, 4294901760
  %573 = vmatprep.subr.mxu0 %v572
  %v574 = vand.u32 %v388, 4294901760
  %v575 = vsub.f32 %v388, %v574
  %v576 = vand.u32 %v575, 4294901760
  %v577 = vsub.f32 %v575, %v576
  %v578 = vand.u32 %v577, 4294901760
  %579 = vmatpush1.msra.mxu0 %v578
  %v580 = vand.u32 %v385, 4294901760
  %v581 = vsub.f32 %v385, %v580
  %v582 = vand.u32 %v581, 4294901760
  %v583 = vsub.f32 %v581, %v582
  %v584 = vand.u32 %v583, 4294901760
  %585 = vmatprep.subr.mxu0 %v584
  %v586 = vand.u32 %v384, 4294901760
  %v587 = vsub.f32 %v384, %v586
  %v588 = vand.u32 %v587, 4294901760
  %v589 = vsub.f32 %v587, %v588
  %v590 = vand.u32 %v589, 4294901760
  %591 = vmatpush1.msra.mxu0 %v590
  %v592 = vand.u32 %v381, 4294901760
  %v593 = vsub.f32 %v381, %v592
  %v594 = vand.u32 %v593, 4294901760
  %v595 = vsub.f32 %v593, %v594
  %v596 = vand.u32 %v595, 4294901760
  %597 = vmatprep.subr.mxu0 %v596
  %v598 = vand.u32 %v380, 4294901760
  %v599 = vsub.f32 %v380, %v598
  %v600 = vand.u32 %v599, 4294901760
  %v601 = vsub.f32 %v599, %v600
  %v602 = vand.u32 %v601, 4294901760
  %603 = vmatpush1.msra.mxu0 %v602
  %v604 = vand.u32 %v377, 4294901760
  %v605 = vsub.f32 %v377, %v604
  %v606 = vand.u32 %v605, 4294901760
  %v607 = vsub.f32 %v605, %v606
  %v608 = vand.u32 %v607, 4294901760
  %609 = vmatprep.subr.mxu0 %v608
  %v610 = vand.u32 %v376, 4294901760
  %v611 = vsub.f32 %v376, %v610
  %v612 = vand.u32 %v611, 4294901760
  %v613 = vsub.f32 %v611, %v612
  %v614 = vand.u32 %v613, 4294901760
  %615 = vmatpush1.msra.mxu0 %v614
  %v616 = vand.u32 %v373, 4294901760
  %v617 = vsub.f32 %v373, %v616
  %v618 = vand.u32 %v617, 4294901760
  %v619 = vsub.f32 %v617, %v618
  %v620 = vand.u32 %v619, 4294901760
  %621 = vmatprep.subr.mxu0 %v620
  %v622 = vand.u32 %v372, 4294901760
  %v623 = vsub.f32 %v372, %v622
  %v624 = vand.u32 %v623, 4294901760
  %v625 = vsub.f32 %v623, %v624
  %v626 = vand.u32 %v625, 4294901760
  %627 = vmatpush1.msra.mxu0 %v626
  %v628 = vand.u32 %v369, 4294901760
  %v629 = vsub.f32 %v369, %v628
  %v630 = vand.u32 %v629, 4294901760
  %v631 = vsub.f32 %v629, %v630
  %v632 = vand.u32 %v631, 4294901760
  %633 = vmatprep.subr.mxu0 %v632
  %v634 = vand.u32 %v368, 4294901760
  %v635 = vsub.f32 %v368, %v634
  %v636 = vand.u32 %v635, 4294901760
  %v637 = vsub.f32 %v635, %v636
  %v638 = vand.u32 %v637, 4294901760
  %639 = vmatpush1.msra.mxu0 %v638
  %640 = vmatprep.subr.mxu0 0.0
  %641 = vmatpush2.msra.mxu0 0.0
  %642 = vmatprep.subr.mxu0 0.0
  %643 = vmatpush2.msra.mxu0 0.0
  %644 = vmatprep.subr.mxu0 0.0
  %645 = vmatpush2.msra.mxu0 0.0
  %646 = vmatprep.subr.mxu0 0.0
  %647 = vmatpush2.msra.mxu0 0.0
  %648 = vmatprep.subr.mxu0 0.0
  %649 = vmatpush2.msra.mxu0 0.0
  %650 = vmatprep.subr.mxu0 0.0
  %651 = vmatpush2.msra.mxu0 0.0
  %652 = vmatprep.subr.mxu0 0.0
  %653 = vmatpush2.msra.mxu0 0.0
  %654 = vmatprep.subr.mxu0 0.0
  %655 = vmatpush2.msra.mxu0 0.0
  %656 = vmatprep.subr.mxu0 0.0
  %657 = vmatpush2.msra.mxu0 0.0
  %658 = vmatprep.subr.mxu0 0.0
  %659 = vmatpush2.msra.mxu0 0.0
  %660 = vmatprep.subr.mxu0 0.0
  %661 = vmatpush2.msra.mxu0 0.0
  %662 = vmatprep.subr.mxu0 0.0
  %663 = vmatpush2.msra.mxu0 0.0
  %664 = vmatprep.subr.mxu0 0.0
  %665 = vmatpush2.msra.mxu0 0.0
  %666 = vmatprep.subr.mxu0 0.0
  %667 = vmatpush2.msra.mxu0 0.0
  %668 = vmatprep.subr.mxu0 0.0
  %669 = vmatpush2.msra.mxu0 0.0
  %670 = vmatprep.subr.mxu0 0.0
  %671 = vmatpush2.msra.mxu0 0.0
  %672 = vmatprep.mubr.f32.mxu0 0.0
  %v673 = vand.u32 %v410, 4294901760
  %674 = vmatmul.mubr.f32.gmra.mxu0 %v673
  %v675 = vpop.f32.mrf.mxu0
  %v676 = vadd.f32 %v504, %v675
  %v677 = vpop.f32.mrf.mxu0
  %v678 = vadd.f32 %v506, %v677
  %679 = vdwg.mxu0
  %680 = vmatprep.subr.mxu0 0.0
  %681 = vmatpush1.msra.mxu0 0.0
  %682 = vmatprep.subr.mxu0 0.0
  %683 = vmatpush1.msra.mxu0 0.0
  %684 = vmatprep.subr.mxu0 0.0
  %685 = vmatpush1.msra.mxu0 0.0
  %686 = vmatprep.subr.mxu0 0.0
  %687 = vmatpush1.msra.mxu0 0.0
  %688 = vmatprep.subr.mxu0 0.0
  %689 = vmatpush1.msra.mxu0 0.0
  %690 = vmatprep.subr.mxu0 0.0
  %691 = vmatpush1.msra.mxu0 0.0
  %v692 = vand.u32 %v405, 4294901760
  %v693 = vsub.f32 %v405, %v692
  %694 = vmatprep.subr.mxu0 %v693
  %v695 = vand.u32 %v404, 4294901760
  %v696 = vsub.f32 %v404, %v695
  %697 = vmatpush1.msra.mxu0 %v696
  %v698 = vand.u32 %v401, 4294901760
  %v699 = vsub.f32 %v401, %v698
  %700 = vmatprep.subr.mxu0 %v699
  %v701 = vand.u32 %v400, 4294901760
  %v702 = vsub.f32 %v400, %v701
  %703 = vmatpush1.msra.mxu0 %v702
  %v704 = vand.u32 %v397, 4294901760
  %v705 = vsub.f32 %v397, %v704
  %706 = vmatprep.subr.mxu0 %v705
  %v707 = vand.u32 %v396, 4294901760
  %v708 = vsub.f32 %v396, %v707
  %709 = vmatpush1.msra.mxu0 %v708
  %v710 = vand.u32 %v393, 4294901760
  %v711 = vsub.f32 %v393, %v710
  %712 = vmatprep.subr.mxu0 %v711
  %v713 = vand.u32 %v392, 4294901760
  %v714 = vsub.f32 %v392, %v713
  %715 = vmatpush1.msra.mxu0 %v714
  %v716 = vand.u32 %v389, 4294901760
  %v717 = vsub.f32 %v389, %v716
  %718 = vmatprep.subr.mxu0 %v717
  %v719 = vand.u32 %v388, 4294901760
  %v720 = vsub.f32 %v388, %v719
  %721 = vmatpush1.msra.mxu0 %v720
  %v722 = vand.u32 %v385, 4294901760
  %v723 = vsub.f32 %v385, %v722
  %724 = vmatprep.subr.mxu0 %v723
  %v725 = vand.u32 %v384, 4294901760
  %v726 = vsub.f32 %v384, %v725
  %727 = vmatpush1.msra.mxu0 %v726
  %v728 = vand.u32 %v381, 4294901760
  %v729 = vsub.f32 %v381, %v728
  %730 = vmatprep.subr.mxu0 %v729
  %v731 = vand.u32 %v380, 4294901760
  %v732 = vsub.f32 %v380, %v731
  %733 = vmatpush1.msra.mxu0 %v732
  %v734 = vand.u32 %v377, 4294901760
  %v735 = vsub.f32 %v377, %v734
  %736 = vmatprep.subr.mxu0 %v735
  %v737 = vand.u32 %v376, 4294901760
  %v738 = vsub.f32 %v376, %v737
  %739 = vmatpush1.msra.mxu0 %v738
  %v740 = vand.u32 %v373, 4294901760
  %v741 = vsub.f32 %v373, %v740
  %742 = vmatprep.subr.mxu0 %v741
  %v743 = vand.u32 %v372, 4294901760
  %v744 = vsub.f32 %v372, %v743
  %745 = vmatpush1.msra.mxu0 %v744
  %v746 = vand.u32 %v369, 4294901760
  %v747 = vsub.f32 %v369, %v746
  %748 = vmatprep.subr.mxu0 %v747
  %v749 = vand.u32 %v368, 4294901760
  %v750 = vsub.f32 %v368, %v749
  %751 = vmatpush1.msra.mxu0 %v750
  %752 = vmatprep.subr.mxu0 0.0
  %753 = vmatpush2.msra.mxu0 0.0
  %754 = vmatprep.subr.mxu0 0.0
  %755 = vmatpush2.msra.mxu0 0.0
  %756 = vmatprep.subr.mxu0 0.0
  %757 = vmatpush2.msra.mxu0 0.0
  %758 = vmatprep.subr.mxu0 0.0
  %759 = vmatpush2.msra.mxu0 0.0
  %760 = vmatprep.subr.mxu0 0.0
  %761 = vmatpush2.msra.mxu0 0.0
  %762 = vmatprep.subr.mxu0 0.0
  %763 = vmatpush2.msra.mxu0 0.0
  %764 = vmatprep.subr.mxu0 0.0
  %765 = vmatpush2.msra.mxu0 0.0
  %766 = vmatprep.subr.mxu0 0.0
  %767 = vmatpush2.msra.mxu0 0.0
  %768 = vmatprep.subr.mxu0 0.0
  %769 = vmatpush2.msra.mxu0 0.0
  %770 = vmatprep.subr.mxu0 0.0
  %771 = vmatpush2.msra.mxu0 0.0
  %772 = vmatprep.subr.mxu0 0.0
  %773 = vmatpush2.msra.mxu0 0.0
  %774 = vmatprep.subr.mxu0 0.0
  %775 = vmatpush2.msra.mxu0 0.0
  %776 = vmatprep.subr.mxu0 0.0
  %777 = vmatpush2.msra.mxu0 0.0
  %778 = vmatprep.subr.mxu0 0.0
  %779 = vmatpush2.msra.mxu0 0.0
  %780 = vmatprep.subr.mxu0 0.0
  %781 = vmatpush2.msra.mxu0 0.0
  %782 = vmatprep.subr.mxu0 0.0
  %783 = vmatpush2.msra.mxu0 0.0
  %784 = vmatprep.mubr.f32.mxu0 0.0
  %v785 = vand.u32 %v410, 4294901760
  %v786 = vsub.f32 %v410, %v785
  %787 = vmatmul.mubr.f32.gmra.mxu0 %v786
  %v788 = vpop.f32.mrf.mxu0
  %v789 = vadd.f32 %v676, %v788
  %v790 = vpop.f32.mrf.mxu0
  %v791 = vadd.f32 %v678, %v790
  %792 = vdwg.mxu0
  %793 = vmatprep.subr.mxu0 0.0
  %794 = vmatpush1.msra.mxu0 0.0
  %795 = vmatprep.subr.mxu0 0.0
  %796 = vmatpush1.msra.mxu0 0.0
  %797 = vmatprep.subr.mxu0 0.0
  %798 = vmatpush1.msra.mxu0 0.0
  %799 = vmatprep.subr.mxu0 0.0
  %800 = vmatpush1.msra.mxu0 0.0
  %801 = vmatprep.subr.mxu0 0.0
  %802 = vmatpush1.msra.mxu0 0.0
  %803 = vmatprep.subr.mxu0 0.0
  %804 = vmatpush1.msra.mxu0 0.0
  %v805 = vand.u32 %v405, 4294901760
  %806 = vmatprep.subr.mxu0 %v805
  %v807 = vand.u32 %v404, 4294901760
  %808 = vmatpush1.msra.mxu0 %v807
  %v809 = vand.u32 %v401, 4294901760
  %810 = vmatprep.subr.mxu0 %v809
  %v811 = vand.u32 %v400, 4294901760
  %812 = vmatpush1.msra.mxu0 %v811
  %v813 = vand.u32 %v397, 4294901760
  %814 = vmatprep.subr.mxu0 %v813
  %v815 = vand.u32 %v396, 4294901760
  %816 = vmatpush1.msra.mxu0 %v815
  %v817 = vand.u32 %v393, 4294901760
  %818 = vmatprep.subr.mxu0 %v817
  %v819 = vand.u32 %v392, 4294901760
  %820 = vmatpush1.msra.mxu0 %v819
  %v821 = vand.u32 %v389, 4294901760
  %822 = vmatprep.subr.mxu0 %v821
  %v823 = vand.u32 %v388, 4294901760
  %824 = vmatpush1.msra.mxu0 %v823
  %v825 = vand.u32 %v385, 4294901760
  %826 = vmatprep.subr.mxu0 %v825
  %v827 = vand.u32 %v384, 4294901760
  %828 = vmatpush1.msra.mxu0 %v827
  %v829 = vand.u32 %v381, 4294901760
  %830 = vmatprep.subr.mxu0 %v829
  %v831 = vand.u32 %v380, 4294901760
  %832 = vmatpush1.msra.mxu0 %v831
  %v833 = vand.u32 %v377, 4294901760
  %834 = vmatprep.subr.mxu0 %v833
  %v835 = vand.u32 %v376, 4294901760
  %836 = vmatpush1.msra.mxu0 %v835
  %v837 = vand.u32 %v373, 4294901760
  %838 = vmatprep.subr.mxu0 %v837
  %v839 = vand.u32 %v372, 4294901760
  %840 = vmatpush1.msra.mxu0 %v839
  %v841 = vand.u32 %v369, 4294901760
  %842 = vmatprep.subr.mxu0 %v841
  %v843 = vand.u32 %v368, 4294901760
  %844 = vmatpush1.msra.mxu0 %v843
  %845 = vmatprep.subr.mxu0 0.0
  %846 = vmatpush2.msra.mxu0 0.0
  %847 = vmatprep.subr.mxu0 0.0
  %848 = vmatpush2.msra.mxu0 0.0
  %849 = vmatprep.subr.mxu0 0.0
  %850 = vmatpush2.msra.mxu0 0.0
  %851 = vmatprep.subr.mxu0 0.0
  %852 = vmatpush2.msra.mxu0 0.0
  %853 = vmatprep.subr.mxu0 0.0
  %854 = vmatpush2.msra.mxu0 0.0
  %855 = vmatprep.subr.mxu0 0.0
  %856 = vmatpush2.msra.mxu0 0.0
  %857 = vmatprep.subr.mxu0 0.0
  %858 = vmatpush2.msra.mxu0 0.0
  %859 = vmatprep.subr.mxu0 0.0
  %860 = vmatpush2.msra.mxu0 0.0
  %861 = vmatprep.subr.mxu0 0.0
  %862 = vmatpush2.msra.mxu0 0.0
  %863 = vmatprep.subr.mxu0 0.0
  %864 = vmatpush2.msra.mxu0 0.0
  %865 = vmatprep.subr.mxu0 0.0
  %866 = vmatpush2.msra.mxu0 0.0
  %867 = vmatprep.subr.mxu0 0.0
  %868 = vmatpush2.msra.mxu0 0.0
  %869 = vmatprep.subr.mxu0 0.0
  %870 = vmatpush2.msra.mxu0 0.0
  %871 = vmatprep.subr.mxu0 0.0
  %872 = vmatpush2.msra.mxu0 0.0
  %873 = vmatprep.subr.mxu0 0.0
  %874 = vmatpush2.msra.mxu0 0.0
  %875 = vmatprep.subr.mxu0 0.0
  %876 = vmatpush2.msra.mxu0 0.0
  %877 = vmatprep.mubr.f32.mxu0 0.0
  %v878 = vand.u32 %v410, 4294901760
  %v879 = vsub.f32 %v410, %v878
  %v880 = vand.u32 %v879, 4294901760
  %881 = vmatmul.mubr.f32.gmra.mxu0 %v880
  %v882 = vpop.f32.mrf.mxu0
  %v883 = vadd.f32 %v789, %v882
  %v884 = vpop.f32.mrf.mxu0
  %v885 = vadd.f32 %v791, %v884
  %886 = vdwg.mxu0
  %887 = vmatprep.subr.mxu0 0.0
  %888 = vmatpush1.msra.mxu0 0.0
  %889 = vmatprep.subr.mxu0 0.0
  %890 = vmatpush1.msra.mxu0 0.0
  %891 = vmatprep.subr.mxu0 0.0
  %892 = vmatpush1.msra.mxu0 0.0
  %893 = vmatprep.subr.mxu0 0.0
  %894 = vmatpush1.msra.mxu0 0.0
  %895 = vmatprep.subr.mxu0 0.0
  %896 = vmatpush1.msra.mxu0 0.0
  %897 = vmatprep.subr.mxu0 0.0
  %898 = vmatpush1.msra.mxu0 0.0
  %v899 = vand.u32 %v405, 4294901760
  %v900 = vsub.f32 %v405, %v899
  %v901 = vand.u32 %v900, 4294901760
  %902 = vmatprep.subr.mxu0 %v901
  %v903 = vand.u32 %v404, 4294901760
  %v904 = vsub.f32 %v404, %v903
  %v905 = vand.u32 %v904, 4294901760
  %906 = vmatpush1.msra.mxu0 %v905
  %v907 = vand.u32 %v401, 4294901760
  %v908 = vsub.f32 %v401, %v907
  %v909 = vand.u32 %v908, 4294901760
  %910 = vmatprep.subr.mxu0 %v909
  %v911 = vand.u32 %v400, 4294901760
  %v912 = vsub.f32 %v400, %v911
  %v913 = vand.u32 %v912, 4294901760
  %914 = vmatpush1.msra.mxu0 %v913
  %v915 = vand.u32 %v397, 4294901760
  %v916 = vsub.f32 %v397, %v915
  %v917 = vand.u32 %v916, 4294901760
  %918 = vmatprep.subr.mxu0 %v917
  %v919 = vand.u32 %v396, 4294901760
  %v920 = vsub.f32 %v396, %v919
  %v921 = vand.u32 %v920, 4294901760
  %922 = vmatpush1.msra.mxu0 %v921
  %v923 = vand.u32 %v393, 4294901760
  %v924 = vsub.f32 %v393, %v923
  %v925 = vand.u32 %v924, 4294901760
  %926 = vmatprep.subr.mxu0 %v925
  %v927 = vand.u32 %v392, 4294901760
  %v928 = vsub.f32 %v392, %v927
  %v929 = vand.u32 %v928, 4294901760
  %930 = vmatpush1.msra.mxu0 %v929
  %v931 = vand.u32 %v389, 4294901760
  %v932 = vsub.f32 %v389, %v931
  %v933 = vand.u32 %v932, 4294901760
  %934 = vmatprep.subr.mxu0 %v933
  %v935 = vand.u32 %v388, 4294901760
  %v936 = vsub.f32 %v388, %v935
  %v937 = vand.u32 %v936, 4294901760
  %938 = vmatpush1.msra.mxu0 %v937
  %v939 = vand.u32 %v385, 4294901760
  %v940 = vsub.f32 %v385, %v939
  %v941 = vand.u32 %v940, 4294901760
  %942 = vmatprep.subr.mxu0 %v941
  %v943 = vand.u32 %v384, 4294901760
  %v944 = vsub.f32 %v384, %v943
  %v945 = vand.u32 %v944, 4294901760
  %946 = vmatpush1.msra.mxu0 %v945
  %v947 = vand.u32 %v381, 4294901760
  %v948 = vsub.f32 %v381, %v947
  %v949 = vand.u32 %v948, 4294901760
  %950 = vmatprep.subr.mxu0 %v949
  %v951 = vand.u32 %v380, 4294901760
  %v952 = vsub.f32 %v380, %v951
  %v953 = vand.u32 %v952, 4294901760
  %954 = vmatpush1.msra.mxu0 %v953
  %v955 = vand.u32 %v377, 4294901760
  %v956 = vsub.f32 %v377, %v955
  %v957 = vand.u32 %v956, 4294901760
  %958 = vmatprep.subr.mxu0 %v957
  %v959 = vand.u32 %v376, 4294901760
  %v960 = vsub.f32 %v376, %v959
  %v961 = vand.u32 %v960, 4294901760
  %962 = vmatpush1.msra.mxu0 %v961
  %v963 = vand.u32 %v373, 4294901760
  %v964 = vsub.f32 %v373, %v963
  %v965 = vand.u32 %v964, 4294901760
  %966 = vmatprep.subr.mxu0 %v965
  %v967 = vand.u32 %v372, 4294901760
  %v968 = vsub.f32 %v372, %v967
  %v969 = vand.u32 %v968, 4294901760
  %970 = vmatpush1.msra.mxu0 %v969
  %v971 = vand.u32 %v369, 4294901760
  %v972 = vsub.f32 %v369, %v971
  %v973 = vand.u32 %v972, 4294901760
  %974 = vmatprep.subr.mxu0 %v973
  %v975 = vand.u32 %v368, 4294901760
  %v976 = vsub.f32 %v368, %v975
  %v977 = vand.u32 %v976, 4294901760
  %978 = vmatpush1.msra.mxu0 %v977
  %979 = vmatprep.subr.mxu0 0.0
  %980 = vmatpush2.msra.mxu0 0.0
  %981 = vmatprep.subr.mxu0 0.0
  %982 = vmatpush2.msra.mxu0 0.0
  %983 = vmatprep.subr.mxu0 0.0
  %984 = vmatpush2.msra.mxu0 0.0
  %985 = vmatprep.subr.mxu0 0.0
  %986 = vmatpush2.msra.mxu0 0.0
  %987 = vmatprep.subr.mxu0 0.0
  %988 = vmatpush2.msra.mxu0 0.0
  %989 = vmatprep.subr.mxu0 0.0
  %990 = vmatpush2.msra.mxu0 0.0
  %991 = vmatprep.subr.mxu0 0.0
  %992 = vmatpush2.msra.mxu0 0.0
  %993 = vmatprep.subr.mxu0 0.0
  %994 = vmatpush2.msra.mxu0 0.0
  %995 = vmatprep.subr.mxu0 0.0
  %996 = vmatpush2.msra.mxu0 0.0
  %997 = vmatprep.subr.mxu0 0.0
  %998 = vmatpush2.msra.mxu0 0.0
  %999 = vmatprep.subr.mxu0 0.0
  %1000 = vmatpush2.msra.mxu0 0.0
  %1001 = vmatprep.subr.mxu0 0.0
  %1002 = vmatpush2.msra.mxu0 0.0
  %1003 = vmatprep.subr.mxu0 0.0
  %1004 = vmatpush2.msra.mxu0 0.0
  %1005 = vmatprep.subr.mxu0 0.0
  %1006 = vmatpush2.msra.mxu0 0.0
  %1007 = vmatprep.subr.mxu0 0.0
  %1008 = vmatpush2.msra.mxu0 0.0
  %1009 = vmatprep.subr.mxu0 0.0
  %1010 = vmatpush2.msra.mxu0 0.0
  %1011 = vmatprep.mubr.f32.mxu0 0.0
  %v1012 = vand.u32 %v410, 4294901760
  %1013 = vmatmul.mubr.f32.gmra.mxu0 %v1012
  %v1014 = vpop.f32.mrf.mxu0
  %v1015 = vadd.f32 %v883, %v1014
  %v1016 = vpop.f32.mrf.mxu0
  %v1017 = vadd.f32 %v885, %v1016
  %1018 = vdwg.mxu0
  %1019 = vmatprep.subr.mxu0 0.0
  %1020 = vmatpush1.msra.mxu0 0.0
  %1021 = vmatprep.subr.mxu0 0.0
  %1022 = vmatpush1.msra.mxu0 0.0
  %1023 = vmatprep.subr.mxu0 0.0
  %1024 = vmatpush1.msra.mxu0 0.0
  %1025 = vmatprep.subr.mxu0 0.0
  %1026 = vmatpush1.msra.mxu0 0.0
  %1027 = vmatprep.subr.mxu0 0.0
  %1028 = vmatpush1.msra.mxu0 0.0
  %1029 = vmatprep.subr.mxu0 0.0
  %1030 = vmatpush1.msra.mxu0 0.0
  %v1031 = vand.u32 %v405, 4294901760
  %1032 = vmatprep.subr.mxu0 %v1031
  %v1033 = vand.u32 %v404, 4294901760
  %1034 = vmatpush1.msra.mxu0 %v1033
  %v1035 = vand.u32 %v401, 4294901760
  %1036 = vmatprep.subr.mxu0 %v1035
  %v1037 = vand.u32 %v400, 4294901760
  %1038 = vmatpush1.msra.mxu0 %v1037
  %v1039 = vand.u32 %v397, 4294901760
  %1040 = vmatprep.subr.mxu0 %v1039
  %v1041 = vand.u32 %v396, 4294901760
  %1042 = vmatpush1.msra.mxu0 %v1041
  %v1043 = vand.u32 %v393, 4294901760
  %1044 = vmatprep.subr.mxu0 %v1043
  %v1045 = vand.u32 %v392, 4294901760
  %1046 = vmatpush1.msra.mxu0 %v1045
  %v1047 = vand.u32 %v389, 4294901760
  %1048 = vmatprep.subr.mxu0 %v1047
  %v1049 = vand.u32 %v388, 4294901760
  %1050 = vmatpush1.msra.mxu0 %v1049
  %v1051 = vand.u32 %v385, 4294901760
  %1052 = vmatprep.subr.mxu0 %v1051
  %v1053 = vand.u32 %v384, 4294901760
  %1054 = vmatpush1.msra.mxu0 %v1053
  %v1055 = vand.u32 %v381, 4294901760
  %1056 = vmatprep.subr.mxu0 %v1055
  %v1057 = vand.u32 %v380, 4294901760
  %1058 = vmatpush1.msra.mxu0 %v1057
  %v1059 = vand.u32 %v377, 4294901760
  %1060 = vmatprep.subr.mxu0 %v1059
  %v1061 = vand.u32 %v376, 4294901760
  %1062 = vmatpush1.msra.mxu0 %v1061
  %v1063 = vand.u32 %v373, 4294901760
  %1064 = vmatprep.subr.mxu0 %v1063
  %v1065 = vand.u32 %v372, 4294901760
  %1066 = vmatpush1.msra.mxu0 %v1065
  %v1067 = vand.u32 %v369, 4294901760
  %1068 = vmatprep.subr.mxu0 %v1067
  %v1069 = vand.u32 %v368, 4294901760
  %1070 = vmatpush1.msra.mxu0 %v1069
  %1071 = vmatprep.subr.mxu0 0.0
  %1072 = vmatpush2.msra.mxu0 0.0
  %1073 = vmatprep.subr.mxu0 0.0
  %1074 = vmatpush2.msra.mxu0 0.0
  %1075 = vmatprep.subr.mxu0 0.0
  %1076 = vmatpush2.msra.mxu0 0.0
  %1077 = vmatprep.subr.mxu0 0.0
  %1078 = vmatpush2.msra.mxu0 0.0
  %1079 = vmatprep.subr.mxu0 0.0
  %1080 = vmatpush2.msra.mxu0 0.0
  %1081 = vmatprep.subr.mxu0 0.0
  %1082 = vmatpush2.msra.mxu0 0.0
  %1083 = vmatprep.subr.mxu0 0.0
  %1084 = vmatpush2.msra.mxu0 0.0
  %1085 = vmatprep.subr.mxu0 0.0
  %1086 = vmatpush2.msra.mxu0 0.0
  %1087 = vmatprep.subr.mxu0 0.0
  %1088 = vmatpush2.msra.mxu0 0.0
  %1089 = vmatprep.subr.mxu0 0.0
  %1090 = vmatpush2.msra.mxu0 0.0
  %1091 = vmatprep.subr.mxu0 0.0
  %1092 = vmatpush2.msra.mxu0 0.0
  %1093 = vmatprep.subr.mxu0 0.0
  %1094 = vmatpush2.msra.mxu0 0.0
  %1095 = vmatprep.subr.mxu0 0.0
  %1096 = vmatpush2.msra.mxu0 0.0
  %1097 = vmatprep.subr.mxu0 0.0
  %1098 = vmatpush2.msra.mxu0 0.0
  %1099 = vmatprep.subr.mxu0 0.0
  %1100 = vmatpush2.msra.mxu0 0.0
  %1101 = vmatprep.subr.mxu0 0.0
  %1102 = vmatpush2.msra.mxu0 0.0
  %1103 = vmatprep.mubr.f32.mxu0 0.0
  %v1104 = vand.u32 %v410, 4294901760
  %1105 = vmatmul.mubr.f32.gmra.mxu0 %v1104
  %v1106 = vpop.f32.mrf.mxu0
  %v1107 = vadd.f32 %v1015, %v1106
  %v1108 = vpop.f32.mrf.mxu0
  %v1109 = vadd.f32 %v1017, %v1108
  %1110 = vdwg.mxu0
  %1111 = vmatprep.subr.mxu0 0.0
  %1112 = vmatpush1.msra.mxu0 0.0
  %1113 = vmatprep.subr.mxu0 0.0
  %1114 = vmatpush1.msra.mxu0 0.0
  %1115 = vmatprep.subr.mxu0 0.0
  %1116 = vmatpush1.msra.mxu0 0.0
  %1117 = vmatprep.subr.mxu0 0.0
  %1118 = vmatpush1.msra.mxu0 0.0
  %1119 = vmatprep.subr.mxu0 0.0
  %1120 = vmatpush1.msra.mxu0 0.0
  %1121 = vmatprep.subr.mxu0 0.0
  %1122 = vmatpush1.msra.mxu0 0.0
  %v1123 = vand.u32 %v407, 4294901760
  %1124 = vmatprep.subr.mxu0 %v1123
  %v1125 = vand.u32 %v406, 4294901760
  %1126 = vmatpush1.msra.mxu0 %v1125
  %v1127 = vand.u32 %v403, 4294901760
  %1128 = vmatprep.subr.mxu0 %v1127
  %v1129 = vand.u32 %v402, 4294901760
  %1130 = vmatpush1.msra.mxu0 %v1129
  %v1131 = vand.u32 %v399, 4294901760
  %1132 = vmatprep.subr.mxu0 %v1131
  %v1133 = vand.u32 %v398, 4294901760
  %1134 = vmatpush1.msra.mxu0 %v1133
  %v1135 = vand.u32 %v395, 4294901760
  %1136 = vmatprep.subr.mxu0 %v1135
  %v1137 = vand.u32 %v394, 4294901760
  %1138 = vmatpush1.msra.mxu0 %v1137
  %v1139 = vand.u32 %v391, 4294901760
  %1140 = vmatprep.subr.mxu0 %v1139
  %v1141 = vand.u32 %v390, 4294901760
  %1142 = vmatpush1.msra.mxu0 %v1141
  %v1143 = vand.u32 %v387, 4294901760
  %1144 = vmatprep.subr.mxu0 %v1143
  %v1145 = vand.u32 %v386, 4294901760
  %1146 = vmatpush1.msra.mxu0 %v1145
  %v1147 = vand.u32 %v383, 4294901760
  %1148 = vmatprep.subr.mxu0 %v1147
  %v1149 = vand.u32 %v382, 4294901760
  %1150 = vmatpush1.msra.mxu0 %v1149
  %v1151 = vand.u32 %v379, 4294901760
  %1152 = vmatprep.subr.mxu0 %v1151
  %v1153 = vand.u32 %v378, 4294901760
  %1154 = vmatpush1.msra.mxu0 %v1153
  %v1155 = vand.u32 %v375, 4294901760
  %1156 = vmatprep.subr.mxu0 %v1155
  %v1157 = vand.u32 %v374, 4294901760
  %1158 = vmatpush1.msra.mxu0 %v1157
  %v1159 = vand.u32 %v371, 4294901760
  %1160 = vmatprep.subr.mxu0 %v1159
  %v1161 = vand.u32 %v370, 4294901760
  %1162 = vmatpush1.msra.mxu0 %v1161
  %1163 = vmatprep.subr.mxu0 0.0
  %1164 = vmatpush2.msra.mxu0 0.0
  %1165 = vmatprep.subr.mxu0 0.0
  %1166 = vmatpush2.msra.mxu0 0.0
  %1167 = vmatprep.subr.mxu0 0.0
  %1168 = vmatpush2.msra.mxu0 0.0
  %1169 = vmatprep.subr.mxu0 0.0
  %1170 = vmatpush2.msra.mxu0 0.0
  %1171 = vmatprep.subr.mxu0 0.0
  %1172 = vmatpush2.msra.mxu0 0.0
  %1173 = vmatprep.subr.mxu0 0.0
  %1174 = vmatpush2.msra.mxu0 0.0
  %1175 = vmatprep.subr.mxu0 0.0
  %1176 = vmatpush2.msra.mxu0 0.0
  %1177 = vmatprep.subr.mxu0 0.0
  %1178 = vmatpush2.msra.mxu0 0.0
  %1179 = vmatprep.subr.mxu0 0.0
  %1180 = vmatpush2.msra.mxu0 0.0
  %1181 = vmatprep.subr.mxu0 0.0
  %1182 = vmatpush2.msra.mxu0 0.0
  %1183 = vmatprep.subr.mxu0 0.0
  %1184 = vmatpush2.msra.mxu0 0.0
  %1185 = vmatprep.subr.mxu0 0.0
  %1186 = vmatpush2.msra.mxu0 0.0
  %1187 = vmatprep.subr.mxu0 0.0
  %1188 = vmatpush2.msra.mxu0 0.0
  %1189 = vmatprep.subr.mxu0 0.0
  %1190 = vmatpush2.msra.mxu0 0.0
  %1191 = vmatprep.subr.mxu0 0.0
  %1192 = vmatpush2.msra.mxu0 0.0
  %1193 = vmatprep.subr.mxu0 0.0
  %1194 = vmatpush2.msra.mxu0 0.0
  %1195 = vmatprep.mubr.f32.mxu0 0.0
  %v1196 = vand.u32 %v410, 4294901760
  %v1197 = vsub.f32 %v410, %v1196
  %v1198 = vand.u32 %v1197, 4294901760
  %v1199 = vsub.f32 %v1197, %v1198
  %v1200 = vand.u32 %v1199, 4294901760
  %1201 = vmatmul.mubr.f32.gmra.mxu0 %v1200
  %v1202 = vpop.f32.mrf.mxu0
  %v1203 = vadd.f32 0.0, %v1202
  %v1204 = vpop.f32.mrf.mxu0
  %v1205 = vadd.f32 0.0, %v1204
  %1206 = vdwg.mxu0
  %1207 = vmatprep.subr.mxu0 0.0
  %1208 = vmatpush1.msra.mxu0 0.0
  %1209 = vmatprep.subr.mxu0 0.0
  %1210 = vmatpush1.msra.mxu0 0.0
  %1211 = vmatprep.subr.mxu0 0.0
  %1212 = vmatpush1.msra.mxu0 0.0
  %1213 = vmatprep.subr.mxu0 0.0
  %1214 = vmatpush1.msra.mxu0 0.0
  %1215 = vmatprep.subr.mxu0 0.0
  %1216 = vmatpush1.msra.mxu0 0.0
  %1217 = vmatprep.subr.mxu0 0.0
  %1218 = vmatpush1.msra.mxu0 0.0
  %v1219 = vand.u32 %v407, 4294901760
  %v1220 = vsub.f32 %v407, %v1219
  %v1221 = vand.u32 %v1220, 4294901760
  %v1222 = vsub.f32 %v1220, %v1221
  %v1223 = vand.u32 %v1222, 4294901760
  %1224 = vmatprep.subr.mxu0 %v1223
  %v1225 = vand.u32 %v406, 4294901760
  %v1226 = vsub.f32 %v406, %v1225
  %v1227 = vand.u32 %v1226, 4294901760
  %v1228 = vsub.f32 %v1226, %v1227
  %v1229 = vand.u32 %v1228, 4294901760
  %1230 = vmatpush1.msra.mxu0 %v1229
  %v1231 = vand.u32 %v403, 4294901760
  %v1232 = vsub.f32 %v403, %v1231
  %v1233 = vand.u32 %v1232, 4294901760
  %v1234 = vsub.f32 %v1232, %v1233
  %v1235 = vand.u32 %v1234, 4294901760
  %1236 = vmatprep.subr.mxu0 %v1235
  %v1237 = vand.u32 %v402, 4294901760
  %v1238 = vsub.f32 %v402, %v1237
  %v1239 = vand.u32 %v1238, 4294901760
  %v1240 = vsub.f32 %v1238, %v1239
  %v1241 = vand.u32 %v1240, 4294901760
  %1242 = vmatpush1.msra.mxu0 %v1241
  %v1243 = vand.u32 %v399, 4294901760
  %v1244 = vsub.f32 %v399, %v1243
  %v1245 = vand.u32 %v1244, 4294901760
  %v1246 = vsub.f32 %v1244, %v1245
  %v1247 = vand.u32 %v1246, 4294901760
  %1248 = vmatprep.subr.mxu0 %v1247
  %v1249 = vand.u32 %v398, 4294901760
  %v1250 = vsub.f32 %v398, %v1249
  %v1251 = vand.u32 %v1250, 4294901760
  %v1252 = vsub.f32 %v1250, %v1251
  %v1253 = vand.u32 %v1252, 4294901760
  %1254 = vmatpush1.msra.mxu0 %v1253
  %v1255 = vand.u32 %v395, 4294901760
  %v1256 = vsub.f32 %v395, %v1255
  %v1257 = vand.u32 %v1256, 4294901760
  %v1258 = vsub.f32 %v1256, %v1257
  %v1259 = vand.u32 %v1258, 4294901760
  %1260 = vmatprep.subr.mxu0 %v1259
  %v1261 = vand.u32 %v394, 4294901760
  %v1262 = vsub.f32 %v394, %v1261
  %v1263 = vand.u32 %v1262, 4294901760
  %v1264 = vsub.f32 %v1262, %v1263
  %v1265 = vand.u32 %v1264, 4294901760
  %1266 = vmatpush1.msra.mxu0 %v1265
  %v1267 = vand.u32 %v391, 4294901760
  %v1268 = vsub.f32 %v391, %v1267
  %v1269 = vand.u32 %v1268, 4294901760
  %v1270 = vsub.f32 %v1268, %v1269
  %v1271 = vand.u32 %v1270, 4294901760
  %1272 = vmatprep.subr.mxu0 %v1271
  %v1273 = vand.u32 %v390, 4294901760
  %v1274 = vsub.f32 %v390, %v1273
  %v1275 = vand.u32 %v1274, 4294901760
  %v1276 = vsub.f32 %v1274, %v1275
  %v1277 = vand.u32 %v1276, 4294901760
  %1278 = vmatpush1.msra.mxu0 %v1277
  %v1279 = vand.u32 %v387, 4294901760
  %v1280 = vsub.f32 %v387, %v1279
  %v1281 = vand.u32 %v1280, 4294901760
  %v1282 = vsub.f32 %v1280, %v1281
  %v1283 = vand.u32 %v1282, 4294901760
  %1284 = vmatprep.subr.mxu0 %v1283
  %v1285 = vand.u32 %v386, 4294901760
  %v1286 = vsub.f32 %v386, %v1285
  %v1287 = vand.u32 %v1286, 4294901760
  %v1288 = vsub.f32 %v1286, %v1287
  %v1289 = vand.u32 %v1288, 4294901760
  %1290 = vmatpush1.msra.mxu0 %v1289
  %v1291 = vand.u32 %v383, 4294901760
  %v1292 = vsub.f32 %v383, %v1291
  %v1293 = vand.u32 %v1292, 4294901760
  %v1294 = vsub.f32 %v1292, %v1293
  %v1295 = vand.u32 %v1294, 4294901760
  %1296 = vmatprep.subr.mxu0 %v1295
  %v1297 = vand.u32 %v382, 4294901760
  %v1298 = vsub.f32 %v382, %v1297
  %v1299 = vand.u32 %v1298, 4294901760
  %v1300 = vsub.f32 %v1298, %v1299
  %v1301 = vand.u32 %v1300, 4294901760
  %1302 = vmatpush1.msra.mxu0 %v1301
  %v1303 = vand.u32 %v379, 4294901760
  %v1304 = vsub.f32 %v379, %v1303
  %v1305 = vand.u32 %v1304, 4294901760
  %v1306 = vsub.f32 %v1304, %v1305
  %v1307 = vand.u32 %v1306, 4294901760
  %1308 = vmatprep.subr.mxu0 %v1307
  %v1309 = vand.u32 %v378, 4294901760
  %v1310 = vsub.f32 %v378, %v1309
  %v1311 = vand.u32 %v1310, 4294901760
  %v1312 = vsub.f32 %v1310, %v1311
  %v1313 = vand.u32 %v1312, 4294901760
  %1314 = vmatpush1.msra.mxu0 %v1313
  %v1315 = vand.u32 %v375, 4294901760
  %v1316 = vsub.f32 %v375, %v1315
  %v1317 = vand.u32 %v1316, 4294901760
  %v1318 = vsub.f32 %v1316, %v1317
  %v1319 = vand.u32 %v1318, 4294901760
  %1320 = vmatprep.subr.mxu0 %v1319
  %v1321 = vand.u32 %v374, 4294901760
  %v1322 = vsub.f32 %v374, %v1321
  %v1323 = vand.u32 %v1322, 4294901760
  %v1324 = vsub.f32 %v1322, %v1323
  %v1325 = vand.u32 %v1324, 4294901760
  %1326 = vmatpush1.msra.mxu0 %v1325
  %v1327 = vand.u32 %v371, 4294901760
  %v1328 = vsub.f32 %v371, %v1327
  %v1329 = vand.u32 %v1328, 4294901760
  %v1330 = vsub.f32 %v1328, %v1329
  %v1331 = vand.u32 %v1330, 4294901760
  %1332 = vmatprep.subr.mxu0 %v1331
  %v1333 = vand.u32 %v370, 4294901760
  %v1334 = vsub.f32 %v370, %v1333
  %v1335 = vand.u32 %v1334, 4294901760
  %v1336 = vsub.f32 %v1334, %v1335
  %v1337 = vand.u32 %v1336, 4294901760
  %1338 = vmatpush1.msra.mxu0 %v1337
  %1339 = vmatprep.subr.mxu0 0.0
  %1340 = vmatpush2.msra.mxu0 0.0
  %1341 = vmatprep.subr.mxu0 0.0
  %1342 = vmatpush2.msra.mxu0 0.0
  %1343 = vmatprep.subr.mxu0 0.0
  %1344 = vmatpush2.msra.mxu0 0.0
  %1345 = vmatprep.subr.mxu0 0.0
  %1346 = vmatpush2.msra.mxu0 0.0
  %1347 = vmatprep.subr.mxu0 0.0
  %1348 = vmatpush2.msra.mxu0 0.0
  %1349 = vmatprep.subr.mxu0 0.0
  %1350 = vmatpush2.msra.mxu0 0.0
  %1351 = vmatprep.subr.mxu0 0.0
  %1352 = vmatpush2.msra.mxu0 0.0
  %1353 = vmatprep.subr.mxu0 0.0
  %1354 = vmatpush2.msra.mxu0 0.0
  %1355 = vmatprep.subr.mxu0 0.0
  %1356 = vmatpush2.msra.mxu0 0.0
  %1357 = vmatprep.subr.mxu0 0.0
  %1358 = vmatpush2.msra.mxu0 0.0
  %1359 = vmatprep.subr.mxu0 0.0
  %1360 = vmatpush2.msra.mxu0 0.0
  %1361 = vmatprep.subr.mxu0 0.0
  %1362 = vmatpush2.msra.mxu0 0.0
  %1363 = vmatprep.subr.mxu0 0.0
  %1364 = vmatpush2.msra.mxu0 0.0
  %1365 = vmatprep.subr.mxu0 0.0
  %1366 = vmatpush2.msra.mxu0 0.0
  %1367 = vmatprep.subr.mxu0 0.0
  %1368 = vmatpush2.msra.mxu0 0.0
  %1369 = vmatprep.subr.mxu0 0.0
  %1370 = vmatpush2.msra.mxu0 0.0
  %1371 = vmatprep.mubr.f32.mxu0 0.0
  %v1372 = vand.u32 %v410, 4294901760
  %1373 = vmatmul.mubr.f32.gmra.mxu0 %v1372
  %v1374 = vpop.f32.mrf.mxu0
  %v1375 = vadd.f32 %v1203, %v1374
  %v1376 = vpop.f32.mrf.mxu0
  %v1377 = vadd.f32 %v1205, %v1376
  %1378 = vdwg.mxu0
  %1379 = vmatprep.subr.mxu0 0.0
  %1380 = vmatpush1.msra.mxu0 0.0
  %1381 = vmatprep.subr.mxu0 0.0
  %1382 = vmatpush1.msra.mxu0 0.0
  %1383 = vmatprep.subr.mxu0 0.0
  %1384 = vmatpush1.msra.mxu0 0.0
  %1385 = vmatprep.subr.mxu0 0.0
  %1386 = vmatpush1.msra.mxu0 0.0
  %1387 = vmatprep.subr.mxu0 0.0
  %1388 = vmatpush1.msra.mxu0 0.0
  %1389 = vmatprep.subr.mxu0 0.0
  %1390 = vmatpush1.msra.mxu0 0.0
  %v1391 = vand.u32 %v407, 4294901760
  %v1392 = vsub.f32 %v407, %v1391
  %1393 = vmatprep.subr.mxu0 %v1392
  %v1394 = vand.u32 %v406, 4294901760
  %v1395 = vsub.f32 %v406, %v1394
  %1396 = vmatpush1.msra.mxu0 %v1395
  %v1397 = vand.u32 %v403, 4294901760
  %v1398 = vsub.f32 %v403, %v1397
  %1399 = vmatprep.subr.mxu0 %v1398
  %v1400 = vand.u32 %v402, 4294901760
  %v1401 = vsub.f32 %v402, %v1400
  %1402 = vmatpush1.msra.mxu0 %v1401
  %v1403 = vand.u32 %v399, 4294901760
  %v1404 = vsub.f32 %v399, %v1403
  %1405 = vmatprep.subr.mxu0 %v1404
  %v1406 = vand.u32 %v398, 4294901760
  %v1407 = vsub.f32 %v398, %v1406
  %1408 = vmatpush1.msra.mxu0 %v1407
  %v1409 = vand.u32 %v395, 4294901760
  %v1410 = vsub.f32 %v395, %v1409
  %1411 = vmatprep.subr.mxu0 %v1410
  %v1412 = vand.u32 %v394, 4294901760
  %v1413 = vsub.f32 %v394, %v1412
  %1414 = vmatpush1.msra.mxu0 %v1413
  %v1415 = vand.u32 %v391, 4294901760
  %v1416 = vsub.f32 %v391, %v1415
  %1417 = vmatprep.subr.mxu0 %v1416
  %v1418 = vand.u32 %v390, 4294901760
  %v1419 = vsub.f32 %v390, %v1418
  %1420 = vmatpush1.msra.mxu0 %v1419
  %v1421 = vand.u32 %v387, 4294901760
  %v1422 = vsub.f32 %v387, %v1421
  %1423 = vmatprep.subr.mxu0 %v1422
  %v1424 = vand.u32 %v386, 4294901760
  %v1425 = vsub.f32 %v386, %v1424
  %1426 = vmatpush1.msra.mxu0 %v1425
  %v1427 = vand.u32 %v383, 4294901760
  %v1428 = vsub.f32 %v383, %v1427
  %1429 = vmatprep.subr.mxu0 %v1428
  %v1430 = vand.u32 %v382, 4294901760
  %v1431 = vsub.f32 %v382, %v1430
  %1432 = vmatpush1.msra.mxu0 %v1431
  %v1433 = vand.u32 %v379, 4294901760
  %v1434 = vsub.f32 %v379, %v1433
  %1435 = vmatprep.subr.mxu0 %v1434
  %v1436 = vand.u32 %v378, 4294901760
  %v1437 = vsub.f32 %v378, %v1436
  %1438 = vmatpush1.msra.mxu0 %v1437
  %v1439 = vand.u32 %v375, 4294901760
  %v1440 = vsub.f32 %v375, %v1439
  %1441 = vmatprep.subr.mxu0 %v1440
  %v1442 = vand.u32 %v374, 4294901760
  %v1443 = vsub.f32 %v374, %v1442
  %1444 = vmatpush1.msra.mxu0 %v1443
  %v1445 = vand.u32 %v371, 4294901760
  %v1446 = vsub.f32 %v371, %v1445
  %1447 = vmatprep.subr.mxu0 %v1446
  %v1448 = vand.u32 %v370, 4294901760
  %v1449 = vsub.f32 %v370, %v1448
  %1450 = vmatpush1.msra.mxu0 %v1449
  %1451 = vmatprep.subr.mxu0 0.0
  %1452 = vmatpush2.msra.mxu0 0.0
  %1453 = vmatprep.subr.mxu0 0.0
  %1454 = vmatpush2.msra.mxu0 0.0
  %1455 = vmatprep.subr.mxu0 0.0
  %1456 = vmatpush2.msra.mxu0 0.0
  %1457 = vmatprep.subr.mxu0 0.0
  %1458 = vmatpush2.msra.mxu0 0.0
  %1459 = vmatprep.subr.mxu0 0.0
  %1460 = vmatpush2.msra.mxu0 0.0
  %1461 = vmatprep.subr.mxu0 0.0
  %1462 = vmatpush2.msra.mxu0 0.0
  %1463 = vmatprep.subr.mxu0 0.0
  %1464 = vmatpush2.msra.mxu0 0.0
  %1465 = vmatprep.subr.mxu0 0.0
  %1466 = vmatpush2.msra.mxu0 0.0
  %1467 = vmatprep.subr.mxu0 0.0
  %1468 = vmatpush2.msra.mxu0 0.0
  %1469 = vmatprep.subr.mxu0 0.0
  %1470 = vmatpush2.msra.mxu0 0.0
  %1471 = vmatprep.subr.mxu0 0.0
  %1472 = vmatpush2.msra.mxu0 0.0
  %1473 = vmatprep.subr.mxu0 0.0
  %1474 = vmatpush2.msra.mxu0 0.0
  %1475 = vmatprep.subr.mxu0 0.0
  %1476 = vmatpush2.msra.mxu0 0.0
  %1477 = vmatprep.subr.mxu0 0.0
  %1478 = vmatpush2.msra.mxu0 0.0
  %1479 = vmatprep.subr.mxu0 0.0
  %1480 = vmatpush2.msra.mxu0 0.0
  %1481 = vmatprep.subr.mxu0 0.0
  %1482 = vmatpush2.msra.mxu0 0.0
  %1483 = vmatprep.mubr.f32.mxu0 0.0
  %v1484 = vand.u32 %v410, 4294901760
  %v1485 = vsub.f32 %v410, %v1484
  %1486 = vmatmul.mubr.f32.gmra.mxu0 %v1485
  %v1487 = vpop.f32.mrf.mxu0
  %v1488 = vadd.f32 %v1375, %v1487
  %v1489 = vpop.f32.mrf.mxu0
  %v1490 = vadd.f32 %v1377, %v1489
  %1491 = vdwg.mxu0
  %1492 = vmatprep.subr.mxu0 0.0
  %1493 = vmatpush1.msra.mxu0 0.0
  %1494 = vmatprep.subr.mxu0 0.0
  %1495 = vmatpush1.msra.mxu0 0.0
  %1496 = vmatprep.subr.mxu0 0.0
  %1497 = vmatpush1.msra.mxu0 0.0
  %1498 = vmatprep.subr.mxu0 0.0
  %1499 = vmatpush1.msra.mxu0 0.0
  %1500 = vmatprep.subr.mxu0 0.0
  %1501 = vmatpush1.msra.mxu0 0.0
  %1502 = vmatprep.subr.mxu0 0.0
  %1503 = vmatpush1.msra.mxu0 0.0
  %v1504 = vand.u32 %v407, 4294901760
  %1505 = vmatprep.subr.mxu0 %v1504
  %v1506 = vand.u32 %v406, 4294901760
  %1507 = vmatpush1.msra.mxu0 %v1506
  %v1508 = vand.u32 %v403, 4294901760
  %1509 = vmatprep.subr.mxu0 %v1508
  %v1510 = vand.u32 %v402, 4294901760
  %1511 = vmatpush1.msra.mxu0 %v1510
  %v1512 = vand.u32 %v399, 4294901760
  %1513 = vmatprep.subr.mxu0 %v1512
  %v1514 = vand.u32 %v398, 4294901760
  %1515 = vmatpush1.msra.mxu0 %v1514
  %v1516 = vand.u32 %v395, 4294901760
  %1517 = vmatprep.subr.mxu0 %v1516
  %v1518 = vand.u32 %v394, 4294901760
  %1519 = vmatpush1.msra.mxu0 %v1518
  %v1520 = vand.u32 %v391, 4294901760
  %1521 = vmatprep.subr.mxu0 %v1520
  %v1522 = vand.u32 %v390, 4294901760
  %1523 = vmatpush1.msra.mxu0 %v1522
  %v1524 = vand.u32 %v387, 4294901760
  %1525 = vmatprep.subr.mxu0 %v1524
  %v1526 = vand.u32 %v386, 4294901760
  %1527 = vmatpush1.msra.mxu0 %v1526
  %v1528 = vand.u32 %v383, 4294901760
  %1529 = vmatprep.subr.mxu0 %v1528
  %v1530 = vand.u32 %v382, 4294901760
  %1531 = vmatpush1.msra.mxu0 %v1530
  %v1532 = vand.u32 %v379, 4294901760
  %1533 = vmatprep.subr.mxu0 %v1532
  %v1534 = vand.u32 %v378, 4294901760
  %1535 = vmatpush1.msra.mxu0 %v1534
  %v1536 = vand.u32 %v375, 4294901760
  %1537 = vmatprep.subr.mxu0 %v1536
  %v1538 = vand.u32 %v374, 4294901760
  %1539 = vmatpush1.msra.mxu0 %v1538
  %v1540 = vand.u32 %v371, 4294901760
  %1541 = vmatprep.subr.mxu0 %v1540
  %v1542 = vand.u32 %v370, 4294901760
  %1543 = vmatpush1.msra.mxu0 %v1542
  %1544 = vmatprep.subr.mxu0 0.0
  %1545 = vmatpush2.msra.mxu0 0.0
  %1546 = vmatprep.subr.mxu0 0.0
  %1547 = vmatpush2.msra.mxu0 0.0
  %1548 = vmatprep.subr.mxu0 0.0
  %1549 = vmatpush2.msra.mxu0 0.0
  %1550 = vmatprep.subr.mxu0 0.0
  %1551 = vmatpush2.msra.mxu0 0.0
  %1552 = vmatprep.subr.mxu0 0.0
  %1553 = vmatpush2.msra.mxu0 0.0
  %1554 = vmatprep.subr.mxu0 0.0
  %1555 = vmatpush2.msra.mxu0 0.0
  %1556 = vmatprep.subr.mxu0 0.0
  %1557 = vmatpush2.msra.mxu0 0.0
  %1558 = vmatprep.subr.mxu0 0.0
  %1559 = vmatpush2.msra.mxu0 0.0
  %1560 = vmatprep.subr.mxu0 0.0
  %1561 = vmatpush2.msra.mxu0 0.0
  %1562 = vmatprep.subr.mxu0 0.0
  %1563 = vmatpush2.msra.mxu0 0.0
  %1564 = vmatprep.subr.mxu0 0.0
  %1565 = vmatpush2.msra.mxu0 0.0
  %1566 = vmatprep.subr.mxu0 0.0
  %1567 = vmatpush2.msra.mxu0 0.0
  %1568 = vmatprep.subr.mxu0 0.0
  %1569 = vmatpush2.msra.mxu0 0.0
  %1570 = vmatprep.subr.mxu0 0.0
  %1571 = vmatpush2.msra.mxu0 0.0
  %1572 = vmatprep.subr.mxu0 0.0
  %1573 = vmatpush2.msra.mxu0 0.0
  %1574 = vmatprep.subr.mxu0 0.0
  %1575 = vmatpush2.msra.mxu0 0.0
  %1576 = vmatprep.mubr.f32.mxu0 0.0
  %v1577 = vand.u32 %v410, 4294901760
  %v1578 = vsub.f32 %v410, %v1577
  %v1579 = vand.u32 %v1578, 4294901760
  %1580 = vmatmul.mubr.f32.gmra.mxu0 %v1579
  %v1581 = vpop.f32.mrf.mxu0
  %v1582 = vadd.f32 %v1488, %v1581
  %v1583 = vpop.f32.mrf.mxu0
  %v1584 = vadd.f32 %v1490, %v1583
  %1585 = vdwg.mxu0
  %1586 = vmatprep.subr.mxu0 0.0
  %1587 = vmatpush1.msra.mxu0 0.0
  %1588 = vmatprep.subr.mxu0 0.0
  %1589 = vmatpush1.msra.mxu0 0.0
  %1590 = vmatprep.subr.mxu0 0.0
  %1591 = vmatpush1.msra.mxu0 0.0
  %1592 = vmatprep.subr.mxu0 0.0
  %1593 = vmatpush1.msra.mxu0 0.0
  %1594 = vmatprep.subr.mxu0 0.0
  %1595 = vmatpush1.msra.mxu0 0.0
  %1596 = vmatprep.subr.mxu0 0.0
  %1597 = vmatpush1.msra.mxu0 0.0
  %v1598 = vand.u32 %v407, 4294901760
  %v1599 = vsub.f32 %v407, %v1598
  %v1600 = vand.u32 %v1599, 4294901760
  %1601 = vmatprep.subr.mxu0 %v1600
  %v1602 = vand.u32 %v406, 4294901760
  %v1603 = vsub.f32 %v406, %v1602
  %v1604 = vand.u32 %v1603, 4294901760
  %1605 = vmatpush1.msra.mxu0 %v1604
  %v1606 = vand.u32 %v403, 4294901760
  %v1607 = vsub.f32 %v403, %v1606
  %v1608 = vand.u32 %v1607, 4294901760
  %1609 = vmatprep.subr.mxu0 %v1608
  %v1610 = vand.u32 %v402, 4294901760
  %v1611 = vsub.f32 %v402, %v1610
  %v1612 = vand.u32 %v1611, 4294901760
  %1613 = vmatpush1.msra.mxu0 %v1612
  %v1614 = vand.u32 %v399, 4294901760
  %v1615 = vsub.f32 %v399, %v1614
  %v1616 = vand.u32 %v1615, 4294901760
  %1617 = vmatprep.subr.mxu0 %v1616
  %v1618 = vand.u32 %v398, 4294901760
  %v1619 = vsub.f32 %v398, %v1618
  %v1620 = vand.u32 %v1619, 4294901760
  %1621 = vmatpush1.msra.mxu0 %v1620
  %v1622 = vand.u32 %v395, 4294901760
  %v1623 = vsub.f32 %v395, %v1622
  %v1624 = vand.u32 %v1623, 4294901760
  %1625 = vmatprep.subr.mxu0 %v1624
  %v1626 = vand.u32 %v394, 4294901760
  %v1627 = vsub.f32 %v394, %v1626
  %v1628 = vand.u32 %v1627, 4294901760
  %1629 = vmatpush1.msra.mxu0 %v1628
  %v1630 = vand.u32 %v391, 4294901760
  %v1631 = vsub.f32 %v391, %v1630
  %v1632 = vand.u32 %v1631, 4294901760
  %1633 = vmatprep.subr.mxu0 %v1632
  %v1634 = vand.u32 %v390, 4294901760
  %v1635 = vsub.f32 %v390, %v1634
  %v1636 = vand.u32 %v1635, 4294901760
  %1637 = vmatpush1.msra.mxu0 %v1636
  %v1638 = vand.u32 %v387, 4294901760
  %v1639 = vsub.f32 %v387, %v1638
  %v1640 = vand.u32 %v1639, 4294901760
  %1641 = vmatprep.subr.mxu0 %v1640
  %v1642 = vand.u32 %v386, 4294901760
  %v1643 = vsub.f32 %v386, %v1642
  %v1644 = vand.u32 %v1643, 4294901760
  %1645 = vmatpush1.msra.mxu0 %v1644
  %v1646 = vand.u32 %v383, 4294901760
  %v1647 = vsub.f32 %v383, %v1646
  %v1648 = vand.u32 %v1647, 4294901760
  %1649 = vmatprep.subr.mxu0 %v1648
  %v1650 = vand.u32 %v382, 4294901760
  %v1651 = vsub.f32 %v382, %v1650
  %v1652 = vand.u32 %v1651, 4294901760
  %1653 = vmatpush1.msra.mxu0 %v1652
  %v1654 = vand.u32 %v379, 4294901760
  %v1655 = vsub.f32 %v379, %v1654
  %v1656 = vand.u32 %v1655, 4294901760
  %1657 = vmatprep.subr.mxu0 %v1656
  %v1658 = vand.u32 %v378, 4294901760
  %v1659 = vsub.f32 %v378, %v1658
  %v1660 = vand.u32 %v1659, 4294901760
  %1661 = vmatpush1.msra.mxu0 %v1660
  %v1662 = vand.u32 %v375, 4294901760
  %v1663 = vsub.f32 %v375, %v1662
  %v1664 = vand.u32 %v1663, 4294901760
  %1665 = vmatprep.subr.mxu0 %v1664
  %v1666 = vand.u32 %v374, 4294901760
  %v1667 = vsub.f32 %v374, %v1666
  %v1668 = vand.u32 %v1667, 4294901760
  %1669 = vmatpush1.msra.mxu0 %v1668
  %v1670 = vand.u32 %v371, 4294901760
  %v1671 = vsub.f32 %v371, %v1670
  %v1672 = vand.u32 %v1671, 4294901760
  %1673 = vmatprep.subr.mxu0 %v1672
  %v1674 = vand.u32 %v370, 4294901760
  %v1675 = vsub.f32 %v370, %v1674
  %v1676 = vand.u32 %v1675, 4294901760
  %1677 = vmatpush1.msra.mxu0 %v1676
  %1678 = vmatprep.subr.mxu0 0.0
  %1679 = vmatpush2.msra.mxu0 0.0
  %1680 = vmatprep.subr.mxu0 0.0
  %1681 = vmatpush2.msra.mxu0 0.0
  %1682 = vmatprep.subr.mxu0 0.0
  %1683 = vmatpush2.msra.mxu0 0.0
  %1684 = vmatprep.subr.mxu0 0.0
  %1685 = vmatpush2.msra.mxu0 0.0
  %1686 = vmatprep.subr.mxu0 0.0
  %1687 = vmatpush2.msra.mxu0 0.0
  %1688 = vmatprep.subr.mxu0 0.0
  %1689 = vmatpush2.msra.mxu0 0.0
  %1690 = vmatprep.subr.mxu0 0.0
  %1691 = vmatpush2.msra.mxu0 0.0
  %1692 = vmatprep.subr.mxu0 0.0
  %1693 = vmatpush2.msra.mxu0 0.0
  %1694 = vmatprep.subr.mxu0 0.0
  %1695 = vmatpush2.msra.mxu0 0.0
  %1696 = vmatprep.subr.mxu0 0.0
  %1697 = vmatpush2.msra.mxu0 0.0
  %1698 = vmatprep.subr.mxu0 0.0
  %1699 = vmatpush2.msra.mxu0 0.0
  %1700 = vmatprep.subr.mxu0 0.0
  %1701 = vmatpush2.msra.mxu0 0.0
  %1702 = vmatprep.subr.mxu0 0.0
  %1703 = vmatpush2.msra.mxu0 0.0
  %1704 = vmatprep.subr.mxu0 0.0
  %1705 = vmatpush2.msra.mxu0 0.0
  %1706 = vmatprep.subr.mxu0 0.0
  %1707 = vmatpush2.msra.mxu0 0.0
  %1708 = vmatprep.subr.mxu0 0.0
  %1709 = vmatpush2.msra.mxu0 0.0
  %1710 = vmatprep.mubr.f32.mxu0 0.0
  %v1711 = vand.u32 %v410, 4294901760
  %1712 = vmatmul.mubr.f32.gmra.mxu0 %v1711
  %v1713 = vpop.f32.mrf.mxu0
  %v1714 = vadd.f32 %v1582, %v1713
  %v1715 = vpop.f32.mrf.mxu0
  %v1716 = vadd.f32 %v1584, %v1715
  %1717 = vdwg.mxu0
  %1718 = vmatprep.subr.mxu0 0.0
  %1719 = vmatpush1.msra.mxu0 0.0
  %1720 = vmatprep.subr.mxu0 0.0
  %1721 = vmatpush1.msra.mxu0 0.0
  %1722 = vmatprep.subr.mxu0 0.0
  %1723 = vmatpush1.msra.mxu0 0.0
  %1724 = vmatprep.subr.mxu0 0.0
  %1725 = vmatpush1.msra.mxu0 0.0
  %1726 = vmatprep.subr.mxu0 0.0
  %1727 = vmatpush1.msra.mxu0 0.0
  %1728 = vmatprep.subr.mxu0 0.0
  %1729 = vmatpush1.msra.mxu0 0.0
  %v1730 = vand.u32 %v407, 4294901760
  %1731 = vmatprep.subr.mxu0 %v1730
  %v1732 = vand.u32 %v406, 4294901760
  %1733 = vmatpush1.msra.mxu0 %v1732
  %v1734 = vand.u32 %v403, 4294901760
  %1735 = vmatprep.subr.mxu0 %v1734
  %v1736 = vand.u32 %v402, 4294901760
  %1737 = vmatpush1.msra.mxu0 %v1736
  %v1738 = vand.u32 %v399, 4294901760
  %1739 = vmatprep.subr.mxu0 %v1738
  %v1740 = vand.u32 %v398, 4294901760
  %1741 = vmatpush1.msra.mxu0 %v1740
  %v1742 = vand.u32 %v395, 4294901760
  %1743 = vmatprep.subr.mxu0 %v1742
  %v1744 = vand.u32 %v394, 4294901760
  %1745 = vmatpush1.msra.mxu0 %v1744
  %v1746 = vand.u32 %v391, 4294901760
  %1747 = vmatprep.subr.mxu0 %v1746
  %v1748 = vand.u32 %v390, 4294901760
  %1749 = vmatpush1.msra.mxu0 %v1748
  %v1750 = vand.u32 %v387, 4294901760
  %1751 = vmatprep.subr.mxu0 %v1750
  %v1752 = vand.u32 %v386, 4294901760
  %1753 = vmatpush1.msra.mxu0 %v1752
  %v1754 = vand.u32 %v383, 4294901760
  %1755 = vmatprep.subr.mxu0 %v1754
  %v1756 = vand.u32 %v382, 4294901760
  %1757 = vmatpush1.msra.mxu0 %v1756
  %v1758 = vand.u32 %v379, 4294901760
  %1759 = vmatprep.subr.mxu0 %v1758
  %v1760 = vand.u32 %v378, 4294901760
  %1761 = vmatpush1.msra.mxu0 %v1760
  %v1762 = vand.u32 %v375, 4294901760
  %1763 = vmatprep.subr.mxu0 %v1762
  %v1764 = vand.u32 %v374, 4294901760
  %1765 = vmatpush1.msra.mxu0 %v1764
  %v1766 = vand.u32 %v371, 4294901760
  %1767 = vmatprep.subr.mxu0 %v1766
  %v1768 = vand.u32 %v370, 4294901760
  %1769 = vmatpush1.msra.mxu0 %v1768
  %1770 = vmatprep.subr.mxu0 0.0
  %1771 = vmatpush2.msra.mxu0 0.0
  %1772 = vmatprep.subr.mxu0 0.0
  %1773 = vmatpush2.msra.mxu0 0.0
  %1774 = vmatprep.subr.mxu0 0.0
  %1775 = vmatpush2.msra.mxu0 0.0
  %1776 = vmatprep.subr.mxu0 0.0
  %1777 = vmatpush2.msra.mxu0 0.0
  %1778 = vmatprep.subr.mxu0 0.0
  %1779 = vmatpush2.msra.mxu0 0.0
  %1780 = vmatprep.subr.mxu0 0.0
  %1781 = vmatpush2.msra.mxu0 0.0
  %1782 = vmatprep.subr.mxu0 0.0
  %1783 = vmatpush2.msra.mxu0 0.0
  %1784 = vmatprep.subr.mxu0 0.0
  %1785 = vmatpush2.msra.mxu0 0.0
  %1786 = vmatprep.subr.mxu0 0.0
  %1787 = vmatpush2.msra.mxu0 0.0
  %1788 = vmatprep.subr.mxu0 0.0
  %1789 = vmatpush2.msra.mxu0 0.0
  %1790 = vmatprep.subr.mxu0 0.0
  %1791 = vmatpush2.msra.mxu0 0.0
  %1792 = vmatprep.subr.mxu0 0.0
  %1793 = vmatpush2.msra.mxu0 0.0
  %1794 = vmatprep.subr.mxu0 0.0
  %1795 = vmatpush2.msra.mxu0 0.0
  %1796 = vmatprep.subr.mxu0 0.0
  %1797 = vmatpush2.msra.mxu0 0.0
  %1798 = vmatprep.subr.mxu0 0.0
  %1799 = vmatpush2.msra.mxu0 0.0
  %1800 = vmatprep.subr.mxu0 0.0
  %1801 = vmatpush2.msra.mxu0 0.0
  %1802 = vmatprep.mubr.f32.mxu0 0.0
  %v1803 = vand.u32 %v410, 4294901760
  %1804 = vmatmul.mubr.f32.gmra.mxu0 %v1803
  %v1805 = vpop.f32.mrf.mxu0
  %v1806 = vadd.f32 %v1714, %v1805
  %v1807 = vpop.f32.mrf.mxu0
  %v1808 = vadd.f32 %v1716, %v1807
  %1809 = vdwg.mxu0
  %v1810 = vld [vmem:[%s4] sm:$0xff]
  %v1811 = vld [vmem:[%s5] sm:$0xff]
  %v1812 = vadd.f32 %v1107, %v1109
  %v1813 = vadd.f32 %v1812, %v1806
  %v1814 = vadd.f32 %v1813, %v1808
  %1815 = vadd.xlane.f32.xlu0 %v1814
  %v1816 = vpop.xlane.xlu0 %1815
  %v1817 = vmul.f32 %v1107, %v1107
  %v1818 = vmul.f32 %v1109, %v1109
  %v1819 = vmul.f32 %v1806, %v1806
  %v1820 = vmul.f32 %v1808, %v1808
  %v1821 = vadd.f32 %v1817, %v1818
  %v1822 = vadd.f32 %v1821, %v1819
  %v1823 = vadd.f32 %v1822, %v1820
  %1824 = vadd.xlane.f32.xlu0 %v1823
  %v1825 = vpop.xlane.xlu0 %1824
  %v1826 = vmul.f32 %v1816, 0.001953125
  %v1827 = vmul.f32 %v1825, 0.001953125
  %v1828 = vmul.f32 %v1826, %v1826
  %v1829 = vsub.f32 %v1827, %v1828
  %v1830 = vadd.f32 %v1829, 1e-05
  %v1831 = vrsqrt.pop %v1830
  %v1832 = vmul.f32 %v1810, %v1831
  %v1833 = vmul.f32 %v1826, %v1832
  %v1834 = vsub.f32 %v1811, %v1833
  %1836 = vset.pattern.permute.xlu0 0
  %1837 = vperm.xlu0 %1836, %v1832
  %v1838 = vpop.permute.xlu0 %1837
  %v1840 = vmul.f32 %v1107, %v1838
  %v1841 = vmul.f32 %v1109, %v1838
  %v1842 = vmul.f32 %v1806, %v1838
  %v1843 = vmul.f32 %v1808, %v1838
  %1845 = vset.pattern.permute.xlu0 0
  %1846 = vperm.xlu0 %1845, %v1834
  %v1847 = vpop.permute.xlu0 %1846
  %v1849 = vadd.f32 %v1840, %v1847
  %v1850 = vadd.f32 %v1841, %v1847
  %v1851 = vadd.f32 %v1842, %v1847
  %v1852 = vadd.f32 %v1843, %v1847
  %v1853 = vmax.f32 %v1849, 0.0
  %v1854 = vmax.f32 %v1850, 0.0
  %v1855 = vmax.f32 %v1851, 0.0
  %v1856 = vmax.f32 %v1852, 0.0
  %1857 = vrot.lane.b32.xlu0 %v1853, 17
  %v1858 = vpop.permute.xlu0 %1857
  %1859 = vrot.lane.b32.xlu0 %v1854, 17
  %v1860 = vpop.permute.xlu0 %1859
  %1861 = vrot.lane.b32.xlu0 %v1855, 17
  %v1862 = vpop.permute.xlu0 %1861
  %1863 = vrot.lane.b32.xlu0 %v1856, 17
  %v1864 = vpop.permute.xlu0 %1863
  %v1865 = vsel %vm55, %v1862, %v1864
  %v1866 = vsel %vm55, %v1860, %v1862
  %v1867 = vsel %vm55, %v1858, %v1860
  %v1868 = vsel %vm55, %v1864, %v1858
  %v1869 = vmul.f32 %v1868, %v63
  %v1870 = vmul.f32 %v1867, %v67
  %v1871 = vmul.f32 %v1866, %v71
  %v1872 = vmul.f32 %v1865, %v75
  %1873 = vst [vmem:[#allocation2] sm:$0xff] %v1869
  %1874 = vst [vmem:[#allocation2 + $0x8] sm:$0xff] %v1870
  %1875 = vst [vmem:[#allocation2 + $0x10] sm:$0xff] %v1871
  %1876 = vst [vmem:[#allocation2 + $0x18] sm:$0xff] %v1872
  %1877 = vrot.lane.b32.xlu0 %v1853, 16
  %v1878 = vpop.permute.xlu0 %1877
  %1879 = vrot.lane.b32.xlu0 %v1854, 16
  %v1880 = vpop.permute.xlu0 %1879
  %1881 = vrot.lane.b32.xlu0 %v1855, 16
  %v1882 = vpop.permute.xlu0 %1881
  %1883 = vrot.lane.b32.xlu0 %v1856, 16
  %v1884 = vpop.permute.xlu0 %1883
  %v1885 = vsel %vm92, %v1882, %v1884
  %v1886 = vsel %vm92, %v1880, %v1882
  %v1887 = vsel %vm92, %v1878, %v1880
  %v1888 = vsel %vm92, %v1884, %v1878
  %v1889 = vmul.f32 %v1888, %v100
  %v1890 = vmul.f32 %v1887, %v104
  %v1891 = vmul.f32 %v1886, %v108
  %v1892 = vmul.f32 %v1885, %v112
  %1893 = vst [vmem:[#allocation2 + $0x20] sm:$0xff] %v1889
  %1894 = vst [vmem:[#allocation2 + $0x28] sm:$0xff] %v1890
  %1895 = vst [vmem:[#allocation2 + $0x30] sm:$0xff] %v1891
  %1896 = vst [vmem:[#allocation2 + $0x38] sm:$0xff] %v1892
  %1897 = vrot.lane.b32.xlu0 %v1853, 15
  %v1898 = vpop.permute.xlu0 %1897
  %1899 = vrot.lane.b32.xlu0 %v1854, 15
  %v1900 = vpop.permute.xlu0 %1899
  %1901 = vrot.lane.b32.xlu0 %v1855, 15
  %v1902 = vpop.permute.xlu0 %1901
  %1903 = vrot.lane.b32.xlu0 %v1856, 15
  %v1904 = vpop.permute.xlu0 %1903
  %v1905 = vsel %vm129, %v1902, %v1904
  %v1906 = vsel %vm129, %v1900, %v1902
  %v1907 = vsel %vm129, %v1898, %v1900
  %v1908 = vsel %vm129, %v1904, %v1898
  %v1909 = vmul.f32 %v1908, %v137
  %v1910 = vmul.f32 %v1907, %v141
  %v1911 = vmul.f32 %v1906, %v145
  %v1912 = vmul.f32 %v1905, %v149
  %1913 = vst [vmem:[#allocation2 + $0x40] sm:$0xff] %v1909
  %1914 = vst [vmem:[#allocation2 + $0x48] sm:$0xff] %v1910
  %1915 = vst [vmem:[#allocation2 + $0x50] sm:$0xff] %v1911
  %1916 = vst [vmem:[#allocation2 + $0x58] sm:$0xff] %v1912
  %1917 = vrot.lane.b32.xlu0 %v1853, 1
  %v1918 = vpop.permute.xlu0 %1917
  %1919 = vrot.lane.b32.xlu0 %v1854, 1
  %v1920 = vpop.permute.xlu0 %1919
  %1921 = vrot.lane.b32.xlu0 %v1855, 1
  %v1922 = vpop.permute.xlu0 %1921
  %1923 = vrot.lane.b32.xlu0 %v1856, 1
  %v1924 = vpop.permute.xlu0 %1923
  %v1925 = vsel %vm166, %v1922, %v1924
  %v1926 = vsel %vm166, %v1920, %v1922
  %v1927 = vsel %vm166, %v1918, %v1920
  %v1928 = vsel %vm166, %v1924, %v1918
  %v1929 = vmul.f32 %v1928, %v174
  %v1930 = vmul.f32 %v1927, %v178
  %v1931 = vmul.f32 %v1926, %v182
  %v1932 = vmul.f32 %v1925, %v186
  %1933 = vst [vmem:[#allocation2 + $0x60] sm:$0xff] %v1929
  %1934 = vst [vmem:[#allocation2 + $0x68] sm:$0xff] %v1930
  %1935 = vst [vmem:[#allocation2 + $0x70] sm:$0xff] %v1931
  %1936 = vst [vmem:[#allocation2 + $0x78] sm:$0xff] %v1932
  %v1937 = vmul.f32 %v1853, %v198
  %v1938 = vmul.f32 %v1854, %v202
  %v1939 = vmul.f32 %v1855, %v206
  %v1940 = vmul.f32 %v1856, %v210
  %1941 = vst [vmem:[#allocation2 + $0x80] sm:$0xff] %v1937
  %1942 = vst [vmem:[#allocation2 + $0x88] sm:$0xff] %v1938
  %1943 = vst [vmem:[#allocation2 + $0x90] sm:$0xff] %v1939
  %1944 = vst [vmem:[#allocation2 + $0x98] sm:$0xff] %v1940
  %1945 = vrot.lane.b32.xlu0 %v1853, 127
  %v1946 = vpop.permute.xlu0 %1945
  %1947 = vrot.lane.b32.xlu0 %v1854, 127
  %v1948 = vpop.permute.xlu0 %1947
  %1949 = vrot.lane.b32.xlu0 %v1855, 127
  %v1950 = vpop.permute.xlu0 %1949
  %1951 = vrot.lane.b32.xlu0 %v1856, 127
  %v1952 = vpop.permute.xlu0 %1951
  %v1953 = vsel %vm227, %v1950, %v1952
  %v1954 = vsel %vm227, %v1948, %v1950
  %v1955 = vsel %vm227, %v1946, %v1948
  %v1956 = vsel %vm227, %v1952, %v1946
  %v1957 = vmul.f32 %v1955, %v235
  %v1958 = vmul.f32 %v1954, %v239
  %v1959 = vmul.f32 %v1953, %v243
  %v1960 = vmul.f32 %v1956, %v247
  %1961 = vst [vmem:[#allocation2 + $0xa0] sm:$0xff] %v1957
  %1962 = vst [vmem:[#allocation2 + $0xa8] sm:$0xff] %v1958
  %1963 = vst [vmem:[#allocation2 + $0xb0] sm:$0xff] %v1959
  %1964 = vst [vmem:[#allocation2 + $0xb8] sm:$0xff] %v1960
  %1965 = vrot.lane.b32.xlu0 %v1853, 113
  %v1966 = vpop.permute.xlu0 %1965
  %1967 = vrot.lane.b32.xlu0 %v1854, 113
  %v1968 = vpop.permute.xlu0 %1967
  %1969 = vrot.lane.b32.xlu0 %v1855, 113
  %v1970 = vpop.permute.xlu0 %1969
  %1971 = vrot.lane.b32.xlu0 %v1856, 113
  %v1972 = vpop.permute.xlu0 %1971
  %v1973 = vsel %vm264, %v1970, %v1972
  %v1974 = vsel %vm264, %v1968, %v1970
  %v1975 = vsel %vm264, %v1966, %v1968
  %v1976 = vsel %vm264, %v1972, %v1966
  %v1977 = vmul.f32 %v1975, %v272
  %v1978 = vmul.f32 %v1974, %v276
  %v1979 = vmul.f32 %v1973, %v280
  %v1980 = vmul.f32 %v1976, %v284
  %1981 = vst [vmem:[#allocation2 + $0xc0] sm:$0xff] %v1977
  %1982 = vst [vmem:[#allocation2 + $0xc8] sm:$0xff] %v1978
  %1983 = vst [vmem:[#allocation2 + $0xd0] sm:$0xff] %v1979
  %1984 = vst [vmem:[#allocation2 + $0xd8] sm:$0xff] %v1980
  %1985 = vrot.lane.b32.xlu0 %v1853, 112
  %v1986 = vpop.permute.xlu0 %1985
  %1987 = vrot.lane.b32.xlu0 %v1854, 112
  %v1988 = vpop.permute.xlu0 %1987
  %1989 = vrot.lane.b32.xlu0 %v1855, 112
  %v1990 = vpop.permute.xlu0 %1989
  %1991 = vrot.lane.b32.xlu0 %v1856, 112
  %v1992 = vpop.permute.xlu0 %1991
  %v1993 = vsel %vm301, %v1990, %v1992
  %v1994 = vsel %vm301, %v1988, %v1990
  %v1995 = vsel %vm301, %v1986, %v1988
  %v1996 = vsel %vm301, %v1992, %v1986
  %v1997 = vmul.f32 %v1995, %v309
  %v1998 = vmul.f32 %v1994, %v313
  %v1999 = vmul.f32 %v1993, %v317
  %v2000 = vmul.f32 %v1996, %v321
  %2001 = vst [vmem:[#allocation2 + $0xe0] sm:$0xff] %v1997
  %2002 = vst [vmem:[#allocation2 + $0xe8] sm:$0xff] %v1998
  %2003 = vst [vmem:[#allocation2 + $0xf0] sm:$0xff] %v1999
  %2004 = vst [vmem:[#allocation2 + $0xf8] sm:$0xff] %v2000
  %2005 = vrot.lane.b32.xlu0 %v1853, 111
  %v2006 = vpop.permute.xlu0 %2005
  %2007 = vrot.lane.b32.xlu0 %v1854, 111
  %v2008 = vpop.permute.xlu0 %2007
  %2009 = vrot.lane.b32.xlu0 %v1855, 111
  %v2010 = vpop.permute.xlu0 %2009
  %2011 = vrot.lane.b32.xlu0 %v1856, 111
  %v2012 = vpop.permute.xlu0 %2011
  %v2013 = vsel %vm338, %v2010, %v2012
  %v2014 = vsel %vm338, %v2008, %v2010
  %v2015 = vsel %vm338, %v2006, %v2008
  %v2016 = vsel %vm338, %v2012, %v2006
  %v2017 = vmul.f32 %v2015, %v346
  %v2018 = vmul.f32 %v2014, %v350
  %v2019 = vmul.f32 %v2013, %v354
  %v2020 = vmul.f32 %v2016, %v358
  %2021 = vst [vmem:[#allocation2 + $0x100] sm:$0xff] %v2017
  %2022 = vst [vmem:[#allocation2 + $0x108] sm:$0xff] %v2018
  %2023 = vst [vmem:[#allocation2 + $0x110] sm:$0xff] %v2019
  %2024 = vst [vmem:[#allocation2 + $0x118] sm:$0xff] %v2020
  %v2025 = vld [vmem:[%s3] sm:$0xff]
  %v2026 = vld [vmem:[%s3 + $0x8] sm:$0xff]
  %v2027 = vld [vmem:[#allocation2] sm:$0xff]
  %v2028 = vld [vmem:[#allocation2 + $0x8] sm:$0xff]
  %v2029 = vld [vmem:[#allocation2 + $0x10] sm:$0xff]
  %v2030 = vld [vmem:[#allocation2 + $0x18] sm:$0xff]
  %v2031 = vld [vmem:[#allocation2 + $0x20] sm:$0xff]
  %v2032 = vld [vmem:[#allocation2 + $0x28] sm:$0xff]
  %v2033 = vld [vmem:[#allocation2 + $0x30] sm:$0xff]
  %v2034 = vld [vmem:[#allocation2 + $0x38] sm:$0xff]
  %v2035 = vld [vmem:[#allocation2 + $0x40] sm:$0xff]
  %v2036 = vld [vmem:[#allocation2 + $0x48] sm:$0xff]
  %v2037 = vld [vmem:[#allocation2 + $0x50] sm:$0xff]
  %v2038 = vld [vmem:[#allocation2 + $0x58] sm:$0xff]
  %v2039 = vld [vmem:[#allocation2 + $0x60] sm:$0xff]
  %v2040 = vld [vmem:[#allocation2 + $0x68] sm:$0xff]
  %v2041 = vld [vmem:[#allocation2 + $0x70] sm:$0xff]
  %v2042 = vld [vmem:[#allocation2 + $0x78] sm:$0xff]
  %v2043 = vld [vmem:[#allocation2 + $0x80] sm:$0xff]
  %v2044 = vld [vmem:[#allocation2 + $0x88] sm:$0xff]
  %v2045 = vld [vmem:[#allocation2 + $0x90] sm:$0xff]
  %v2046 = vld [vmem:[#allocation2 + $0x98] sm:$0xff]
  %v2047 = vld [vmem:[#allocation2 + $0xa0] sm:$0xff]
  %v2048 = vld [vmem:[#allocation2 + $0xa8] sm:$0xff]
  %v2049 = vld [vmem:[#allocation2 + $0xb0] sm:$0xff]
  %v2050 = vld [vmem:[#allocation2 + $0xb8] sm:$0xff]
  %v2051 = vld [vmem:[#allocation2 + $0xc0] sm:$0xff]
  %v2052 = vld [vmem:[#allocation2 + $0xc8] sm:$0xff]
  %v2053 = vld [vmem:[#allocation2 + $0xd0] sm:$0xff]
  %v2054 = vld [vmem:[#allocation2 + $0xd8] sm:$0xff]
  %v2055 = vld [vmem:[#allocation2 + $0xe0] sm:$0xff]
  %v2056 = vld [vmem:[#allocation2 + $0xe8] sm:$0xff]
  %v2057 = vld [vmem:[#allocation2 + $0xf0] sm:$0xff]
  %v2058 = vld [vmem:[#allocation2 + $0xf8] sm:$0xff]
  %v2059 = vld [vmem:[#allocation2 + $0x100] sm:$0xff]
  %v2060 = vld [vmem:[#allocation2 + $0x108] sm:$0xff]
  %v2061 = vld [vmem:[#allocation2 + $0x110] sm:$0xff]
  %v2062 = vld [vmem:[#allocation2 + $0x118] sm:$0xff]
  %v2063 = vld [vmem:[#allocation2 + $0x120] sm:$0xff]
  %v2064 = vld [vmem:[#allocation2 + $0x128] sm:$0xff]
  %v2065 = vld [vmem:[#allocation2 + $0x130] sm:$0xff]
  %v2066 = vld [vmem:[#allocation2 + $0x138] sm:$0xff]
  %v2068 = vsel %vm408, %v2025, 0
  %v2071 = vsel %vm408, %v2026, 0
  %2073 = vmatprep.subr.mxu0 0.0
  %2074 = vmatpush1.msra.mxu0 0.0
  %2075 = vmatprep.subr.mxu0 0.0
  %2076 = vmatpush1.msra.mxu0 0.0
  %2077 = vmatprep.subr.mxu0 0.0
  %2078 = vmatpush1.msra.mxu0 0.0
  %2079 = vmatprep.subr.mxu0 0.0
  %2080 = vmatpush1.msra.mxu0 0.0
  %2081 = vmatprep.subr.mxu0 0.0
  %2082 = vmatpush1.msra.mxu0 0.0
  %2083 = vmatprep.subr.mxu0 0.0
  %2084 = vmatpush1.msra.mxu0 0.0
  %v2085 = vand.u32 %v2064, 4294901760
  %2086 = vmatprep.subr.mxu0 %v2085
  %v2087 = vand.u32 %v2063, 4294901760
  %2088 = vmatpush1.msra.mxu0 %v2087
  %v2089 = vand.u32 %v2060, 4294901760
  %2090 = vmatprep.subr.mxu0 %v2089
  %v2091 = vand.u32 %v2059, 4294901760
  %2092 = vmatpush1.msra.mxu0 %v2091
  %v2093 = vand.u32 %v2056, 4294901760
  %2094 = vmatprep.subr.mxu0 %v2093
  %v2095 = vand.u32 %v2055, 4294901760
  %2096 = vmatpush1.msra.mxu0 %v2095
  %v2097 = vand.u32 %v2052, 4294901760
  %2098 = vmatprep.subr.mxu0 %v2097
  %v2099 = vand.u32 %v2051, 4294901760
  %2100 = vmatpush1.msra.mxu0 %v2099
  %v2101 = vand.u32 %v2048, 4294901760
  %2102 = vmatprep.subr.mxu0 %v2101
  %v2103 = vand.u32 %v2047, 4294901760
  %2104 = vmatpush1.msra.mxu0 %v2103
  %v2105 = vand.u32 %v2044, 4294901760
  %2106 = vmatprep.subr.mxu0 %v2105
  %v2107 = vand.u32 %v2043, 4294901760
  %2108 = vmatpush1.msra.mxu0 %v2107
  %v2109 = vand.u32 %v2040, 4294901760
  %2110 = vmatprep.subr.mxu0 %v2109
  %v2111 = vand.u32 %v2039, 4294901760
  %2112 = vmatpush1.msra.mxu0 %v2111
  %v2113 = vand.u32 %v2036, 4294901760
  %2114 = vmatprep.subr.mxu0 %v2113
  %v2115 = vand.u32 %v2035, 4294901760
  %2116 = vmatpush1.msra.mxu0 %v2115
  %v2117 = vand.u32 %v2032, 4294901760
  %2118 = vmatprep.subr.mxu0 %v2117
  %v2119 = vand.u32 %v2031, 4294901760
  %2120 = vmatpush1.msra.mxu0 %v2119
  %v2121 = vand.u32 %v2028, 4294901760
  %2122 = vmatprep.subr.mxu0 %v2121
  %v2123 = vand.u32 %v2027, 4294901760
  %2124 = vmatpush1.msra.mxu0 %v2123
  %2125 = vmatprep.subr.mxu0 0.0
  %2126 = vmatpush2.msra.mxu0 0.0
  %2127 = vmatprep.subr.mxu0 0.0
  %2128 = vmatpush2.msra.mxu0 0.0
  %2129 = vmatprep.subr.mxu0 0.0
  %2130 = vmatpush2.msra.mxu0 0.0
  %2131 = vmatprep.subr.mxu0 0.0
  %2132 = vmatpush2.msra.mxu0 0.0
  %2133 = vmatprep.subr.mxu0 0.0
  %2134 = vmatpush2.msra.mxu0 0.0
  %2135 = vmatprep.subr.mxu0 0.0
  %2136 = vmatpush2.msra.mxu0 0.0
  %2137 = vmatprep.subr.mxu0 0.0
  %2138 = vmatpush2.msra.mxu0 0.0
  %2139 = vmatprep.subr.mxu0 0.0
  %2140 = vmatpush2.msra.mxu0 0.0
  %2141 = vmatprep.subr.mxu0 0.0
  %2142 = vmatpush2.msra.mxu0 0.0
  %2143 = vmatprep.subr.mxu0 0.0
  %2144 = vmatpush2.msra.mxu0 0.0
  %2145 = vmatprep.subr.mxu0 0.0
  %2146 = vmatpush2.msra.mxu0 0.0
  %2147 = vmatprep.subr.mxu0 0.0
  %2148 = vmatpush2.msra.mxu0 0.0
  %2149 = vmatprep.subr.mxu0 0.0
  %2150 = vmatpush2.msra.mxu0 0.0
  %2151 = vmatprep.subr.mxu0 0.0
  %2152 = vmatpush2.msra.mxu0 0.0
  %2153 = vmatprep.subr.mxu0 0.0
  %2154 = vmatpush2.msra.mxu0 0.0
  %2155 = vmatprep.subr.mxu0 0.0
  %2156 = vmatpush2.msra.mxu0 0.0
  %2157 = vmatprep.mubr.f32.mxu0 0.0
  %v2158 = vand.u32 %v2068, 4294901760
  %v2159 = vsub.f32 %v2068, %v2158
  %v2160 = vand.u32 %v2159, 4294901760
  %v2161 = vsub.f32 %v2159, %v2160
  %v2162 = vand.u32 %v2161, 4294901760
  %2163 = vmatmul.mubr.f32.gmra.mxu0 %v2162
  %v2164 = vpop.f32.mrf.mxu0
  %v2165 = vadd.f32 0.0, %v2164
  %v2166 = vpop.f32.mrf.mxu0
  %v2167 = vadd.f32 0.0, %v2166
  %2168 = vmatprep.mubr.f32.mxu0 0.0
  %v2169 = vand.u32 %v2071, 4294901760
  %v2170 = vsub.f32 %v2071, %v2169
  %v2171 = vand.u32 %v2170, 4294901760
  %v2172 = vsub.f32 %v2170, %v2171
  %v2173 = vand.u32 %v2172, 4294901760
  %2174 = vmatmul.mubr.f32.gmra.mxu0 %v2173
  %v2175 = vpop.f32.mrf.mxu0
  %v2176 = vadd.f32 0.0, %v2175
  %v2177 = vpop.f32.mrf.mxu0
  %v2178 = vadd.f32 0.0, %v2177
  %2179 = vdwg.mxu0
  %2180 = vmatprep.subr.mxu0 0.0
  %2181 = vmatpush1.msra.mxu0 0.0
  %2182 = vmatprep.subr.mxu0 0.0
  %2183 = vmatpush1.msra.mxu0 0.0
  %2184 = vmatprep.subr.mxu0 0.0
  %2185 = vmatpush1.msra.mxu0 0.0
  %2186 = vmatprep.subr.mxu0 0.0
  %2187 = vmatpush1.msra.mxu0 0.0
  %2188 = vmatprep.subr.mxu0 0.0
  %2189 = vmatpush1.msra.mxu0 0.0
  %2190 = vmatprep.subr.mxu0 0.0
  %2191 = vmatpush1.msra.mxu0 0.0
  %v2192 = vand.u32 %v2064, 4294901760
  %v2193 = vsub.f32 %v2064, %v2192
  %v2194 = vand.u32 %v2193, 4294901760
  %v2195 = vsub.f32 %v2193, %v2194
  %v2196 = vand.u32 %v2195, 4294901760
  %2197 = vmatprep.subr.mxu0 %v2196
  %v2198 = vand.u32 %v2063, 4294901760
  %v2199 = vsub.f32 %v2063, %v2198
  %v2200 = vand.u32 %v2199, 4294901760
  %v2201 = vsub.f32 %v2199, %v2200
  %v2202 = vand.u32 %v2201, 4294901760
  %2203 = vmatpush1.msra.mxu0 %v2202
  %v2204 = vand.u32 %v2060, 4294901760
  %v2205 = vsub.f32 %v2060, %v2204
  %v2206 = vand.u32 %v2205, 4294901760
  %v2207 = vsub.f32 %v2205, %v2206
  %v2208 = vand.u32 %v2207, 4294901760
  %2209 = vmatprep.subr.mxu0 %v2208
  %v2210 = vand.u32 %v2059, 4294901760
  %v2211 = vsub.f32 %v2059, %v2210
  %v2212 = vand.u32 %v2211, 4294901760
  %v2213 = vsub.f32 %v2211, %v2212
  %v2214 = vand.u32 %v2213, 4294901760
  %2215 = vmatpush1.msra.mxu0 %v2214
  %v2216 = vand.u32 %v2056, 4294901760
  %v2217 = vsub.f32 %v2056, %v2216
  %v2218 = vand.u32 %v2217, 4294901760
  %v2219 = vsub.f32 %v2217, %v2218
  %v2220 = vand.u32 %v2219, 4294901760
  %2221 = vmatprep.subr.mxu0 %v2220
  %v2222 = vand.u32 %v2055, 4294901760
  %v2223 = vsub.f32 %v2055, %v2222
  %v2224 = vand.u32 %v2223, 4294901760
  %v2225 = vsub.f32 %v2223, %v2224
  %v2226 = vand.u32 %v2225, 4294901760
  %2227 = vmatpush1.msra.mxu0 %v2226
  %v2228 = vand.u32 %v2052, 4294901760
  %v2229 = vsub.f32 %v2052, %v2228
  %v2230 = vand.u32 %v2229, 4294901760
  %v2231 = vsub.f32 %v2229, %v2230
  %v2232 = vand.u32 %v2231, 4294901760
  %2233 = vmatprep.subr.mxu0 %v2232
  %v2234 = vand.u32 %v2051, 4294901760
  %v2235 = vsub.f32 %v2051, %v2234
  %v2236 = vand.u32 %v2235, 4294901760
  %v2237 = vsub.f32 %v2235, %v2236
  %v2238 = vand.u32 %v2237, 4294901760
  %2239 = vmatpush1.msra.mxu0 %v2238
  %v2240 = vand.u32 %v2048, 4294901760
  %v2241 = vsub.f32 %v2048, %v2240
  %v2242 = vand.u32 %v2241, 4294901760
  %v2243 = vsub.f32 %v2241, %v2242
  %v2244 = vand.u32 %v2243, 4294901760
  %2245 = vmatprep.subr.mxu0 %v2244
  %v2246 = vand.u32 %v2047, 4294901760
  %v2247 = vsub.f32 %v2047, %v2246
  %v2248 = vand.u32 %v2247, 4294901760
  %v2249 = vsub.f32 %v2247, %v2248
  %v2250 = vand.u32 %v2249, 4294901760
  %2251 = vmatpush1.msra.mxu0 %v2250
  %v2252 = vand.u32 %v2044, 4294901760
  %v2253 = vsub.f32 %v2044, %v2252
  %v2254 = vand.u32 %v2253, 4294901760
  %v2255 = vsub.f32 %v2253, %v2254
  %v2256 = vand.u32 %v2255, 4294901760
  %2257 = vmatprep.subr.mxu0 %v2256
  %v2258 = vand.u32 %v2043, 4294901760
  %v2259 = vsub.f32 %v2043, %v2258
  %v2260 = vand.u32 %v2259, 4294901760
  %v2261 = vsub.f32 %v2259, %v2260
  %v2262 = vand.u32 %v2261, 4294901760
  %2263 = vmatpush1.msra.mxu0 %v2262
  %v2264 = vand.u32 %v2040, 4294901760
  %v2265 = vsub.f32 %v2040, %v2264
  %v2266 = vand.u32 %v2265, 4294901760
  %v2267 = vsub.f32 %v2265, %v2266
  %v2268 = vand.u32 %v2267, 4294901760
  %2269 = vmatprep.subr.mxu0 %v2268
  %v2270 = vand.u32 %v2039, 4294901760
  %v2271 = vsub.f32 %v2039, %v2270
  %v2272 = vand.u32 %v2271, 4294901760
  %v2273 = vsub.f32 %v2271, %v2272
  %v2274 = vand.u32 %v2273, 4294901760
  %2275 = vmatpush1.msra.mxu0 %v2274
  %v2276 = vand.u32 %v2036, 4294901760
  %v2277 = vsub.f32 %v2036, %v2276
  %v2278 = vand.u32 %v2277, 4294901760
  %v2279 = vsub.f32 %v2277, %v2278
  %v2280 = vand.u32 %v2279, 4294901760
  %2281 = vmatprep.subr.mxu0 %v2280
  %v2282 = vand.u32 %v2035, 4294901760
  %v2283 = vsub.f32 %v2035, %v2282
  %v2284 = vand.u32 %v2283, 4294901760
  %v2285 = vsub.f32 %v2283, %v2284
  %v2286 = vand.u32 %v2285, 4294901760
  %2287 = vmatpush1.msra.mxu0 %v2286
  %v2288 = vand.u32 %v2032, 4294901760
  %v2289 = vsub.f32 %v2032, %v2288
  %v2290 = vand.u32 %v2289, 4294901760
  %v2291 = vsub.f32 %v2289, %v2290
  %v2292 = vand.u32 %v2291, 4294901760
  %2293 = vmatprep.subr.mxu0 %v2292
  %v2294 = vand.u32 %v2031, 4294901760
  %v2295 = vsub.f32 %v2031, %v2294
  %v2296 = vand.u32 %v2295, 4294901760
  %v2297 = vsub.f32 %v2295, %v2296
  %v2298 = vand.u32 %v2297, 4294901760
  %2299 = vmatpush1.msra.mxu0 %v2298
  %v2300 = vand.u32 %v2028, 4294901760
  %v2301 = vsub.f32 %v2028, %v2300
  %v2302 = vand.u32 %v2301, 4294901760
  %v2303 = vsub.f32 %v2301, %v2302
  %v2304 = vand.u32 %v2303, 4294901760
  %2305 = vmatprep.subr.mxu0 %v2304
  %v2306 = vand.u32 %v2027, 4294901760
  %v2307 = vsub.f32 %v2027, %v2306
  %v2308 = vand.u32 %v2307, 4294901760
  %v2309 = vsub.f32 %v2307, %v2308
  %v2310 = vand.u32 %v2309, 4294901760
  %2311 = vmatpush1.msra.mxu0 %v2310
  %2312 = vmatprep.subr.mxu0 0.0
  %2313 = vmatpush2.msra.mxu0 0.0
  %2314 = vmatprep.subr.mxu0 0.0
  %2315 = vmatpush2.msra.mxu0 0.0
  %2316 = vmatprep.subr.mxu0 0.0
  %2317 = vmatpush2.msra.mxu0 0.0
  %2318 = vmatprep.subr.mxu0 0.0
  %2319 = vmatpush2.msra.mxu0 0.0
  %2320 = vmatprep.subr.mxu0 0.0
  %2321 = vmatpush2.msra.mxu0 0.0
  %2322 = vmatprep.subr.mxu0 0.0
  %2323 = vmatpush2.msra.mxu0 0.0
  %2324 = vmatprep.subr.mxu0 0.0
  %2325 = vmatpush2.msra.mxu0 0.0
  %2326 = vmatprep.subr.mxu0 0.0
  %2327 = vmatpush2.msra.mxu0 0.0
  %2328 = vmatprep.subr.mxu0 0.0
  %2329 = vmatpush2.msra.mxu0 0.0
  %2330 = vmatprep.subr.mxu0 0.0
  %2331 = vmatpush2.msra.mxu0 0.0
  %2332 = vmatprep.subr.mxu0 0.0
  %2333 = vmatpush2.msra.mxu0 0.0
  %2334 = vmatprep.subr.mxu0 0.0
  %2335 = vmatpush2.msra.mxu0 0.0
  %2336 = vmatprep.subr.mxu0 0.0
  %2337 = vmatpush2.msra.mxu0 0.0
  %2338 = vmatprep.subr.mxu0 0.0
  %2339 = vmatpush2.msra.mxu0 0.0
  %2340 = vmatprep.subr.mxu0 0.0
  %2341 = vmatpush2.msra.mxu0 0.0
  %2342 = vmatprep.subr.mxu0 0.0
  %2343 = vmatpush2.msra.mxu0 0.0
  %2344 = vmatprep.mubr.f32.mxu0 0.0
  %v2345 = vand.u32 %v2068, 4294901760
  %2346 = vmatmul.mubr.f32.gmra.mxu0 %v2345
  %v2347 = vpop.f32.mrf.mxu0
  %v2348 = vadd.f32 %v2165, %v2347
  %v2349 = vpop.f32.mrf.mxu0
  %v2350 = vadd.f32 %v2167, %v2349
  %2351 = vmatprep.mubr.f32.mxu0 0.0
  %v2352 = vand.u32 %v2071, 4294901760
  %2353 = vmatmul.mubr.f32.gmra.mxu0 %v2352
  %v2354 = vpop.f32.mrf.mxu0
  %v2355 = vadd.f32 %v2176, %v2354
  %v2356 = vpop.f32.mrf.mxu0
  %v2357 = vadd.f32 %v2178, %v2356
  %2358 = vdwg.mxu0
  %2359 = vmatprep.subr.mxu0 0.0
  %2360 = vmatpush1.msra.mxu0 0.0
  %2361 = vmatprep.subr.mxu0 0.0
  %2362 = vmatpush1.msra.mxu0 0.0
  %2363 = vmatprep.subr.mxu0 0.0
  %2364 = vmatpush1.msra.mxu0 0.0
  %2365 = vmatprep.subr.mxu0 0.0
  %2366 = vmatpush1.msra.mxu0 0.0
  %2367 = vmatprep.subr.mxu0 0.0
  %2368 = vmatpush1.msra.mxu0 0.0
  %2369 = vmatprep.subr.mxu0 0.0
  %2370 = vmatpush1.msra.mxu0 0.0
  %v2371 = vand.u32 %v2064, 4294901760
  %v2372 = vsub.f32 %v2064, %v2371
  %2373 = vmatprep.subr.mxu0 %v2372
  %v2374 = vand.u32 %v2063, 4294901760
  %v2375 = vsub.f32 %v2063, %v2374
  %2376 = vmatpush1.msra.mxu0 %v2375
  %v2377 = vand.u32 %v2060, 4294901760
  %v2378 = vsub.f32 %v2060, %v2377
  %2379 = vmatprep.subr.mxu0 %v2378
  %v2380 = vand.u32 %v2059, 4294901760
  %v2381 = vsub.f32 %v2059, %v2380
  %2382 = vmatpush1.msra.mxu0 %v2381
  %v2383 = vand.u32 %v2056, 4294901760
  %v2384 = vsub.f32 %v2056, %v2383
  %2385 = vmatprep.subr.mxu0 %v2384
  %v2386 = vand.u32 %v2055, 4294901760
  %v2387 = vsub.f32 %v2055, %v2386
  %2388 = vmatpush1.msra.mxu0 %v2387
  %v2389 = vand.u32 %v2052, 4294901760
  %v2390 = vsub.f32 %v2052, %v2389
  %2391 = vmatprep.subr.mxu0 %v2390
  %v2392 = vand.u32 %v2051, 4294901760
  %v2393 = vsub.f32 %v2051, %v2392
  %2394 = vmatpush1.msra.mxu0 %v2393
  %v2395 = vand.u32 %v2048, 4294901760
  %v2396 = vsub.f32 %v2048, %v2395
  %2397 = vmatprep.subr.mxu0 %v2396
  %v2398 = vand.u32 %v2047, 4294901760
  %v2399 = vsub.f32 %v2047, %v2398
  %2400 = vmatpush1.msra.mxu0 %v2399
  %v2401 = vand.u32 %v2044, 4294901760
  %v2402 = vsub.f32 %v2044, %v2401
  %2403 = vmatprep.subr.mxu0 %v2402
  %v2404 = vand.u32 %v2043, 4294901760
  %v2405 = vsub.f32 %v2043, %v2404
  %2406 = vmatpush1.msra.mxu0 %v2405
  %v2407 = vand.u32 %v2040, 4294901760
  %v2408 = vsub.f32 %v2040, %v2407
  %2409 = vmatprep.subr.mxu0 %v2408
  %v2410 = vand.u32 %v2039, 4294901760
  %v2411 = vsub.f32 %v2039, %v2410
  %2412 = vmatpush1.msra.mxu0 %v2411
  %v2413 = vand.u32 %v2036, 4294901760
  %v2414 = vsub.f32 %v2036, %v2413
  %2415 = vmatprep.subr.mxu0 %v2414
  %v2416 = vand.u32 %v2035, 4294901760
  %v2417 = vsub.f32 %v2035, %v2416
  %2418 = vmatpush1.msra.mxu0 %v2417
  %v2419 = vand.u32 %v2032, 4294901760
  %v2420 = vsub.f32 %v2032, %v2419
  %2421 = vmatprep.subr.mxu0 %v2420
  %v2422 = vand.u32 %v2031, 4294901760
  %v2423 = vsub.f32 %v2031, %v2422
  %2424 = vmatpush1.msra.mxu0 %v2423
  %v2425 = vand.u32 %v2028, 4294901760
  %v2426 = vsub.f32 %v2028, %v2425
  %2427 = vmatprep.subr.mxu0 %v2426
  %v2428 = vand.u32 %v2027, 4294901760
  %v2429 = vsub.f32 %v2027, %v2428
  %2430 = vmatpush1.msra.mxu0 %v2429
  %2431 = vmatprep.subr.mxu0 0.0
  %2432 = vmatpush2.msra.mxu0 0.0
  %2433 = vmatprep.subr.mxu0 0.0
  %2434 = vmatpush2.msra.mxu0 0.0
  %2435 = vmatprep.subr.mxu0 0.0
  %2436 = vmatpush2.msra.mxu0 0.0
  %2437 = vmatprep.subr.mxu0 0.0
  %2438 = vmatpush2.msra.mxu0 0.0
  %2439 = vmatprep.subr.mxu0 0.0
  %2440 = vmatpush2.msra.mxu0 0.0
  %2441 = vmatprep.subr.mxu0 0.0
  %2442 = vmatpush2.msra.mxu0 0.0
  %2443 = vmatprep.subr.mxu0 0.0
  %2444 = vmatpush2.msra.mxu0 0.0
  %2445 = vmatprep.subr.mxu0 0.0
  %2446 = vmatpush2.msra.mxu0 0.0
  %2447 = vmatprep.subr.mxu0 0.0
  %2448 = vmatpush2.msra.mxu0 0.0
  %2449 = vmatprep.subr.mxu0 0.0
  %2450 = vmatpush2.msra.mxu0 0.0
  %2451 = vmatprep.subr.mxu0 0.0
  %2452 = vmatpush2.msra.mxu0 0.0
  %2453 = vmatprep.subr.mxu0 0.0
  %2454 = vmatpush2.msra.mxu0 0.0
  %2455 = vmatprep.subr.mxu0 0.0
  %2456 = vmatpush2.msra.mxu0 0.0
  %2457 = vmatprep.subr.mxu0 0.0
  %2458 = vmatpush2.msra.mxu0 0.0
  %2459 = vmatprep.subr.mxu0 0.0
  %2460 = vmatpush2.msra.mxu0 0.0
  %2461 = vmatprep.subr.mxu0 0.0
  %2462 = vmatpush2.msra.mxu0 0.0
  %2463 = vmatprep.mubr.f32.mxu0 0.0
  %v2464 = vand.u32 %v2068, 4294901760
  %v2465 = vsub.f32 %v2068, %v2464
  %2466 = vmatmul.mubr.f32.gmra.mxu0 %v2465
  %v2467 = vpop.f32.mrf.mxu0
  %v2468 = vadd.f32 %v2348, %v2467
  %v2469 = vpop.f32.mrf.mxu0
  %v2470 = vadd.f32 %v2350, %v2469
  %2471 = vmatprep.mubr.f32.mxu0 0.0
  %v2472 = vand.u32 %v2071, 4294901760
  %v2473 = vsub.f32 %v2071, %v2472
  %2474 = vmatmul.mubr.f32.gmra.mxu0 %v2473
  %v2475 = vpop.f32.mrf.mxu0
  %v2476 = vadd.f32 %v2355, %v2475
  %v2477 = vpop.f32.mrf.mxu0
  %v2478 = vadd.f32 %v2357, %v2477
  %2479 = vdwg.mxu0
  %2480 = vmatprep.subr.mxu0 0.0
  %2481 = vmatpush1.msra.mxu0 0.0
  %2482 = vmatprep.subr.mxu0 0.0
  %2483 = vmatpush1.msra.mxu0 0.0
  %2484 = vmatprep.subr.mxu0 0.0
  %2485 = vmatpush1.msra.mxu0 0.0
  %2486 = vmatprep.subr.mxu0 0.0
  %2487 = vmatpush1.msra.mxu0 0.0
  %2488 = vmatprep.subr.mxu0 0.0
  %2489 = vmatpush1.msra.mxu0 0.0
  %2490 = vmatprep.subr.mxu0 0.0
  %2491 = vmatpush1.msra.mxu0 0.0
  %v2492 = vand.u32 %v2064, 4294901760
  %2493 = vmatprep.subr.mxu0 %v2492
  %v2494 = vand.u32 %v2063, 4294901760
  %2495 = vmatpush1.msra.mxu0 %v2494
  %v2496 = vand.u32 %v2060, 4294901760
  %2497 = vmatprep.subr.mxu0 %v2496
  %v2498 = vand.u32 %v2059, 4294901760
  %2499 = vmatpush1.msra.mxu0 %v2498
  %v2500 = vand.u32 %v2056, 4294901760
  %2501 = vmatprep.subr.mxu0 %v2500
  %v2502 = vand.u32 %v2055, 4294901760
  %2503 = vmatpush1.msra.mxu0 %v2502
  %v2504 = vand.u32 %v2052, 4294901760
  %2505 = vmatprep.subr.mxu0 %v2504
  %v2506 = vand.u32 %v2051, 4294901760
  %2507 = vmatpush1.msra.mxu0 %v2506
  %v2508 = vand.u32 %v2048, 4294901760
  %2509 = vmatprep.subr.mxu0 %v2508
  %v2510 = vand.u32 %v2047, 4294901760
  %2511 = vmatpush1.msra.mxu0 %v2510
  %v2512 = vand.u32 %v2044, 4294901760
  %2513 = vmatprep.subr.mxu0 %v2512
  %v2514 = vand.u32 %v2043, 4294901760
  %2515 = vmatpush1.msra.mxu0 %v2514
  %v2516 = vand.u32 %v2040, 4294901760
  %2517 = vmatprep.subr.mxu0 %v2516
  %v2518 = vand.u32 %v2039, 4294901760
  %2519 = vmatpush1.msra.mxu0 %v2518
  %v2520 = vand.u32 %v2036, 4294901760
  %2521 = vmatprep.subr.mxu0 %v2520
  %v2522 = vand.u32 %v2035, 4294901760
  %2523 = vmatpush1.msra.mxu0 %v2522
  %v2524 = vand.u32 %v2032, 4294901760
  %2525 = vmatprep.subr.mxu0 %v2524
  %v2526 = vand.u32 %v2031, 4294901760
  %2527 = vmatpush1.msra.mxu0 %v2526
  %v2528 = vand.u32 %v2028, 4294901760
  %2529 = vmatprep.subr.mxu0 %v2528
  %v2530 = vand.u32 %v2027, 4294901760
  %2531 = vmatpush1.msra.mxu0 %v2530
  %2532 = vmatprep.subr.mxu0 0.0
  %2533 = vmatpush2.msra.mxu0 0.0
  %2534 = vmatprep.subr.mxu0 0.0
  %2535 = vmatpush2.msra.mxu0 0.0
  %2536 = vmatprep.subr.mxu0 0.0
  %2537 = vmatpush2.msra.mxu0 0.0
  %2538 = vmatprep.subr.mxu0 0.0
  %2539 = vmatpush2.msra.mxu0 0.0
  %2540 = vmatprep.subr.mxu0 0.0
  %2541 = vmatpush2.msra.mxu0 0.0
  %2542 = vmatprep.subr.mxu0 0.0
  %2543 = vmatpush2.msra.mxu0 0.0
  %2544 = vmatprep.subr.mxu0 0.0
  %2545 = vmatpush2.msra.mxu0 0.0
  %2546 = vmatprep.subr.mxu0 0.0
  %2547 = vmatpush2.msra.mxu0 0.0
  %2548 = vmatprep.subr.mxu0 0.0
  %2549 = vmatpush2.msra.mxu0 0.0
  %2550 = vmatprep.subr.mxu0 0.0
  %2551 = vmatpush2.msra.mxu0 0.0
  %2552 = vmatprep.subr.mxu0 0.0
  %2553 = vmatpush2.msra.mxu0 0.0
  %2554 = vmatprep.subr.mxu0 0.0
  %2555 = vmatpush2.msra.mxu0 0.0
  %2556 = vmatprep.subr.mxu0 0.0
  %2557 = vmatpush2.msra.mxu0 0.0
  %2558 = vmatprep.subr.mxu0 0.0
  %2559 = vmatpush2.msra.mxu0 0.0
  %2560 = vmatprep.subr.mxu0 0.0
  %2561 = vmatpush2.msra.mxu0 0.0
  %2562 = vmatprep.subr.mxu0 0.0
  %2563 = vmatpush2.msra.mxu0 0.0
  %2564 = vmatprep.mubr.f32.mxu0 0.0
  %v2565 = vand.u32 %v2068, 4294901760
  %v2566 = vsub.f32 %v2068, %v2565
  %v2567 = vand.u32 %v2566, 4294901760
  %2568 = vmatmul.mubr.f32.gmra.mxu0 %v2567
  %v2569 = vpop.f32.mrf.mxu0
  %v2570 = vadd.f32 %v2468, %v2569
  %v2571 = vpop.f32.mrf.mxu0
  %v2572 = vadd.f32 %v2470, %v2571
  %2573 = vmatprep.mubr.f32.mxu0 0.0
  %v2574 = vand.u32 %v2071, 4294901760
  %v2575 = vsub.f32 %v2071, %v2574
  %v2576 = vand.u32 %v2575, 4294901760
  %2577 = vmatmul.mubr.f32.gmra.mxu0 %v2576
  %v2578 = vpop.f32.mrf.mxu0
  %v2579 = vadd.f32 %v2476, %v2578
  %v2580 = vpop.f32.mrf.mxu0
  %v2581 = vadd.f32 %v2478, %v2580
  %2582 = vdwg.mxu0
  %2583 = vmatprep.subr.mxu0 0.0
  %2584 = vmatpush1.msra.mxu0 0.0
  %2585 = vmatprep.subr.mxu0 0.0
  %2586 = vmatpush1.msra.mxu0 0.0
  %2587 = vmatprep.subr.mxu0 0.0
  %2588 = vmatpush1.msra.mxu0 0.0
  %2589 = vmatprep.subr.mxu0 0.0
  %2590 = vmatpush1.msra.mxu0 0.0
  %2591 = vmatprep.subr.mxu0 0.0
  %2592 = vmatpush1.msra.mxu0 0.0
  %2593 = vmatprep.subr.mxu0 0.0
  %2594 = vmatpush1.msra.mxu0 0.0
  %v2595 = vand.u32 %v2064, 4294901760
  %v2596 = vsub.f32 %v2064, %v2595
  %v2597 = vand.u32 %v2596, 4294901760
  %2598 = vmatprep.subr.mxu0 %v2597
  %v2599 = vand.u32 %v2063, 4294901760
  %v2600 = vsub.f32 %v2063, %v2599
  %v2601 = vand.u32 %v2600, 4294901760
  %2602 = vmatpush1.msra.mxu0 %v2601
  %v2603 = vand.u32 %v2060, 4294901760
  %v2604 = vsub.f32 %v2060, %v2603
  %v2605 = vand.u32 %v2604, 4294901760
  %2606 = vmatprep.subr.mxu0 %v2605
  %v2607 = vand.u32 %v2059, 4294901760
  %v2608 = vsub.f32 %v2059, %v2607
  %v2609 = vand.u32 %v2608, 4294901760
  %2610 = vmatpush1.msra.mxu0 %v2609
  %v2611 = vand.u32 %v2056, 4294901760
  %v2612 = vsub.f32 %v2056, %v2611
  %v2613 = vand.u32 %v2612, 4294901760
  %2614 = vmatprep.subr.mxu0 %v2613
  %v2615 = vand.u32 %v2055, 4294901760
  %v2616 = vsub.f32 %v2055, %v2615
  %v2617 = vand.u32 %v2616, 4294901760
  %2618 = vmatpush1.msra.mxu0 %v2617
  %v2619 = vand.u32 %v2052, 4294901760
  %v2620 = vsub.f32 %v2052, %v2619
  %v2621 = vand.u32 %v2620, 4294901760
  %2622 = vmatprep.subr.mxu0 %v2621
  %v2623 = vand.u32 %v2051, 4294901760
  %v2624 = vsub.f32 %v2051, %v2623
  %v2625 = vand.u32 %v2624, 4294901760
  %2626 = vmatpush1.msra.mxu0 %v2625
  %v2627 = vand.u32 %v2048, 4294901760
  %v2628 = vsub.f32 %v2048, %v2627
  %v2629 = vand.u32 %v2628, 4294901760
  %2630 = vmatprep.subr.mxu0 %v2629
  %v2631 = vand.u32 %v2047, 4294901760
  %v2632 = vsub.f32 %v2047, %v2631
  %v2633 = vand.u32 %v2632, 4294901760
  %2634 = vmatpush1.msra.mxu0 %v2633
  %v2635 = vand.u32 %v2044, 4294901760
  %v2636 = vsub.f32 %v2044, %v2635
  %v2637 = vand.u32 %v2636, 4294901760
  %2638 = vmatprep.subr.mxu0 %v2637
  %v2639 = vand.u32 %v2043, 4294901760
  %v2640 = vsub.f32 %v2043, %v2639
  %v2641 = vand.u32 %v2640, 4294901760
  %2642 = vmatpush1.msra.mxu0 %v2641
  %v2643 = vand.u32 %v2040, 4294901760
  %v2644 = vsub.f32 %v2040, %v2643
  %v2645 = vand.u32 %v2644, 4294901760
  %2646 = vmatprep.subr.mxu0 %v2645
  %v2647 = vand.u32 %v2039, 4294901760
  %v2648 = vsub.f32 %v2039, %v2647
  %v2649 = vand.u32 %v2648, 4294901760
  %2650 = vmatpush1.msra.mxu0 %v2649
  %v2651 = vand.u32 %v2036, 4294901760
  %v2652 = vsub.f32 %v2036, %v2651
  %v2653 = vand.u32 %v2652, 4294901760
  %2654 = vmatprep.subr.mxu0 %v2653
  %v2655 = vand.u32 %v2035, 4294901760
  %v2656 = vsub.f32 %v2035, %v2655
  %v2657 = vand.u32 %v2656, 4294901760
  %2658 = vmatpush1.msra.mxu0 %v2657
  %v2659 = vand.u32 %v2032, 4294901760
  %v2660 = vsub.f32 %v2032, %v2659
  %v2661 = vand.u32 %v2660, 4294901760
  %2662 = vmatprep.subr.mxu0 %v2661
  %v2663 = vand.u32 %v2031, 4294901760
  %v2664 = vsub.f32 %v2031, %v2663
  %v2665 = vand.u32 %v2664, 4294901760
  %2666 = vmatpush1.msra.mxu0 %v2665
  %v2667 = vand.u32 %v2028, 4294901760
  %v2668 = vsub.f32 %v2028, %v2667
  %v2669 = vand.u32 %v2668, 4294901760
  %2670 = vmatprep.subr.mxu0 %v2669
  %v2671 = vand.u32 %v2027, 4294901760
  %v2672 = vsub.f32 %v2027, %v2671
  %v2673 = vand.u32 %v2672, 4294901760
  %2674 = vmatpush1.msra.mxu0 %v2673
  %2675 = vmatprep.subr.mxu0 0.0
  %2676 = vmatpush2.msra.mxu0 0.0
  %2677 = vmatprep.subr.mxu0 0.0
  %2678 = vmatpush2.msra.mxu0 0.0
  %2679 = vmatprep.subr.mxu0 0.0
  %2680 = vmatpush2.msra.mxu0 0.0
  %2681 = vmatprep.subr.mxu0 0.0
  %2682 = vmatpush2.msra.mxu0 0.0
  %2683 = vmatprep.subr.mxu0 0.0
  %2684 = vmatpush2.msra.mxu0 0.0
  %2685 = vmatprep.subr.mxu0 0.0
  %2686 = vmatpush2.msra.mxu0 0.0
  %2687 = vmatprep.subr.mxu0 0.0
  %2688 = vmatpush2.msra.mxu0 0.0
  %2689 = vmatprep.subr.mxu0 0.0
  %2690 = vmatpush2.msra.mxu0 0.0
  %2691 = vmatprep.subr.mxu0 0.0
  %2692 = vmatpush2.msra.mxu0 0.0
  %2693 = vmatprep.subr.mxu0 0.0
  %2694 = vmatpush2.msra.mxu0 0.0
  %2695 = vmatprep.subr.mxu0 0.0
  %2696 = vmatpush2.msra.mxu0 0.0
  %2697 = vmatprep.subr.mxu0 0.0
  %2698 = vmatpush2.msra.mxu0 0.0
  %2699 = vmatprep.subr.mxu0 0.0
  %2700 = vmatpush2.msra.mxu0 0.0
  %2701 = vmatprep.subr.mxu0 0.0
  %2702 = vmatpush2.msra.mxu0 0.0
  %2703 = vmatprep.subr.mxu0 0.0
  %2704 = vmatpush2.msra.mxu0 0.0
  %2705 = vmatprep.subr.mxu0 0.0
  %2706 = vmatpush2.msra.mxu0 0.0
  %2707 = vmatprep.mubr.f32.mxu0 0.0
  %v2708 = vand.u32 %v2068, 4294901760
  %2709 = vmatmul.mubr.f32.gmra.mxu0 %v2708
  %v2710 = vpop.f32.mrf.mxu0
  %v2711 = vadd.f32 %v2570, %v2710
  %v2712 = vpop.f32.mrf.mxu0
  %v2713 = vadd.f32 %v2572, %v2712
  %2714 = vmatprep.mubr.f32.mxu0 0.0
  %v2715 = vand.u32 %v2071, 4294901760
  %2716 = vmatmul.mubr.f32.gmra.mxu0 %v2715
  %v2717 = vpop.f32.mrf.mxu0
  %v2718 = vadd.f32 %v2579, %v2717
  %v2719 = vpop.f32.mrf.mxu0
  %v2720 = vadd.f32 %v2581, %v2719
  %2721 = vdwg.mxu0
  %2722 = vmatprep.subr.mxu0 0.0
  %2723 = vmatpush1.msra.mxu0 0.0
  %2724 = vmatprep.subr.mxu0 0.0
  %2725 = vmatpush1.msra.mxu0 0.0
  %2726 = vmatprep.subr.mxu0 0.0
  %2727 = vmatpush1.msra.mxu0 0.0
  %2728 = vmatprep.subr.mxu0 0.0
  %2729 = vmatpush1.msra.mxu0 0.0
  %2730 = vmatprep.subr.mxu0 0.0
  %2731 = vmatpush1.msra.mxu0 0.0
  %2732 = vmatprep.subr.mxu0 0.0
  %2733 = vmatpush1.msra.mxu0 0.0
  %v2734 = vand.u32 %v2064, 4294901760
  %2735 = vmatprep.subr.mxu0 %v2734
  %v2736 = vand.u32 %v2063, 4294901760
  %2737 = vmatpush1.msra.mxu0 %v2736
  %v2738 = vand.u32 %v2060, 4294901760
  %2739 = vmatprep.subr.mxu0 %v2738
  %v2740 = vand.u32 %v2059, 4294901760
  %2741 = vmatpush1.msra.mxu0 %v2740
  %v2742 = vand.u32 %v2056, 4294901760
  %2743 = vmatprep.subr.mxu0 %v2742
  %v2744 = vand.u32 %v2055, 4294901760
  %2745 = vmatpush1.msra.mxu0 %v2744
  %v2746 = vand.u32 %v2052, 4294901760
  %2747 = vmatprep.subr.mxu0 %v2746
  %v2748 = vand.u32 %v2051, 4294901760
  %2749 = vmatpush1.msra.mxu0 %v2748
  %v2750 = vand.u32 %v2048, 4294901760
  %2751 = vmatprep.subr.mxu0 %v2750
  %v2752 = vand.u32 %v2047, 4294901760
  %2753 = vmatpush1.msra.mxu0 %v2752
  %v2754 = vand.u32 %v2044, 4294901760
  %2755 = vmatprep.subr.mxu0 %v2754
  %v2756 = vand.u32 %v2043, 4294901760
  %2757 = vmatpush1.msra.mxu0 %v2756
  %v2758 = vand.u32 %v2040, 4294901760
  %2759 = vmatprep.subr.mxu0 %v2758
  %v2760 = vand.u32 %v2039, 4294901760
  %2761 = vmatpush1.msra.mxu0 %v2760
  %v2762 = vand.u32 %v2036, 4294901760
  %2763 = vmatprep.subr.mxu0 %v2762
  %v2764 = vand.u32 %v2035, 4294901760
  %2765 = vmatpush1.msra.mxu0 %v2764
  %v2766 = vand.u32 %v2032, 4294901760
  %2767 = vmatprep.subr.mxu0 %v2766
  %v2768 = vand.u32 %v2031, 4294901760
  %2769 = vmatpush1.msra.mxu0 %v2768
  %v2770 = vand.u32 %v2028, 4294901760
  %2771 = vmatprep.subr.mxu0 %v2770
  %v2772 = vand.u32 %v2027, 4294901760
  %2773 = vmatpush1.msra.mxu0 %v2772
  %2774 = vmatprep.subr.mxu0 0.0
  %2775 = vmatpush2.msra.mxu0 0.0
  %2776 = vmatprep.subr.mxu0 0.0
  %2777 = vmatpush2.msra.mxu0 0.0
  %2778 = vmatprep.subr.mxu0 0.0
  %2779 = vmatpush2.msra.mxu0 0.0
  %2780 = vmatprep.subr.mxu0 0.0
  %2781 = vmatpush2.msra.mxu0 0.0
  %2782 = vmatprep.subr.mxu0 0.0
  %2783 = vmatpush2.msra.mxu0 0.0
  %2784 = vmatprep.subr.mxu0 0.0
  %2785 = vmatpush2.msra.mxu0 0.0
  %2786 = vmatprep.subr.mxu0 0.0
  %2787 = vmatpush2.msra.mxu0 0.0
  %2788 = vmatprep.subr.mxu0 0.0
  %2789 = vmatpush2.msra.mxu0 0.0
  %2790 = vmatprep.subr.mxu0 0.0
  %2791 = vmatpush2.msra.mxu0 0.0
  %2792 = vmatprep.subr.mxu0 0.0
  %2793 = vmatpush2.msra.mxu0 0.0
  %2794 = vmatprep.subr.mxu0 0.0
  %2795 = vmatpush2.msra.mxu0 0.0
  %2796 = vmatprep.subr.mxu0 0.0
  %2797 = vmatpush2.msra.mxu0 0.0
  %2798 = vmatprep.subr.mxu0 0.0
  %2799 = vmatpush2.msra.mxu0 0.0
  %2800 = vmatprep.subr.mxu0 0.0
  %2801 = vmatpush2.msra.mxu0 0.0
  %2802 = vmatprep.subr.mxu0 0.0
  %2803 = vmatpush2.msra.mxu0 0.0
  %2804 = vmatprep.subr.mxu0 0.0
  %2805 = vmatpush2.msra.mxu0 0.0
  %2806 = vmatprep.mubr.f32.mxu0 0.0
  %v2807 = vand.u32 %v2068, 4294901760
  %2808 = vmatmul.mubr.f32.gmra.mxu0 %v2807
  %v2809 = vpop.f32.mrf.mxu0
  %v2810 = vadd.f32 %v2711, %v2809
  %v2811 = vpop.f32.mrf.mxu0
  %v2812 = vadd.f32 %v2713, %v2811
  %2813 = vmatprep.mubr.f32.mxu0 0.0
  %v2814 = vand.u32 %v2071, 4294901760
  %2815 = vmatmul.mubr.f32.gmra.mxu0 %v2814
  %v2816 = vpop.f32.mrf.mxu0
  %v2817 = vadd.f32 %v2718, %v2816
  %v2818 = vpop.f32.mrf.mxu0
  %v2819 = vadd.f32 %v2720, %v2818
  %2820 = vdwg.mxu0
  %2821 = vmatprep.subr.mxu0 0.0
  %2822 = vmatpush1.msra.mxu0 0.0
  %2823 = vmatprep.subr.mxu0 0.0
  %2824 = vmatpush1.msra.mxu0 0.0
  %2825 = vmatprep.subr.mxu0 0.0
  %2826 = vmatpush1.msra.mxu0 0.0
  %2827 = vmatprep.subr.mxu0 0.0
  %2828 = vmatpush1.msra.mxu0 0.0
  %2829 = vmatprep.subr.mxu0 0.0
  %2830 = vmatpush1.msra.mxu0 0.0
  %2831 = vmatprep.subr.mxu0 0.0
  %2832 = vmatpush1.msra.mxu0 0.0
  %v2833 = vand.u32 %v2066, 4294901760
  %2834 = vmatprep.subr.mxu0 %v2833
  %v2835 = vand.u32 %v2065, 4294901760
  %2836 = vmatpush1.msra.mxu0 %v2835
  %v2837 = vand.u32 %v2062, 4294901760
  %2838 = vmatprep.subr.mxu0 %v2837
  %v2839 = vand.u32 %v2061, 4294901760
  %2840 = vmatpush1.msra.mxu0 %v2839
  %v2841 = vand.u32 %v2058, 4294901760
  %2842 = vmatprep.subr.mxu0 %v2841
  %v2843 = vand.u32 %v2057, 4294901760
  %2844 = vmatpush1.msra.mxu0 %v2843
  %v2845 = vand.u32 %v2054, 4294901760
  %2846 = vmatprep.subr.mxu0 %v2845
  %v2847 = vand.u32 %v2053, 4294901760
  %2848 = vmatpush1.msra.mxu0 %v2847
  %v2849 = vand.u32 %v2050, 4294901760
  %2850 = vmatprep.subr.mxu0 %v2849
  %v2851 = vand.u32 %v2049, 4294901760
  %2852 = vmatpush1.msra.mxu0 %v2851
  %v2853 = vand.u32 %v2046, 4294901760
  %2854 = vmatprep.subr.mxu0 %v2853
  %v2855 = vand.u32 %v2045, 4294901760
  %2856 = vmatpush1.msra.mxu0 %v2855
  %v2857 = vand.u32 %v2042, 4294901760
  %2858 = vmatprep.subr.mxu0 %v2857
  %v2859 = vand.u32 %v2041, 4294901760
  %2860 = vmatpush1.msra.mxu0 %v2859
  %v2861 = vand.u32 %v2038, 4294901760
  %2862 = vmatprep.subr.mxu0 %v2861
  %v2863 = vand.u32 %v2037, 4294901760
  %2864 = vmatpush1.msra.mxu0 %v2863
  %v2865 = vand.u32 %v2034, 4294901760
  %2866 = vmatprep.subr.mxu0 %v2865
  %v2867 = vand.u32 %v2033, 4294901760
  %2868 = vmatpush1.msra.mxu0 %v2867
  %v2869 = vand.u32 %v2030, 4294901760
  %2870 = vmatprep.subr.mxu0 %v2869
  %v2871 = vand.u32 %v2029, 4294901760
  %2872 = vmatpush1.msra.mxu0 %v2871
  %2873 = vmatprep.subr.mxu0 0.0
  %2874 = vmatpush2.msra.mxu0 0.0
  %2875 = vmatprep.subr.mxu0 0.0
  %2876 = vmatpush2.msra.mxu0 0.0
  %2877 = vmatprep.subr.mxu0 0.0
  %2878 = vmatpush2.msra.mxu0 0.0
  %2879 = vmatprep.subr.mxu0 0.0
  %2880 = vmatpush2.msra.mxu0 0.0
  %2881 = vmatprep.subr.mxu0 0.0
  %2882 = vmatpush2.msra.mxu0 0.0
  %2883 = vmatprep.subr.mxu0 0.0
  %2884 = vmatpush2.msra.mxu0 0.0
  %2885 = vmatprep.subr.mxu0 0.0
  %2886 = vmatpush2.msra.mxu0 0.0
  %2887 = vmatprep.subr.mxu0 0.0
  %2888 = vmatpush2.msra.mxu0 0.0
  %2889 = vmatprep.subr.mxu0 0.0
  %2890 = vmatpush2.msra.mxu0 0.0
  %2891 = vmatprep.subr.mxu0 0.0
  %2892 = vmatpush2.msra.mxu0 0.0
  %2893 = vmatprep.subr.mxu0 0.0
  %2894 = vmatpush2.msra.mxu0 0.0
  %2895 = vmatprep.subr.mxu0 0.0
  %2896 = vmatpush2.msra.mxu0 0.0
  %2897 = vmatprep.subr.mxu0 0.0
  %2898 = vmatpush2.msra.mxu0 0.0
  %2899 = vmatprep.subr.mxu0 0.0
  %2900 = vmatpush2.msra.mxu0 0.0
  %2901 = vmatprep.subr.mxu0 0.0
  %2902 = vmatpush2.msra.mxu0 0.0
  %2903 = vmatprep.subr.mxu0 0.0
  %2904 = vmatpush2.msra.mxu0 0.0
  %2905 = vmatprep.mubr.f32.mxu0 0.0
  %v2906 = vand.u32 %v2068, 4294901760
  %v2907 = vsub.f32 %v2068, %v2906
  %v2908 = vand.u32 %v2907, 4294901760
  %v2909 = vsub.f32 %v2907, %v2908
  %v2910 = vand.u32 %v2909, 4294901760
  %2911 = vmatmul.mubr.f32.gmra.mxu0 %v2910
  %v2912 = vpop.f32.mrf.mxu0
  %v2913 = vadd.f32 0.0, %v2912
  %v2914 = vpop.f32.mrf.mxu0
  %v2915 = vadd.f32 0.0, %v2914
  %2916 = vmatprep.mubr.f32.mxu0 0.0
  %v2917 = vand.u32 %v2071, 4294901760
  %v2918 = vsub.f32 %v2071, %v2917
  %v2919 = vand.u32 %v2918, 4294901760
  %v2920 = vsub.f32 %v2918, %v2919
  %v2921 = vand.u32 %v2920, 4294901760
  %2922 = vmatmul.mubr.f32.gmra.mxu0 %v2921
  %v2923 = vpop.f32.mrf.mxu0
  %v2924 = vadd.f32 0.0, %v2923
  %v2925 = vpop.f32.mrf.mxu0
  %v2926 = vadd.f32 0.0, %v2925
  %2927 = vdwg.mxu0
  %2928 = vmatprep.subr.mxu0 0.0
  %2929 = vmatpush1.msra.mxu0 0.0
  %2930 = vmatprep.subr.mxu0 0.0
  %2931 = vmatpush1.msra.mxu0 0.0
  %2932 = vmatprep.subr.mxu0 0.0
  %2933 = vmatpush1.msra.mxu0 0.0
  %2934 = vmatprep.subr.mxu0 0.0
  %2935 = vmatpush1.msra.mxu0 0.0
  %2936 = vmatprep.subr.mxu0 0.0
  %2937 = vmatpush1.msra.mxu0 0.0
  %2938 = vmatprep.subr.mxu0 0.0
  %2939 = vmatpush1.msra.mxu0 0.0
  %v2940 = vand.u32 %v2066, 4294901760
  %v2941 = vsub.f32 %v2066, %v2940
  %v2942 = vand.u32 %v2941, 4294901760
  %v2943 = vsub.f32 %v2941, %v2942
  %v2944 = vand.u32 %v2943, 4294901760
  %2945 = vmatprep.subr.mxu0 %v2944
  %v2946 = vand.u32 %v2065, 4294901760
  %v2947 = vsub.f32 %v2065, %v2946
  %v2948 = vand.u32 %v2947, 4294901760
  %v2949 = vsub.f32 %v2947, %v2948
  %v2950 = vand.u32 %v2949, 4294901760
  %2951 = vmatpush1.msra.mxu0 %v2950
  %v2952 = vand.u32 %v2062, 4294901760
  %v2953 = vsub.f32 %v2062, %v2952
  %v2954 = vand.u32 %v2953, 4294901760
  %v2955 = vsub.f32 %v2953, %v2954
  %v2956 = vand.u32 %v2955, 4294901760
  %2957 = vmatprep.subr.mxu0 %v2956
  %v2958 = vand.u32 %v2061, 4294901760
  %v2959 = vsub.f32 %v2061, %v2958
  %v2960 = vand.u32 %v2959, 4294901760
  %v2961 = vsub.f32 %v2959, %v2960
  %v2962 = vand.u32 %v2961, 4294901760
  %2963 = vmatpush1.msra.mxu0 %v2962
  %v2964 = vand.u32 %v2058, 4294901760
  %v2965 = vsub.f32 %v2058, %v2964
  %v2966 = vand.u32 %v2965, 4294901760
  %v2967 = vsub.f32 %v2965, %v2966
  %v2968 = vand.u32 %v2967, 4294901760
  %2969 = vmatprep.subr.mxu0 %v2968
  %v2970 = vand.u32 %v2057, 4294901760
  %v2971 = vsub.f32 %v2057, %v2970
  %v2972 = vand.u32 %v2971, 4294901760
  %v2973 = vsub.f32 %v2971, %v2972
  %v2974 = vand.u32 %v2973, 4294901760
  %2975 = vmatpush1.msra.mxu0 %v2974
  %v2976 = vand.u32 %v2054, 4294901760
  %v2977 = vsub.f32 %v2054, %v2976
  %v2978 = vand.u32 %v2977, 4294901760
  %v2979 = vsub.f32 %v2977, %v2978
  %v2980 = vand.u32 %v2979, 4294901760
  %2981 = vmatprep.subr.mxu0 %v2980
  %v2982 = vand.u32 %v2053, 4294901760
  %v2983 = vsub.f32 %v2053, %v2982
  %v2984 = vand.u32 %v2983, 4294901760
  %v2985 = vsub.f32 %v2983, %v2984
  %v2986 = vand.u32 %v2985, 4294901760
  %2987 = vmatpush1.msra.mxu0 %v2986
  %v2988 = vand.u32 %v2050, 4294901760
  %v2989 = vsub.f32 %v2050, %v2988
  %v2990 = vand.u32 %v2989, 4294901760
  %v2991 = vsub.f32 %v2989, %v2990
  %v2992 = vand.u32 %v2991, 4294901760
  %2993 = vmatprep.subr.mxu0 %v2992
  %v2994 = vand.u32 %v2049, 4294901760
  %v2995 = vsub.f32 %v2049, %v2994
  %v2996 = vand.u32 %v2995, 4294901760
  %v2997 = vsub.f32 %v2995, %v2996
  %v2998 = vand.u32 %v2997, 4294901760
  %2999 = vmatpush1.msra.mxu0 %v2998
  %v3000 = vand.u32 %v2046, 4294901760
  %v3001 = vsub.f32 %v2046, %v3000
  %v3002 = vand.u32 %v3001, 4294901760
  %v3003 = vsub.f32 %v3001, %v3002
  %v3004 = vand.u32 %v3003, 4294901760
  %3005 = vmatprep.subr.mxu0 %v3004
  %v3006 = vand.u32 %v2045, 4294901760
  %v3007 = vsub.f32 %v2045, %v3006
  %v3008 = vand.u32 %v3007, 4294901760
  %v3009 = vsub.f32 %v3007, %v3008
  %v3010 = vand.u32 %v3009, 4294901760
  %3011 = vmatpush1.msra.mxu0 %v3010
  %v3012 = vand.u32 %v2042, 4294901760
  %v3013 = vsub.f32 %v2042, %v3012
  %v3014 = vand.u32 %v3013, 4294901760
  %v3015 = vsub.f32 %v3013, %v3014
  %v3016 = vand.u32 %v3015, 4294901760
  %3017 = vmatprep.subr.mxu0 %v3016
  %v3018 = vand.u32 %v2041, 4294901760
  %v3019 = vsub.f32 %v2041, %v3018
  %v3020 = vand.u32 %v3019, 4294901760
  %v3021 = vsub.f32 %v3019, %v3020
  %v3022 = vand.u32 %v3021, 4294901760
  %3023 = vmatpush1.msra.mxu0 %v3022
  %v3024 = vand.u32 %v2038, 4294901760
  %v3025 = vsub.f32 %v2038, %v3024
  %v3026 = vand.u32 %v3025, 4294901760
  %v3027 = vsub.f32 %v3025, %v3026
  %v3028 = vand.u32 %v3027, 4294901760
  %3029 = vmatprep.subr.mxu0 %v3028
  %v3030 = vand.u32 %v2037, 4294901760
  %v3031 = vsub.f32 %v2037, %v3030
  %v3032 = vand.u32 %v3031, 4294901760
  %v3033 = vsub.f32 %v3031, %v3032
  %v3034 = vand.u32 %v3033, 4294901760
  %3035 = vmatpush1.msra.mxu0 %v3034
  %v3036 = vand.u32 %v2034, 4294901760
  %v3037 = vsub.f32 %v2034, %v3036
  %v3038 = vand.u32 %v3037, 4294901760
  %v3039 = vsub.f32 %v3037, %v3038
  %v3040 = vand.u32 %v3039, 4294901760
  %3041 = vmatprep.subr.mxu0 %v3040
  %v3042 = vand.u32 %v2033, 4294901760
  %v3043 = vsub.f32 %v2033, %v3042
  %v3044 = vand.u32 %v3043, 4294901760
  %v3045 = vsub.f32 %v3043, %v3044
  %v3046 = vand.u32 %v3045, 4294901760
  %3047 = vmatpush1.msra.mxu0 %v3046
  %v3048 = vand.u32 %v2030, 4294901760
  %v3049 = vsub.f32 %v2030, %v3048
  %v3050 = vand.u32 %v3049, 4294901760
  %v3051 = vsub.f32 %v3049, %v3050
  %v3052 = vand.u32 %v3051, 4294901760
  %3053 = vmatprep.subr.mxu0 %v3052
  %v3054 = vand.u32 %v2029, 4294901760
  %v3055 = vsub.f32 %v2029, %v3054
  %v3056 = vand.u32 %v3055, 4294901760
  %v3057 = vsub.f32 %v3055, %v3056
  %v3058 = vand.u32 %v3057, 4294901760
  %3059 = vmatpush1.msra.mxu0 %v3058
  %3060 = vmatprep.subr.mxu0 0.0
  %3061 = vmatpush2.msra.mxu0 0.0
  %3062 = vmatprep.subr.mxu0 0.0
  %3063 = vmatpush2.msra.mxu0 0.0
  %3064 = vmatprep.subr.mxu0 0.0
  %3065 = vmatpush2.msra.mxu0 0.0
  %3066 = vmatprep.subr.mxu0 0.0
  %3067 = vmatpush2.msra.mxu0 0.0
  %3068 = vmatprep.subr.mxu0 0.0
  %3069 = vmatpush2.msra.mxu0 0.0
  %3070 = vmatprep.subr.mxu0 0.0
  %3071 = vmatpush2.msra.mxu0 0.0
  %3072 = vmatprep.subr.mxu0 0.0
  %3073 = vmatpush2.msra.mxu0 0.0
  %3074 = vmatprep.subr.mxu0 0.0
  %3075 = vmatpush2.msra.mxu0 0.0
  %3076 = vmatprep.subr.mxu0 0.0
  %3077 = vmatpush2.msra.mxu0 0.0
  %3078 = vmatprep.subr.mxu0 0.0
  %3079 = vmatpush2.msra.mxu0 0.0
  %3080 = vmatprep.subr.mxu0 0.0
  %3081 = vmatpush2.msra.mxu0 0.0
  %3082 = vmatprep.subr.mxu0 0.0
  %3083 = vmatpush2.msra.mxu0 0.0
  %3084 = vmatprep.subr.mxu0 0.0
  %3085 = vmatpush2.msra.mxu0 0.0
  %3086 = vmatprep.subr.mxu0 0.0
  %3087 = vmatpush2.msra.mxu0 0.0
  %3088 = vmatprep.subr.mxu0 0.0
  %3089 = vmatpush2.msra.mxu0 0.0
  %3090 = vmatprep.subr.mxu0 0.0
  %3091 = vmatpush2.msra.mxu0 0.0
  %3092 = vmatprep.mubr.f32.mxu0 0.0
  %v3093 = vand.u32 %v2068, 4294901760
  %3094 = vmatmul.mubr.f32.gmra.mxu0 %v3093
  %v3095 = vpop.f32.mrf.mxu0
  %v3096 = vadd.f32 %v2913, %v3095
  %v3097 = vpop.f32.mrf.mxu0
  %v3098 = vadd.f32 %v2915, %v3097
  %3099 = vmatprep.mubr.f32.mxu0 0.0
  %v3100 = vand.u32 %v2071, 4294901760
  %3101 = vmatmul.mubr.f32.gmra.mxu0 %v3100
  %v3102 = vpop.f32.mrf.mxu0
  %v3103 = vadd.f32 %v2924, %v3102
  %v3104 = vpop.f32.mrf.mxu0
  %v3105 = vadd.f32 %v2926, %v3104
  %3106 = vdwg.mxu0
  %3107 = vmatprep.subr.mxu0 0.0
  %3108 = vmatpush1.msra.mxu0 0.0
  %3109 = vmatprep.subr.mxu0 0.0
  %3110 = vmatpush1.msra.mxu0 0.0
  %3111 = vmatprep.subr.mxu0 0.0
  %3112 = vmatpush1.msra.mxu0 0.0
  %3113 = vmatprep.subr.mxu0 0.0
  %3114 = vmatpush1.msra.mxu0 0.0
  %3115 = vmatprep.subr.mxu0 0.0
  %3116 = vmatpush1.msra.mxu0 0.0
  %3117 = vmatprep.subr.mxu0 0.0
  %3118 = vmatpush1.msra.mxu0 0.0
  %v3119 = vand.u32 %v2066, 4294901760
  %v3120 = vsub.f32 %v2066, %v3119
  %3121 = vmatprep.subr.mxu0 %v3120
  %v3122 = vand.u32 %v2065, 4294901760
  %v3123 = vsub.f32 %v2065, %v3122
  %3124 = vmatpush1.msra.mxu0 %v3123
  %v3125 = vand.u32 %v2062, 4294901760
  %v3126 = vsub.f32 %v2062, %v3125
  %3127 = vmatprep.subr.mxu0 %v3126
  %v3128 = vand.u32 %v2061, 4294901760
  %v3129 = vsub.f32 %v2061, %v3128
  %3130 = vmatpush1.msra.mxu0 %v3129
  %v3131 = vand.u32 %v2058, 4294901760
  %v3132 = vsub.f32 %v2058, %v3131
  %3133 = vmatprep.subr.mxu0 %v3132
  %v3134 = vand.u32 %v2057, 4294901760
  %v3135 = vsub.f32 %v2057, %v3134
  %3136 = vmatpush1.msra.mxu0 %v3135
  %v3137 = vand.u32 %v2054, 4294901760
  %v3138 = vsub.f32 %v2054, %v3137
  %3139 = vmatprep.subr.mxu0 %v3138
  %v3140 = vand.u32 %v2053, 4294901760
  %v3141 = vsub.f32 %v2053, %v3140
  %3142 = vmatpush1.msra.mxu0 %v3141
  %v3143 = vand.u32 %v2050, 4294901760
  %v3144 = vsub.f32 %v2050, %v3143
  %3145 = vmatprep.subr.mxu0 %v3144
  %v3146 = vand.u32 %v2049, 4294901760
  %v3147 = vsub.f32 %v2049, %v3146
  %3148 = vmatpush1.msra.mxu0 %v3147
  %v3149 = vand.u32 %v2046, 4294901760
  %v3150 = vsub.f32 %v2046, %v3149
  %3151 = vmatprep.subr.mxu0 %v3150
  %v3152 = vand.u32 %v2045, 4294901760
  %v3153 = vsub.f32 %v2045, %v3152
  %3154 = vmatpush1.msra.mxu0 %v3153
  %v3155 = vand.u32 %v2042, 4294901760
  %v3156 = vsub.f32 %v2042, %v3155
  %3157 = vmatprep.subr.mxu0 %v3156
  %v3158 = vand.u32 %v2041, 4294901760
  %v3159 = vsub.f32 %v2041, %v3158
  %3160 = vmatpush1.msra.mxu0 %v3159
  %v3161 = vand.u32 %v2038, 4294901760
  %v3162 = vsub.f32 %v2038, %v3161
  %3163 = vmatprep.subr.mxu0 %v3162
  %v3164 = vand.u32 %v2037, 4294901760
  %v3165 = vsub.f32 %v2037, %v3164
  %3166 = vmatpush1.msra.mxu0 %v3165
  %v3167 = vand.u32 %v2034, 4294901760
  %v3168 = vsub.f32 %v2034, %v3167
  %3169 = vmatprep.subr.mxu0 %v3168
  %v3170 = vand.u32 %v2033, 4294901760
  %v3171 = vsub.f32 %v2033, %v3170
  %3172 = vmatpush1.msra.mxu0 %v3171
  %v3173 = vand.u32 %v2030, 4294901760
  %v3174 = vsub.f32 %v2030, %v3173
  %3175 = vmatprep.subr.mxu0 %v3174
  %v3176 = vand.u32 %v2029, 4294901760
  %v3177 = vsub.f32 %v2029, %v3176
  %3178 = vmatpush1.msra.mxu0 %v3177
  %3179 = vmatprep.subr.mxu0 0.0
  %3180 = vmatpush2.msra.mxu0 0.0
  %3181 = vmatprep.subr.mxu0 0.0
  %3182 = vmatpush2.msra.mxu0 0.0
  %3183 = vmatprep.subr.mxu0 0.0
  %3184 = vmatpush2.msra.mxu0 0.0
  %3185 = vmatprep.subr.mxu0 0.0
  %3186 = vmatpush2.msra.mxu0 0.0
  %3187 = vmatprep.subr.mxu0 0.0
  %3188 = vmatpush2.msra.mxu0 0.0
  %3189 = vmatprep.subr.mxu0 0.0
  %3190 = vmatpush2.msra.mxu0 0.0
  %3191 = vmatprep.subr.mxu0 0.0
  %3192 = vmatpush2.msra.mxu0 0.0
  %3193 = vmatprep.subr.mxu0 0.0
  %3194 = vmatpush2.msra.mxu0 0.0
  %3195 = vmatprep.subr.mxu0 0.0
  %3196 = vmatpush2.msra.mxu0 0.0
  %3197 = vmatprep.subr.mxu0 0.0
  %3198 = vmatpush2.msra.mxu0 0.0
  %3199 = vmatprep.subr.mxu0 0.0
  %3200 = vmatpush2.msra.mxu0 0.0
  %3201 = vmatprep.subr.mxu0 0.0
  %3202 = vmatpush2.msra.mxu0 0.0
  %3203 = vmatprep.subr.mxu0 0.0
  %3204 = vmatpush2.msra.mxu0 0.0
  %3205 = vmatprep.subr.mxu0 0.0
  %3206 = vmatpush2.msra.mxu0 0.0
  %3207 = vmatprep.subr.mxu0 0.0
  %3208 = vmatpush2.msra.mxu0 0.0
  %3209 = vmatprep.subr.mxu0 0.0
  %3210 = vmatpush2.msra.mxu0 0.0
  %3211 = vmatprep.mubr.f32.mxu0 0.0
  %v3212 = vand.u32 %v2068, 4294901760
  %v3213 = vsub.f32 %v2068, %v3212
  %3214 = vmatmul.mubr.f32.gmra.mxu0 %v3213
  %v3215 = vpop.f32.mrf.mxu0
  %v3216 = vadd.f32 %v3096, %v3215
  %v3217 = vpop.f32.mrf.mxu0
  %v3218 = vadd.f32 %v3098, %v3217
  %3219 = vmatprep.mubr.f32.mxu0 0.0
  %v3220 = vand.u32 %v2071, 4294901760
  %v3221 = vsub.f32 %v2071, %v3220
  %3222 = vmatmul.mubr.f32.gmra.mxu0 %v3221
  %v3223 = vpop.f32.mrf.mxu0
  %v3224 = vadd.f32 %v3103, %v3223
  %v3225 = vpop.f32.mrf.mxu0
  %v3226 = vadd.f32 %v3105, %v3225
  %3227 = vdwg.mxu0
  %3228 = vmatprep.subr.mxu0 0.0
  %3229 = vmatpush1.msra.mxu0 0.0
  %3230 = vmatprep.subr.mxu0 0.0
  %3231 = vmatpush1.msra.mxu0 0.0
  %3232 = vmatprep.subr.mxu0 0.0
  %3233 = vmatpush1.msra.mxu0 0.0
  %3234 = vmatprep.subr.mxu0 0.0
  %3235 = vmatpush1.msra.mxu0 0.0
  %3236 = vmatprep.subr.mxu0 0.0
  %3237 = vmatpush1.msra.mxu0 0.0
  %3238 = vmatprep.subr.mxu0 0.0
  %3239 = vmatpush1.msra.mxu0 0.0
  %v3240 = vand.u32 %v2066, 4294901760
  %3241 = vmatprep.subr.mxu0 %v3240
  %v3242 = vand.u32 %v2065, 4294901760
  %3243 = vmatpush1.msra.mxu0 %v3242
  %v3244 = vand.u32 %v2062, 4294901760
  %3245 = vmatprep.subr.mxu0 %v3244
  %v3246 = vand.u32 %v2061, 4294901760
  %3247 = vmatpush1.msra.mxu0 %v3246
  %v3248 = vand.u32 %v2058, 4294901760
  %3249 = vmatprep.subr.mxu0 %v3248
  %v3250 = vand.u32 %v2057, 4294901760
  %3251 = vmatpush1.msra.mxu0 %v3250
  %v3252 = vand.u32 %v2054, 4294901760
  %3253 = vmatprep.subr.mxu0 %v3252
  %v3254 = vand.u32 %v2053, 4294901760
  %3255 = vmatpush1.msra.mxu0 %v3254
  %v3256 = vand.u32 %v2050, 4294901760
  %3257 = vmatprep.subr.mxu0 %v3256
  %v3258 = vand.u32 %v2049, 4294901760
  %3259 = vmatpush1.msra.mxu0 %v3258
  %v3260 = vand.u32 %v2046, 4294901760
  %3261 = vmatprep.subr.mxu0 %v3260
  %v3262 = vand.u32 %v2045, 4294901760
  %3263 = vmatpush1.msra.mxu0 %v3262
  %v3264 = vand.u32 %v2042, 4294901760
  %3265 = vmatprep.subr.mxu0 %v3264
  %v3266 = vand.u32 %v2041, 4294901760
  %3267 = vmatpush1.msra.mxu0 %v3266
  %v3268 = vand.u32 %v2038, 4294901760
  %3269 = vmatprep.subr.mxu0 %v3268
  %v3270 = vand.u32 %v2037, 4294901760
  %3271 = vmatpush1.msra.mxu0 %v3270
  %v3272 = vand.u32 %v2034, 4294901760
  %3273 = vmatprep.subr.mxu0 %v3272
  %v3274 = vand.u32 %v2033, 4294901760
  %3275 = vmatpush1.msra.mxu0 %v3274
  %v3276 = vand.u32 %v2030, 4294901760
  %3277 = vmatprep.subr.mxu0 %v3276
  %v3278 = vand.u32 %v2029, 4294901760
  %3279 = vmatpush1.msra.mxu0 %v3278
  %3280 = vmatprep.subr.mxu0 0.0
  %3281 = vmatpush2.msra.mxu0 0.0
  %3282 = vmatprep.subr.mxu0 0.0
  %3283 = vmatpush2.msra.mxu0 0.0
  %3284 = vmatprep.subr.mxu0 0.0
  %3285 = vmatpush2.msra.mxu0 0.0
  %3286 = vmatprep.subr.mxu0 0.0
  %3287 = vmatpush2.msra.mxu0 0.0
  %3288 = vmatprep.subr.mxu0 0.0
  %3289 = vmatpush2.msra.mxu0 0.0
  %3290 = vmatprep.subr.mxu0 0.0
  %3291 = vmatpush2.msra.mxu0 0.0
  %3292 = vmatprep.subr.mxu0 0.0
  %3293 = vmatpush2.msra.mxu0 0.0
  %3294 = vmatprep.subr.mxu0 0.0
  %3295 = vmatpush2.msra.mxu0 0.0
  %3296 = vmatprep.subr.mxu0 0.0
  %3297 = vmatpush2.msra.mxu0 0.0
  %3298 = vmatprep.subr.mxu0 0.0
  %3299 = vmatpush2.msra.mxu0 0.0
  %3300 = vmatprep.subr.mxu0 0.0
  %3301 = vmatpush2.msra.mxu0 0.0
  %3302 = vmatprep.subr.mxu0 0.0
  %3303 = vmatpush2.msra.mxu0 0.0
  %3304 = vmatprep.subr.mxu0 0.0
  %3305 = vmatpush2.msra.mxu0 0.0
  %3306 = vmatprep.subr.mxu0 0.0
  %3307 = vmatpush2.msra.mxu0 0.0
  %3308 = vmatprep.subr.mxu0 0.0
  %3309 = vmatpush2.msra.mxu0 0.0
  %3310 = vmatprep.subr.mxu0 0.0
  %3311 = vmatpush2.msra.mxu0 0.0
  %3312 = vmatprep.mubr.f32.mxu0 0.0
  %v3313 = vand.u32 %v2068, 4294901760
  %v3314 = vsub.f32 %v2068, %v3313
  %v3315 = vand.u32 %v3314, 4294901760
  %3316 = vmatmul.mubr.f32.gmra.mxu0 %v3315
  %v3317 = vpop.f32.mrf.mxu0
  %v3318 = vadd.f32 %v3216, %v3317
  %v3319 = vpop.f32.mrf.mxu0
  %v3320 = vadd.f32 %v3218, %v3319
  %3321 = vmatprep.mubr.f32.mxu0 0.0
  %v3322 = vand.u32 %v2071, 4294901760
  %v3323 = vsub.f32 %v2071, %v3322
  %v3324 = vand.u32 %v3323, 4294901760
  %3325 = vmatmul.mubr.f32.gmra.mxu0 %v3324
  %v3326 = vpop.f32.mrf.mxu0
  %v3327 = vadd.f32 %v3224, %v3326
  %v3328 = vpop.f32.mrf.mxu0
  %v3329 = vadd.f32 %v3226, %v3328
  %3330 = vdwg.mxu0
  %3331 = vmatprep.subr.mxu0 0.0
  %3332 = vmatpush1.msra.mxu0 0.0
  %3333 = vmatprep.subr.mxu0 0.0
  %3334 = vmatpush1.msra.mxu0 0.0
  %3335 = vmatprep.subr.mxu0 0.0
  %3336 = vmatpush1.msra.mxu0 0.0
  %3337 = vmatprep.subr.mxu0 0.0
  %3338 = vmatpush1.msra.mxu0 0.0
  %3339 = vmatprep.subr.mxu0 0.0
  %3340 = vmatpush1.msra.mxu0 0.0
  %3341 = vmatprep.subr.mxu0 0.0
  %3342 = vmatpush1.msra.mxu0 0.0
  %v3343 = vand.u32 %v2066, 4294901760
  %v3344 = vsub.f32 %v2066, %v3343
  %v3345 = vand.u32 %v3344, 4294901760
  %3346 = vmatprep.subr.mxu0 %v3345
  %v3347 = vand.u32 %v2065, 4294901760
  %v3348 = vsub.f32 %v2065, %v3347
  %v3349 = vand.u32 %v3348, 4294901760
  %3350 = vmatpush1.msra.mxu0 %v3349
  %v3351 = vand.u32 %v2062, 4294901760
  %v3352 = vsub.f32 %v2062, %v3351
  %v3353 = vand.u32 %v3352, 4294901760
  %3354 = vmatprep.subr.mxu0 %v3353
  %v3355 = vand.u32 %v2061, 4294901760
  %v3356 = vsub.f32 %v2061, %v3355
  %v3357 = vand.u32 %v3356, 4294901760
  %3358 = vmatpush1.msra.mxu0 %v3357
  %v3359 = vand.u32 %v2058, 4294901760
  %v3360 = vsub.f32 %v2058, %v3359
  %v3361 = vand.u32 %v3360, 4294901760
  %3362 = vmatprep.subr.mxu0 %v3361
  %v3363 = vand.u32 %v2057, 4294901760
  %v3364 = vsub.f32 %v2057, %v3363
  %v3365 = vand.u32 %v3364, 4294901760
  %3366 = vmatpush1.msra.mxu0 %v3365
  %v3367 = vand.u32 %v2054, 4294901760
  %v3368 = vsub.f32 %v2054, %v3367
  %v3369 = vand.u32 %v3368, 4294901760
  %3370 = vmatprep.subr.mxu0 %v3369
  %v3371 = vand.u32 %v2053, 4294901760
  %v3372 = vsub.f32 %v2053, %v3371
  %v3373 = vand.u32 %v3372, 4294901760
  %3374 = vmatpush1.msra.mxu0 %v3373
  %v3375 = vand.u32 %v2050, 4294901760
  %v3376 = vsub.f32 %v2050, %v3375
  %v3377 = vand.u32 %v3376, 4294901760
  %3378 = vmatprep.subr.mxu0 %v3377
  %v3379 = vand.u32 %v2049, 4294901760
  %v3380 = vsub.f32 %v2049, %v3379
  %v3381 = vand.u32 %v3380, 4294901760
  %3382 = vmatpush1.msra.mxu0 %v3381
  %v3383 = vand.u32 %v2046, 4294901760
  %v3384 = vsub.f32 %v2046, %v3383
  %v3385 = vand.u32 %v3384, 4294901760
  %3386 = vmatprep.subr.mxu0 %v3385
  %v3387 = vand.u32 %v2045, 4294901760
  %v3388 = vsub.f32 %v2045, %v3387
  %v3389 = vand.u32 %v3388, 4294901760
  %3390 = vmatpush1.msra.mxu0 %v3389
  %v3391 = vand.u32 %v2042, 4294901760
  %v3392 = vsub.f32 %v2042, %v3391
  %v3393 = vand.u32 %v3392, 4294901760
  %3394 = vmatprep.subr.mxu0 %v3393
  %v3395 = vand.u32 %v2041, 4294901760
  %v3396 = vsub.f32 %v2041, %v3395
  %v3397 = vand.u32 %v3396, 4294901760
  %3398 = vmatpush1.msra.mxu0 %v3397
  %v3399 = vand.u32 %v2038, 4294901760
  %v3400 = vsub.f32 %v2038, %v3399
  %v3401 = vand.u32 %v3400, 4294901760
  %3402 = vmatprep.subr.mxu0 %v3401
  %v3403 = vand.u32 %v2037, 4294901760
  %v3404 = vsub.f32 %v2037, %v3403
  %v3405 = vand.u32 %v3404, 4294901760
  %3406 = vmatpush1.msra.mxu0 %v3405
  %v3407 = vand.u32 %v2034, 4294901760
  %v3408 = vsub.f32 %v2034, %v3407
  %v3409 = vand.u32 %v3408, 4294901760
  %3410 = vmatprep.subr.mxu0 %v3409
  %v3411 = vand.u32 %v2033, 4294901760
  %v3412 = vsub.f32 %v2033, %v3411
  %v3413 = vand.u32 %v3412, 4294901760
  %3414 = vmatpush1.msra.mxu0 %v3413
  %v3415 = vand.u32 %v2030, 4294901760
  %v3416 = vsub.f32 %v2030, %v3415
  %v3417 = vand.u32 %v3416, 4294901760
  %3418 = vmatprep.subr.mxu0 %v3417
  %v3419 = vand.u32 %v2029, 4294901760
  %v3420 = vsub.f32 %v2029, %v3419
  %v3421 = vand.u32 %v3420, 4294901760
  %3422 = vmatpush1.msra.mxu0 %v3421
  %3423 = vmatprep.subr.mxu0 0.0
  %3424 = vmatpush2.msra.mxu0 0.0
  %3425 = vmatprep.subr.mxu0 0.0
  %3426 = vmatpush2.msra.mxu0 0.0
  %3427 = vmatprep.subr.mxu0 0.0
  %3428 = vmatpush2.msra.mxu0 0.0
  %3429 = vmatprep.subr.mxu0 0.0
  %3430 = vmatpush2.msra.mxu0 0.0
  %3431 = vmatprep.subr.mxu0 0.0
  %3432 = vmatpush2.msra.mxu0 0.0
  %3433 = vmatprep.subr.mxu0 0.0
  %3434 = vmatpush2.msra.mxu0 0.0
  %3435 = vmatprep.subr.mxu0 0.0
  %3436 = vmatpush2.msra.mxu0 0.0
  %3437 = vmatprep.subr.mxu0 0.0
  %3438 = vmatpush2.msra.mxu0 0.0
  %3439 = vmatprep.subr.mxu0 0.0
  %3440 = vmatpush2.msra.mxu0 0.0
  %3441 = vmatprep.subr.mxu0 0.0
  %3442 = vmatpush2.msra.mxu0 0.0
  %3443 = vmatprep.subr.mxu0 0.0
  %3444 = vmatpush2.msra.mxu0 0.0
  %3445 = vmatprep.subr.mxu0 0.0
  %3446 = vmatpush2.msra.mxu0 0.0
  %3447 = vmatprep.subr.mxu0 0.0
  %3448 = vmatpush2.msra.mxu0 0.0
  %3449 = vmatprep.subr.mxu0 0.0
  %3450 = vmatpush2.msra.mxu0 0.0
  %3451 = vmatprep.subr.mxu0 0.0
  %3452 = vmatpush2.msra.mxu0 0.0
  %3453 = vmatprep.subr.mxu0 0.0
  %3454 = vmatpush2.msra.mxu0 0.0
  %3455 = vmatprep.mubr.f32.mxu0 0.0
  %v3456 = vand.u32 %v2068, 4294901760
  %3457 = vmatmul.mubr.f32.gmra.mxu0 %v3456
  %v3458 = vpop.f32.mrf.mxu0
  %v3459 = vadd.f32 %v3318, %v3458
  %v3460 = vpop.f32.mrf.mxu0
  %v3461 = vadd.f32 %v3320, %v3460
  %3462 = vmatprep.mubr.f32.mxu0 0.0
  %v3463 = vand.u32 %v2071, 4294901760
  %3464 = vmatmul.mubr.f32.gmra.mxu0 %v3463
  %v3465 = vpop.f32.mrf.mxu0
  %v3466 = vadd.f32 %v3327, %v3465
  %v3467 = vpop.f32.mrf.mxu0
  %v3468 = vadd.f32 %v3329, %v3467
  %3469 = vdwg.mxu0
  %3470 = vmatprep.subr.mxu0 0.0
  %3471 = vmatpush1.msra.mxu0 0.0
  %3472 = vmatprep.subr.mxu0 0.0
  %3473 = vmatpush1.msra.mxu0 0.0
  %3474 = vmatprep.subr.mxu0 0.0
  %3475 = vmatpush1.msra.mxu0 0.0
  %3476 = vmatprep.subr.mxu0 0.0
  %3477 = vmatpush1.msra.mxu0 0.0
  %3478 = vmatprep.subr.mxu0 0.0
  %3479 = vmatpush1.msra.mxu0 0.0
  %3480 = vmatprep.subr.mxu0 0.0
  %3481 = vmatpush1.msra.mxu0 0.0
  %v3482 = vand.u32 %v2066, 4294901760
  %3483 = vmatprep.subr.mxu0 %v3482
  %v3484 = vand.u32 %v2065, 4294901760
  %3485 = vmatpush1.msra.mxu0 %v3484
  %v3486 = vand.u32 %v2062, 4294901760
  %3487 = vmatprep.subr.mxu0 %v3486
  %v3488 = vand.u32 %v2061, 4294901760
  %3489 = vmatpush1.msra.mxu0 %v3488
  %v3490 = vand.u32 %v2058, 4294901760
  %3491 = vmatprep.subr.mxu0 %v3490
  %v3492 = vand.u32 %v2057, 4294901760
  %3493 = vmatpush1.msra.mxu0 %v3492
  %v3494 = vand.u32 %v2054, 4294901760
  %3495 = vmatprep.subr.mxu0 %v3494
  %v3496 = vand.u32 %v2053, 4294901760
  %3497 = vmatpush1.msra.mxu0 %v3496
  %v3498 = vand.u32 %v2050, 4294901760
  %3499 = vmatprep.subr.mxu0 %v3498
  %v3500 = vand.u32 %v2049, 4294901760
  %3501 = vmatpush1.msra.mxu0 %v3500
  %v3502 = vand.u32 %v2046, 4294901760
  %3503 = vmatprep.subr.mxu0 %v3502
  %v3504 = vand.u32 %v2045, 4294901760
  %3505 = vmatpush1.msra.mxu0 %v3504
  %v3506 = vand.u32 %v2042, 4294901760
  %3507 = vmatprep.subr.mxu0 %v3506
  %v3508 = vand.u32 %v2041, 4294901760
  %3509 = vmatpush1.msra.mxu0 %v3508
  %v3510 = vand.u32 %v2038, 4294901760
  %3511 = vmatprep.subr.mxu0 %v3510
  %v3512 = vand.u32 %v2037, 4294901760
  %3513 = vmatpush1.msra.mxu0 %v3512
  %v3514 = vand.u32 %v2034, 4294901760
  %3515 = vmatprep.subr.mxu0 %v3514
  %v3516 = vand.u32 %v2033, 4294901760
  %3517 = vmatpush1.msra.mxu0 %v3516
  %v3518 = vand.u32 %v2030, 4294901760
  %3519 = vmatprep.subr.mxu0 %v3518
  %v3520 = vand.u32 %v2029, 4294901760
  %3521 = vmatpush1.msra.mxu0 %v3520
  %3522 = vmatprep.subr.mxu0 0.0
  %3523 = vmatpush2.msra.mxu0 0.0
  %3524 = vmatprep.subr.mxu0 0.0
  %3525 = vmatpush2.msra.mxu0 0.0
  %3526 = vmatprep.subr.mxu0 0.0
  %3527 = vmatpush2.msra.mxu0 0.0
  %3528 = vmatprep.subr.mxu0 0.0
  %3529 = vmatpush2.msra.mxu0 0.0
  %3530 = vmatprep.subr.mxu0 0.0
  %3531 = vmatpush2.msra.mxu0 0.0
  %3532 = vmatprep.subr.mxu0 0.0
  %3533 = vmatpush2.msra.mxu0 0.0
  %3534 = vmatprep.subr.mxu0 0.0
  %3535 = vmatpush2.msra.mxu0 0.0
  %3536 = vmatprep.subr.mxu0 0.0
  %3537 = vmatpush2.msra.mxu0 0.0
  %3538 = vmatprep.subr.mxu0 0.0
  %3539 = vmatpush2.msra.mxu0 0.0
  %3540 = vmatprep.subr.mxu0 0.0
  %3541 = vmatpush2.msra.mxu0 0.0
  %3542 = vmatprep.subr.mxu0 0.0
  %3543 = vmatpush2.msra.mxu0 0.0
  %3544 = vmatprep.subr.mxu0 0.0
  %3545 = vmatpush2.msra.mxu0 0.0
  %3546 = vmatprep.subr.mxu0 0.0
  %3547 = vmatpush2.msra.mxu0 0.0
  %3548 = vmatprep.subr.mxu0 0.0
  %3549 = vmatpush2.msra.mxu0 0.0
  %3550 = vmatprep.subr.mxu0 0.0
  %3551 = vmatpush2.msra.mxu0 0.0
  %3552 = vmatprep.subr.mxu0 0.0
  %3553 = vmatpush2.msra.mxu0 0.0
  %3554 = vmatprep.mubr.f32.mxu0 0.0
  %v3555 = vand.u32 %v2068, 4294901760
  %3556 = vmatmul.mubr.f32.gmra.mxu0 %v3555
  %v3557 = vpop.f32.mrf.mxu0
  %v3558 = vadd.f32 %v3459, %v3557
  %v3559 = vpop.f32.mrf.mxu0
  %v3560 = vadd.f32 %v3461, %v3559
  %3561 = vmatprep.mubr.f32.mxu0 0.0
  %v3562 = vand.u32 %v2071, 4294901760
  %3563 = vmatmul.mubr.f32.gmra.mxu0 %v3562
  %v3564 = vpop.f32.mrf.mxu0
  %v3565 = vadd.f32 %v3466, %v3564
  %v3566 = vpop.f32.mrf.mxu0
  %v3567 = vadd.f32 %v3468, %v3566
  %3568 = vdwg.mxu0
  %v3569 = vld [vmem:[%s6] sm:$0xff]
  %v3570 = vld [vmem:[%s6 + $0x8] sm:$0xff]
  %v3571 = vld [vmem:[%s7] sm:$0xff]
  %v3572 = vld [vmem:[%s7 + $0x8] sm:$0xff]
  %v3573 = vadd.f32 %v2810, %v2812
  %v3574 = vadd.f32 %v3573, %v3558
  %v3575 = vadd.f32 %v3574, %v3560
  %3576 = vadd.xlane.f32.xlu0 %v3575
  %v3577 = vpop.xlane.xlu0 %3576
  %v3578 = vadd.f32 %v2817, %v2819
  %v3579 = vadd.f32 %v3578, %v3565
  %v3580 = vadd.f32 %v3579, %v3567
  %3581 = vadd.xlane.f32.xlu0 %v3580
  %v3582 = vpop.xlane.xlu0 %3581
  %v3583 = vmul.f32 %v2810, %v2810
  %v3584 = vmul.f32 %v2812, %v2812
  %v3585 = vmul.f32 %v3558, %v3558
  %v3586 = vmul.f32 %v3560, %v3560
  %v3587 = vmul.f32 %v2817, %v2817
  %v3588 = vmul.f32 %v2819, %v2819
  %v3589 = vmul.f32 %v3565, %v3565
  %v3590 = vmul.f32 %v3567, %v3567
  %v3591 = vadd.f32 %v3583, %v3584
  %v3592 = vadd.f32 %v3591, %v3585
  %v3593 = vadd.f32 %v3592, %v3586
  %3594 = vadd.xlane.f32.xlu0 %v3593
  %v3595 = vpop.xlane.xlu0 %3594
  %v3596 = vadd.f32 %v3587, %v3588
  %v3597 = vadd.f32 %v3596, %v3589
  %v3598 = vadd.f32 %v3597, %v3590
  %3599 = vadd.xlane.f32.xlu0 %v3598
  %v3600 = vpop.xlane.xlu0 %3599
  %v3601 = vmul.f32 %v3577, 0.001953125
  %v3602 = vmul.f32 %v3582, 0.001953125
  %v3603 = vmul.f32 %v3595, 0.001953125
  %v3604 = vmul.f32 %v3600, 0.001953125
  %v3605 = vmul.f32 %v3601, %v3601
  %v3606 = vmul.f32 %v3602, %v3602
  %v3607 = vsub.f32 %v3603, %v3605
  %v3608 = vsub.f32 %v3604, %v3606
  %v3609 = vadd.f32 %v3607, 1e-05
  %v3610 = vadd.f32 %v3608, 1e-05
  %v3611 = vrsqrt.pop %v3609
  %v3612 = vrsqrt.pop %v3610
  %v3613 = vmul.f32 %v3569, %v3611
  %v3614 = vmul.f32 %v3570, %v3612
  %v3615 = vmul.f32 %v3601, %v3613
  %v3616 = vmul.f32 %v3602, %v3614
  %v3617 = vsub.f32 %v3571, %v3615
  %v3618 = vsub.f32 %v3572, %v3616
  %3620 = vset.pattern.permute.xlu0 0
  %3621 = vperm.xlu0 %3620, %v3613
  %v3622 = vpop.permute.xlu0 %3621
  %3625 = vset.pattern.permute.xlu0 0
  %3626 = vperm.xlu0 %3625, %v3614
  %v3627 = vpop.permute.xlu0 %3626
  %v3629 = vmul.f32 %v2810, %v3622
  %v3630 = vmul.f32 %v2812, %v3622
  %v3631 = vmul.f32 %v3558, %v3622
  %v3632 = vmul.f32 %v3560, %v3622
  %v3633 = vmul.f32 %v2817, %v3627
  %v3634 = vmul.f32 %v2819, %v3627
  %v3635 = vmul.f32 %v3565, %v3627
  %v3636 = vmul.f32 %v3567, %v3627
  %3638 = vset.pattern.permute.xlu0 0
  %3639 = vperm.xlu0 %3638, %v3617
  %v3640 = vpop.permute.xlu0 %3639
  %3643 = vset.pattern.permute.xlu0 0
  %3644 = vperm.xlu0 %3643, %v3618
  %v3645 = vpop.permute.xlu0 %3644
  %v3647 = vadd.f32 %v3629, %v3640
  %v3648 = vadd.f32 %v3630, %v3640
  %v3649 = vadd.f32 %v3631, %v3640
  %v3650 = vadd.f32 %v3632, %v3640
  %v3651 = vadd.f32 %v3633, %v3645
  %v3652 = vadd.f32 %v3634, %v3645
  %v3653 = vadd.f32 %v3635, %v3645
  %v3654 = vadd.f32 %v3636, %v3645
  %v3655 = vadd.f32 %v3647, %v3651
  %v3656 = vadd.f32 %v3648, %v3652
  %v3657 = vadd.f32 %v3649, %v3653
  %v3658 = vadd.f32 %v3650, %v3654
  %v3659 = vmax.f32 %v3655, 0.0
  %v3660 = vmax.f32 %v3656, 0.0
  %v3661 = vmax.f32 %v3657, 0.0
  %v3662 = vmax.f32 %v3658, 0.0
  %3663 = vst [vmem:[%s8] sm:$0xff] %v3659
  %3664 = vst [vmem:[%s8 + $0x8] sm:$0xff] %v3660
  %3665 = vst [vmem:[%s8 + $0x10] sm:$0xff] %v3661
  %3666 = vst [vmem:[%s8 + $0x18] sm:$0xff] %v3662
  // Predicated region
  $region34: #{_lambda_.1} parent=0 // pred_check
    _
  $region35: #{_lambda_.1} parent=0 // pred_check_branch
    %3668 = sbr.rel (0) target = $region37
  $region36: #{_lambda_.1} parent=0 // pred_region
    _
  $region37: #{_lambda_.1} parent=0 // pred_fallthru
    _
  // Predicated region
  $region38: #{_lambda_.1} parent=0 // pred_check
    _
  $region39: #{_lambda_.1} parent=0 // pred_check_branch
    %3670 = sbr.rel (0) target = $region41
  $region40: #{_lambda_.1} parent=0 // pred_region
    _
  $region41: #{_lambda_.1} parent=0 // pred_fallthru
    _

</llo_original>
